<compile_context>
chip_gen: v7x
topology: tpu7x:2x2x1
jax: 0.10.0
libtpu: 0.0.40
codegen_flags: <defaults>
</compile_context>

<pallas_src>
import functools

import jax
import jax.numpy as jnp
from jax.experimental import pallas as pl
from jax.experimental.pallas import tpu as pltpu

_BN_EPS = 1e-5
_BN_SCALE = (1.0 + _BN_EPS) ** -0.5  # eval-mode BN: (x - 0) / sqrt(1 + eps)
_VMEM = pl.BlockSpec(memory_space=pltpu.MemorySpace.VMEM)


def _round_up(x, m):
    return (x + m - 1) // m * m


# ----------------------- Pallas kernels -----------------------

def _mm_kernel(x_ref, w_ref, o_ref, acc_ref, *, apply_relu):
    # x: (TM, TK) bf16, w: (TK, TN) bf16, o: (TM, TN) f32, acc: (TM, TN) f32
    @pl.when(pl.program_id(2) == 0)
    def _():
        acc_ref[...] = jnp.zeros_like(acc_ref)

    acc_ref[...] += jnp.dot(x_ref[...], w_ref[...],
                            preferred_element_type=jnp.float32)

    @pl.when(pl.program_id(2) == pl.num_programs(2) - 1)
    def _():
        out = acc_ref[...]
        if apply_relu:
            out = jnp.maximum(out, 0.0)
        o_ref[...] = out.astype(o_ref.dtype)


def _mm_res_kernel(x_ref, w_ref, r_ref, o_ref, acc_ref, *, apply_relu):
    # Same as _mm_kernel but with a fused residual add in the epilogue.
    @pl.when(pl.program_id(2) == 0)
    def _():
        acc_ref[...] = jnp.zeros_like(acc_ref)

    acc_ref[...] += jnp.dot(x_ref[...], w_ref[...],
                            preferred_element_type=jnp.float32)

    @pl.when(pl.program_id(2) == pl.num_programs(2) - 1)
    def _():
        out = acc_ref[...] + r_ref[...]
        if apply_relu:
            out = jnp.maximum(out, 0.0)
        o_ref[...] = out.astype(o_ref.dtype)


def _maxpool9_kernel(t0, t1, t2, t3, t4, t5, t6, t7, t8, o_ref):
    acc = jnp.maximum(t0[...], t1[...])
    for t in (t2, t3, t4, t5, t6, t7, t8):
        acc = jnp.maximum(acc, t[...])
    o_ref[...] = acc


# ----------------------- fused tiled matmul -----------------------

def _pick_tk(kp128):
    """Pick a K tile (multiple of 128) that divides the 128-padded K."""
    if kp128 <= 512:
        return kp128
    for tk in (512, 384, 256, 128):
        if kp128 % tk == 0:
            return tk
    return 512


def _fused_matmul(lhs, rhs, residual=None, relu=False):
    """relu((lhs @ rhs) [+ residual]).  lhs:(M,K), rhs:(K,N) -> (M,N) f32.

    bf16 MXU inputs with an f32 accumulator; tiled (M,N,K) grid with
    double-buffered pipelining handled by BlockSpecs.
    """
    M, K = lhs.shape
    _, N = rhs.shape
    TM = min(256, _round_up(M, 8))
    TN = min(256, _round_up(N, 128))
    TK = _pick_tk(_round_up(K, 128))
    Mp, Np, Kp = _round_up(M, TM), _round_up(N, TN), _round_up(K, TK)

    lhs_b = jnp.pad(lhs.astype(jnp.bfloat16), ((0, Mp - M), (0, Kp - K)))
    rhs_b = jnp.pad(rhs.astype(jnp.bfloat16), ((0, Kp - K), (0, Np - N)))

    grid = (Mp // TM, Np // TN, Kp // TK)
    lhs_spec = pl.BlockSpec((TM, TK), lambda i, j, k: (i, k))
    rhs_spec = pl.BlockSpec((TK, TN), lambda i, j, k: (k, j))
    out_spec = pl.BlockSpec((TM, TN), lambda i, j, k: (i, j))

    n_res = 1 if residual is not None else 0
    cost = pl.CostEstimate(
        flops=2 * Mp * Np * Kp,
        transcendentals=0,
        bytes_accessed=2 * (Mp * Kp + Kp * Np) + 4 * Mp * Np * (1 + n_res),
    )
    cparams = pltpu.CompilerParams(
        dimension_semantics=("parallel", "parallel", "arbitrary"))

    if residual is None:
        out = pl.pallas_call(
            functools.partial(_mm_kernel, apply_relu=relu),
            out_shape=jax.ShapeDtypeStruct((Mp, Np), jnp.float32),
            grid_spec=pltpu.PrefetchScalarGridSpec(
                num_scalar_prefetch=0, grid=grid,
                in_specs=[lhs_spec, rhs_spec],
                out_specs=out_spec,
                scratch_shapes=[pltpu.VMEM((TM, TN), jnp.float32)]),
            compiler_params=cparams,
            cost_estimate=cost,
        )(lhs_b, rhs_b)
    else:
        res_p = jnp.pad(residual.astype(jnp.float32),
                        ((0, Mp - M), (0, Np - N)))
        res_spec = pl.BlockSpec((TM, TN), lambda i, j, k: (i, j))
        out = pl.pallas_call(
            functools.partial(_mm_res_kernel, apply_relu=relu),
            out_shape=jax.ShapeDtypeStruct((Mp, Np), jnp.float32),
            grid_spec=pltpu.PrefetchScalarGridSpec(
                num_scalar_prefetch=0, grid=grid,
                in_specs=[lhs_spec, rhs_spec, res_spec],
                out_specs=out_spec,
                scratch_shapes=[pltpu.VMEM((TM, TN), jnp.float32)]),
            compiler_params=cparams,
            cost_estimate=cost,
        )(lhs_b, rhs_b, res_p)

    if Mp != M or Np != N:
        out = out[:M, :N]
    return out


# ----------------------- conv / pool wrappers -----------------------

def _conv2d_fused(x, w_oihw, stride, pad, bn_scale=None, residual=None,
                  relu=False):
    """x: NHWC (channels may carry zero padding beyond the weight's Cin).
    w: PyTorch (Cout, Cin, kh, kw).  Returns NHWC with Cout zero-padded to a
    multiple of 128 so activations stay lane-dense between layers."""
    Cout, Cin, kh, kw = w_oihw.shape
    N, H, W, Cx = x.shape
    Ho = (H + 2 * pad - kh) // stride + 1
    Wo = (W + 2 * pad - kw) // stride + 1
    Coutp = _round_up(Cout, 128)

    # Fold the eval-mode BatchNorm scale into the weights (bias is zero) and
    # zero-pad: Cin up to the activation's lane-padded channel count, Cout up
    # to a lane multiple (padded rows/cols are zero => results unchanged).
    w = w_oihw.astype(jnp.float32)
    if bn_scale is not None:
        w = w * bn_scale
    w = jnp.pad(w, ((0, Coutp - Cout), (0, Cx - Cin), (0, 0), (0, 0)))
    w_mat = jnp.transpose(w, (2, 3, 1, 0)).reshape(kh * kw * Cx, Coutp)

    # im2col (XLA-side glue).
    # TODO(synk): for large spatial sizes, build patches per K-tile inside the
    # kernel from a single padded activation to avoid kh*kw-fold HBM reads.
    xp = jnp.pad(x, ((0, 0), (pad, pad), (pad, pad), (0, 0)))
    cols = []
    for ky in range(kh):
        for kx in range(kw):
            cols.append(xp[:, ky:ky + (Ho - 1) * stride + 1:stride,
                            kx:kx + (Wo - 1) * stride + 1:stride, :])
    patches = jnp.concatenate(cols, axis=-1).reshape(N * Ho * Wo, kh * kw * Cx)

    res = None if residual is None else residual.reshape(N * Ho * Wo, Coutp)
    out = _fused_matmul(patches, w_mat, residual=res, relu=relu)
    return out.reshape(N, Ho, Wo, Coutp)


def _maxpool_3x3_s2_p1(x):
    """MaxPool2d(kernel=3, stride=2, pad=1) on NHWC.  The 9 window taps are
    passed as separate views (no stacked (9,M,C) array) and reduced in VMEM."""
    N, H, W, C = x.shape
    Ho = (H + 2 - 3) // 2 + 1
    Wo = (W + 2 - 3) // 2 + 1
    xp = jnp.pad(x, ((0, 0), (1, 1), (1, 1), (0, 0)),
                 constant_values=-jnp.inf)
    M = N * Ho * Wo
    taps = []
    for ky in range(3):
        for kx in range(3):
            taps.append(xp[:, ky:ky + (Ho - 1) * 2 + 1:2,
                            kx:kx + (Wo - 1) * 2 + 1:2, :].reshape(M, C))
    out = pl.pallas_call(
        _maxpool9_kernel,
        out_shape=jax.ShapeDtypeStruct((M, C), jnp.float32),
        in_specs=[_VMEM] * 9,
        out_specs=_VMEM,
    )(*taps)
    return out.reshape(N, Ho, Wo, C)


# ----------------------- parameters -----------------------

def _kaiming(key, cout, cin, kh, kw):
    # kaiming_normal_(mode='fan_out', nonlinearity='relu')
    fan_out = cout * kh * kw
    std = (2.0 / fan_out) ** 0.5
    return std * jax.random.normal(key, (cout, cin, kh, kw), jnp.float32)


def init_resnet_params(key):
    keys = iter(jax.random.split(key, 32))
    params = {'conv1': _kaiming(next(keys), 64, 1, 7, 7)}
    inplanes = 64
    for name, planes, stride in [('layer1', 64, 1),
                                 ('layer2', 128, 2),
                                 ('layer3', 256, 2)]:
        blocks = []
        for b in range(2):
            s = stride if b == 0 else 1
            blk = {'conv1': _kaiming(next(keys), planes, inplanes, 3, 3),
                   'conv2': _kaiming(next(keys), planes, planes, 3, 3)}
            if s != 1 or inplanes != planes:
                blk['downsample'] = _kaiming(next(keys), planes, inplanes, 1, 1)
            blocks.append(blk)
            inplanes = planes
        params[name] = blocks
    return params


# ----------------------- model forward -----------------------

def _basic_block(x, blk, stride):
    # conv1 -> norm1 -> relu  (BN scale folded into weights)
    out = _conv2d_fused(x, blk['conv1'], stride, 1, bn_scale=_BN_SCALE,
                        relu=True)
    # downsample (bare conv1x1, no norm — per the reference) or identity
    if 'downsample' in blk:
        identity = _conv2d_fused(x, blk['downsample'], stride, 0,
                                 bn_scale=None, relu=False)
    else:
        identity = x
    # conv2 -> norm2 -> (+identity) -> relu, all fused in one Pallas call
    out = _conv2d_fused(out, blk['conv2'], 1, 1, bn_scale=_BN_SCALE,
                        residual=identity, relu=True)
    return out


def resnet_forward(params, x_nchw):
    x = jnp.transpose(x_nchw.astype(jnp.float32), (0, 2, 3, 1))  # -> NHWC
    x = _conv2d_fused(x, params['conv1'], 2, 3, bn_scale=_BN_SCALE, relu=True)
    x = _maxpool_3x3_s2_p1(x)
    for name, stride in [('layer1', 1), ('layer2', 2), ('layer3', 2)]:
        blocks = params[name]
        x = _basic_block(x, blocks[0], stride)
        x = _basic_block(x, blocks[1], 1)
    cout = params['layer3'][-1]['conv2'].shape[0]   # 256 true channels
    x = x[..., :cout]
    return jnp.transpose(x, (0, 3, 1, 2))  # -> NCHW


if __name__ == "__main__":
    key = jax.random.PRNGKey(0)
    pkey, xkey = jax.random.split(key)
    params = init_resnet_params(pkey)
    x = jax.random.normal(xkey, (2, 1, 16, 16), jnp.float32)  # NCHW, 1 channel
    fwd = jax.jit(resnet_forward)
    out = jax.block_until_ready(fwd(params, x))
    assert out.shape == (2, 256, 1, 1), out.shape
    print("KERNEL_OK")
</pallas_src>

<mosaic_0001>
module attributes {stable_mosaic.version = 11 : i64} {
  func.func @_mm_kernel(%arg0: i32, %arg1: i32, %arg2: i32, %arg3: memref<128x128xbf16, #tpu.memory_space<vmem>>, %arg4: memref<128x128xbf16, #tpu.memory_space<vmem>>, %arg5: memref<128x128xf32, #tpu.memory_space<vmem>>, %arg6: memref<128x128xf32, #tpu.memory_space<vmem>>) attributes {dimension_semantics = [#tpu.dimension_semantics<parallel>, #tpu.dimension_semantics<parallel>, #tpu.dimension_semantics<arbitrary>], iteration_bounds = array<i64: 1, 1, 1>, scalar_prefetch = 0 : i64, scratch_operands = 1 : i64, tpu.core_type = #tpu.core_type<tc>, window_params = [{transform_indices = @transform_0, window_bounds = array<i64: 128, 128>}, {transform_indices = @transform_1, window_bounds = array<i64: 128, 128>}, {transform_indices = @transform_2, window_bounds = array<i64: 128, 128>}]} {
    %c0_i32 = arith.constant 0 : i32
    %0 = arith.cmpi eq, %arg2, %c0_i32 : i32
    %1 = arith.extui %0 : i1 to i32
    %c0_i32_0 = arith.constant 0 : i32
    %2 = arith.cmpi ne, %1, %c0_i32_0 : i32
    scf.if %2 {
      %cst_10 = arith.constant 0.000000e+00 : f32
      %12 = vector.broadcast %cst_10 : f32 to vector<128x128xf32>
      %c0_11 = arith.constant 0 : index
      %c0_12 = arith.constant 0 : index
      %13 = vector.load %arg6[%c0_11, %c0_12] : memref<128x128xf32, #tpu.memory_space<vmem>>, vector<128x128xf32>
      tpu.vector_store %arg6[%c0_11, %c0_12], %12 {strides = array<i32>} : memref<128x128xf32, #tpu.memory_space<vmem>>, vector<128x128xf32>,
    } else {
    }
    %c0 = arith.constant 0 : index
    %c0_1 = arith.constant 0 : index
    %3 = vector.load %arg6[%c0, %c0_1] : memref<128x128xf32, #tpu.memory_space<vmem>>, vector<128x128xf32>
    %c0_2 = arith.constant 0 : index
    %c0_3 = arith.constant 0 : index
    %4 = vector.load %arg3[%c0_2, %c0_3] : memref<128x128xbf16, #tpu.memory_space<vmem>>, vector<128x128xbf16>
    %c0_4 = arith.constant 0 : index
    %c0_5 = arith.constant 0 : index
    %5 = vector.load %arg4[%c0_4, %c0_5] : memref<128x128xbf16, #tpu.memory_space<vmem>>, vector<128x128xbf16>
    %cst = arith.constant dense<0.000000e+00> : vector<128x128xf32>
    %6 = tpu.matmul %4, %5, %cst {dimension_numbers = #tpu.dot_dimension_numbers<[1], [0], [0], [1], [0, 0, 1, 1], [], []>} : vector<128x128xbf16>, vector<128x128xbf16>, vector<128x128xf32> -> vector<128x128xf32>
    %7 = arith.addf %3, %6 : vector<128x128xf32>
    %c0_6 = arith.constant 0 : index
    %c0_7 = arith.constant 0 : index
    %8 = vector.load %arg6[%c0_6, %c0_7] : memref<128x128xf32, #tpu.memory_space<vmem>>, vector<128x128xf32>
    tpu.vector_store %arg6[%c0_6, %c0_7], %7 {strides = array<i32>} : memref<128x128xf32, #tpu.memory_space<vmem>>, vector<128x128xf32>,
    %c0_i32_8 = arith.constant 0 : i32
    %9 = arith.cmpi eq, %arg2, %c0_i32_8 : i32
    %10 = arith.extui %9 : i1 to i32
    %c0_i32_9 = arith.constant 0 : i32
    %11 = arith.cmpi ne, %10, %c0_i32_9 : i32
    scf.if %11 {
      %c0_10 = arith.constant 0 : index
      %c0_11 = arith.constant 0 : index
      %12 = vector.load %arg6[%c0_10, %c0_11] : memref<128x128xf32, #tpu.memory_space<vmem>>, vector<128x128xf32>
      %cst_12 = arith.constant 0.000000e+00 : f32
      %13 = vector.broadcast %cst_12 : f32 to vector<128x128xf32>
      %14 = arith.maximumf %12, %13 : vector<128x128xf32>
      %c0_13 = arith.constant 0 : index
      %c0_14 = arith.constant 0 : index
      %15 = vector.load %arg5[%c0_13, %c0_14] : memref<128x128xf32, #tpu.memory_space<vmem>>, vector<128x128xf32>
      tpu.vector_store %arg5[%c0_13, %c0_14], %14 {strides = array<i32>} : memref<128x128xf32, #tpu.memory_space<vmem>>, vector<128x128xf32>,
    } else {
    }
    return
  }
  func.func @transform_0(%arg0: i32, %arg1: i32, %arg2: i32) -> (i32, i32) {
    %c0_i32 = arith.constant 0 : i32
    return %arg0, %arg2 : i32, i32
  }
  func.func @transform_1(%arg0: i32, %arg1: i32, %arg2: i32) -> (i32, i32) {
    %c0_i32 = arith.constant 0 : i32
    return %arg2, %arg1 : i32, i32
  }
  func.func @transform_2(%arg0: i32, %arg1: i32, %arg2: i32) -> (i32, i32) {
    %c0_i32 = arith.constant 0 : i32
    return %arg0, %arg1 : i32, i32
  }
}

module attributes {stable_mosaic.version = 11 : i64} {
  func.func @_maxpool9_kernel(%arg0: memref<32x128xf32, #tpu.memory_space<vmem>>, %arg1: memref<32x128xf32, #tpu.memory_space<vmem>>, %arg2: memref<32x128xf32, #tpu.memory_space<vmem>>, %arg3: memref<32x128xf32, #tpu.memory_space<vmem>>, %arg4: memref<32x128xf32, #tpu.memory_space<vmem>>, %arg5: memref<32x128xf32, #tpu.memory_space<vmem>>, %arg6: memref<32x128xf32, #tpu.memory_space<vmem>>, %arg7: memref<32x128xf32, #tpu.memory_space<vmem>>, %arg8: memref<32x128xf32, #tpu.memory_space<vmem>>, %arg9: memref<32x128xf32, #tpu.memory_space<vmem>>) attributes {dimension_semantics = [], scalar_prefetch = 0 : i64, scratch_operands = 0 : i64, tpu.core_type = #tpu.core_type<tc>} {
    %c0 = arith.constant 0 : index
    %c0_0 = arith.constant 0 : index
    %0 = vector.load %arg0[%c0, %c0_0] : memref<32x128xf32, #tpu.memory_space<vmem>>, vector<32x128xf32>
    %c0_1 = arith.constant 0 : index
    %c0_2 = arith.constant 0 : index
    %1 = vector.load %arg1[%c0_1, %c0_2] : memref<32x128xf32, #tpu.memory_space<vmem>>, vector<32x128xf32>
    %2 = arith.maximumf %0, %1 : vector<32x128xf32>
    %c0_3 = arith.constant 0 : index
    %c0_4 = arith.constant 0 : index
    %3 = vector.load %arg2[%c0_3, %c0_4] : memref<32x128xf32, #tpu.memory_space<vmem>>, vector<32x128xf32>
    %4 = arith.maximumf %2, %3 : vector<32x128xf32>
    %c0_5 = arith.constant 0 : index
    %c0_6 = arith.constant 0 : index
    %5 = vector.load %arg3[%c0_5, %c0_6] : memref<32x128xf32, #tpu.memory_space<vmem>>, vector<32x128xf32>
    %6 = arith.maximumf %4, %5 : vector<32x128xf32>
    %c0_7 = arith.constant 0 : index
    %c0_8 = arith.constant 0 : index
    %7 = vector.load %arg4[%c0_7, %c0_8] : memref<32x128xf32, #tpu.memory_space<vmem>>, vector<32x128xf32>
    %8 = arith.maximumf %6, %7 : vector<32x128xf32>
    %c0_9 = arith.constant 0 : index
    %c0_10 = arith.constant 0 : index
    %9 = vector.load %arg5[%c0_9, %c0_10] : memref<32x128xf32, #tpu.memory_space<vmem>>, vector<32x128xf32>
    %10 = arith.maximumf %8, %9 : vector<32x128xf32>
    %c0_11 = arith.constant 0 : index
    %c0_12 = arith.constant 0 : index
    %11 = vector.load %arg6[%c0_11, %c0_12] : memref<32x128xf32, #tpu.memory_space<vmem>>, vector<32x128xf32>
    %12 = arith.maximumf %10, %11 : vector<32x128xf32>
    %c0_13 = arith.constant 0 : index
    %c0_14 = arith.constant 0 : index
    %13 = vector.load %arg7[%c0_13, %c0_14] : memref<32x128xf32, #tpu.memory_space<vmem>>, vector<32x128xf32>
    %14 = arith.maximumf %12, %13 : vector<32x128xf32>
    %c0_15 = arith.constant 0 : index
    %c0_16 = arith.constant 0 : index
    %15 = vector.load %arg8[%c0_15, %c0_16] : memref<32x128xf32, #tpu.memory_space<vmem>>, vector<32x128xf32>
    %16 = arith.maximumf %14, %15 : vector<32x128xf32>
    %c0_17 = arith.constant 0 : index
    %c0_18 = arith.constant 0 : index
    %17 = vector.load %arg9[%c0_17, %c0_18] : memref<32x128xf32, #tpu.memory_space<vmem>>, vector<32x128xf32>
    tpu.vector_store %arg9[%c0_17, %c0_18], %16 {strides = array<i32>} : memref<32x128xf32, #tpu.memory_space<vmem>>, vector<32x128xf32>,
    return
  }
}

module attributes {stable_mosaic.version = 11 : i64} {
  func.func @_mm_kernel(%arg0: i32, %arg1: i32, %arg2: i32, %arg3: memref<32x384xbf16, #tpu.memory_space<vmem>>, %arg4: memref<384x128xbf16, #tpu.memory_space<vmem>>, %arg5: memref<32x128xf32, #tpu.memory_space<vmem>>, %arg6: memref<32x128xf32, #tpu.memory_space<vmem>>) attributes {dimension_semantics = [#tpu.dimension_semantics<parallel>, #tpu.dimension_semantics<parallel>, #tpu.dimension_semantics<arbitrary>], iteration_bounds = array<i64: 1, 1, 3>, scalar_prefetch = 0 : i64, scratch_operands = 1 : i64, tpu.core_type = #tpu.core_type<tc>, window_params = [{transform_indices = @transform_0, window_bounds = array<i64: 32, 384>}, {transform_indices = @transform_1, window_bounds = array<i64: 384, 128>}, {transform_indices = @transform_2, window_bounds = array<i64: 32, 128>}]} {
    %c0_i32 = arith.constant 0 : i32
    %0 = arith.cmpi eq, %arg2, %c0_i32 : i32
    %1 = arith.extui %0 : i1 to i32
    %c0_i32_0 = arith.constant 0 : i32
    %2 = arith.cmpi ne, %1, %c0_i32_0 : i32
    scf.if %2 {
      %cst_9 = arith.constant 0.000000e+00 : f32
      %12 = vector.broadcast %cst_9 : f32 to vector<32x128xf32>
      %c0_10 = arith.constant 0 : index
      %c0_11 = arith.constant 0 : index
      %13 = vector.load %arg6[%c0_10, %c0_11] : memref<32x128xf32, #tpu.memory_space<vmem>>, vector<32x128xf32>
      tpu.vector_store %arg6[%c0_10, %c0_11], %12 {strides = array<i32>} : memref<32x128xf32, #tpu.memory_space<vmem>>, vector<32x128xf32>,
    } else {
    }
    %c0 = arith.constant 0 : index
    %c0_1 = arith.constant 0 : index
    %3 = vector.load %arg6[%c0, %c0_1] : memref<32x128xf32, #tpu.memory_space<vmem>>, vector<32x128xf32>
    %c0_2 = arith.constant 0 : index
    %c0_3 = arith.constant 0 : index
    %4 = vector.load %arg3[%c0_2, %c0_3] : memref<32x384xbf16, #tpu.memory_space<vmem>>, vector<32x384xbf16>
    %c0_4 = arith.constant 0 : index
    %c0_5 = arith.constant 0 : index
    %5 = vector.load %arg4[%c0_4, %c0_5] : memref<384x128xbf16, #tpu.memory_space<vmem>>, vector<384x128xbf16>
    %cst = arith.constant dense<0.000000e+00> : vector<32x128xf32>
    %6 = tpu.matmul %4, %5, %cst {dimension_numbers = #tpu.dot_dimension_numbers<[1], [0], [0], [1], [0, 0, 1, 1], [], []>} : vector<32x384xbf16>, vector<384x128xbf16>, vector<32x128xf32> -> vector<32x128xf32>
    %7 = arith.addf %3, %6 : vector<32x128xf32>
    %c0_6 = arith.constant 0 : index
    %c0_7 = arith.constant 0 : index
    %8 = vector.load %arg6[%c0_6, %c0_7] : memref<32x128xf32, #tpu.memory_space<vmem>>, vector<32x128xf32>
    tpu.vector_store %arg6[%c0_6, %c0_7], %7 {strides = array<i32>} : memref<32x128xf32, #tpu.memory_space<vmem>>, vector<32x128xf32>,
    %c2_i32 = arith.constant 2 : i32
    %9 = arith.cmpi eq, %arg2, %c2_i32 : i32
    %10 = arith.extui %9 : i1 to i32
    %c0_i32_8 = arith.constant 0 : i32
    %11 = arith.cmpi ne, %10, %c0_i32_8 : i32
    scf.if %11 {
      %c0_9 = arith.constant 0 : index
      %c0_10 = arith.constant 0 : index
      %12 = vector.load %arg6[%c0_9, %c0_10] : memref<32x128xf32, #tpu.memory_space<vmem>>, vector<32x128xf32>
      %cst_11 = arith.constant 0.000000e+00 : f32
      %13 = vector.broadcast %cst_11 : f32 to vector<32x128xf32>
      %14 = arith.maximumf %12, %13 : vector<32x128xf32>
      %c0_12 = arith.constant 0 : index
      %c0_13 = arith.constant 0 : index
      %15 = vector.load %arg5[%c0_12, %c0_13] : memref<32x128xf32, #tpu.memory_space<vmem>>, vector<32x128xf32>
      tpu.vector_store %arg5[%c0_12, %c0_13], %14 {strides = array<i32>} : memref<32x128xf32, #tpu.memory_space<vmem>>, vector<32x128xf32>,
    } else {
    }
    return
  }
  func.func @transform_0(%arg0: i32, %arg1: i32, %arg2: i32) -> (i32, i32) {
    %c0_i32 = arith.constant 0 : i32
    return %arg0, %arg2 : i32, i32
  }
  func.func @transform_1(%arg0: i32, %arg1: i32, %arg2: i32) -> (i32, i32) {
    %c0_i32 = arith.constant 0 : i32
    return %arg2, %arg1 : i32, i32
  }
  func.func @transform_2(%arg0: i32, %arg1: i32, %arg2: i32) -> (i32, i32) {
    %c0_i32 = arith.constant 0 : i32
    return %arg0, %arg1 : i32, i32
  }
}

module attributes {stable_mosaic.version = 11 : i64} {
  func.func @_mm_res_kernel(%arg0: i32, %arg1: i32, %arg2: i32, %arg3: memref<32x384xbf16, #tpu.memory_space<vmem>>, %arg4: memref<384x128xbf16, #tpu.memory_space<vmem>>, %arg5: memref<32x128xf32, #tpu.memory_space<vmem>>, %arg6: memref<32x128xf32, #tpu.memory_space<vmem>>, %arg7: memref<32x128xf32, #tpu.memory_space<vmem>>) attributes {dimension_semantics = [#tpu.dimension_semantics<parallel>, #tpu.dimension_semantics<parallel>, #tpu.dimension_semantics<arbitrary>], iteration_bounds = array<i64: 1, 1, 3>, scalar_prefetch = 0 : i64, scratch_operands = 1 : i64, tpu.core_type = #tpu.core_type<tc>, window_params = [{transform_indices = @transform_0, window_bounds = array<i64: 32, 384>}, {transform_indices = @transform_1, window_bounds = array<i64: 384, 128>}, {transform_indices = @transform_2, window_bounds = array<i64: 32, 128>}, {transform_indices = @transform_3, window_bounds = array<i64: 32, 128>}]} {
    %c0_i32 = arith.constant 0 : i32
    %0 = arith.cmpi eq, %arg2, %c0_i32 : i32
    %1 = arith.extui %0 : i1 to i32
    %c0_i32_0 = arith.constant 0 : i32
    %2 = arith.cmpi ne, %1, %c0_i32_0 : i32
    scf.if %2 {
      %cst_9 = arith.constant 0.000000e+00 : f32
      %12 = vector.broadcast %cst_9 : f32 to vector<32x128xf32>
      %c0_10 = arith.constant 0 : index
      %c0_11 = arith.constant 0 : index
      %13 = vector.load %arg7[%c0_10, %c0_11] : memref<32x128xf32, #tpu.memory_space<vmem>>, vector<32x128xf32>
      tpu.vector_store %arg7[%c0_10, %c0_11], %12 {strides = array<i32>} : memref<32x128xf32, #tpu.memory_space<vmem>>, vector<32x128xf32>,
    } else {
    }
    %c0 = arith.constant 0 : index
    %c0_1 = arith.constant 0 : index
    %3 = vector.load %arg7[%c0, %c0_1] : memref<32x128xf32, #tpu.memory_space<vmem>>, vector<32x128xf32>
    %c0_2 = arith.constant 0 : index
    %c0_3 = arith.constant 0 : index
    %4 = vector.load %arg3[%c0_2, %c0_3] : memref<32x384xbf16, #tpu.memory_space<vmem>>, vector<32x384xbf16>
    %c0_4 = arith.constant 0 : index
    %c0_5 = arith.constant 0 : index
    %5 = vector.load %arg4[%c0_4, %c0_5] : memref<384x128xbf16, #tpu.memory_space<vmem>>, vector<384x128xbf16>
    %cst = arith.constant dense<0.000000e+00> : vector<32x128xf32>
    %6 = tpu.matmul %4, %5, %cst {dimension_numbers = #tpu.dot_dimension_numbers<[1], [0], [0], [1], [0, 0, 1, 1], [], []>} : vector<32x384xbf16>, vector<384x128xbf16>, vector<32x128xf32> -> vector<32x128xf32>
    %7 = arith.addf %3, %6 : vector<32x128xf32>
    %c0_6 = arith.constant 0 : index
    %c0_7 = arith.constant 0 : index
    %8 = vector.load %arg7[%c0_6, %c0_7] : memref<32x128xf32, #tpu.memory_space<vmem>>, vector<32x128xf32>
    tpu.vector_store %arg7[%c0_6, %c0_7], %7 {strides = array<i32>} : memref<32x128xf32, #tpu.memory_space<vmem>>, vector<32x128xf32>,
    %c2_i32 = arith.constant 2 : i32
    %9 = arith.cmpi eq, %arg2, %c2_i32 : i32
    %10 = arith.extui %9 : i1 to i32
    %c0_i32_8 = arith.constant 0 : i32
    %11 = arith.cmpi ne, %10, %c0_i32_8 : i32
    scf.if %11 {
      %c0_9 = arith.constant 0 : index
      %c0_10 = arith.constant 0 : index
      %12 = vector.load %arg7[%c0_9, %c0_10] : memref<32x128xf32, #tpu.memory_space<vmem>>, vector<32x128xf32>
      %c0_11 = arith.constant 0 : index
      %c0_12 = arith.constant 0 : index
      %13 = vector.load %arg5[%c0_11, %c0_12] : memref<32x128xf32, #tpu.memory_space<vmem>>, vector<32x128xf32>
      %14 = arith.addf %12, %13 : vector<32x128xf32>
      %cst_13 = arith.constant 0.000000e+00 : f32
      %15 = vector.broadcast %cst_13 : f32 to vector<32x128xf32>
      %16 = arith.maximumf %14, %15 : vector<32x128xf32>
      %c0_14 = arith.constant 0 : index
      %c0_15 = arith.constant 0 : index
      %17 = vector.load %arg6[%c0_14, %c0_15] : memref<32x128xf32, #tpu.memory_space<vmem>>, vector<32x128xf32>
      tpu.vector_store %arg6[%c0_14, %c0_15], %16 {strides = array<i32>} : memref<32x128xf32, #tpu.memory_space<vmem>>, vector<32x128xf32>,
    } else {
    }
    return
  }
  func.func @transform_0(%arg0: i32, %arg1: i32, %arg2: i32) -> (i32, i32) {
    %c0_i32 = arith.constant 0 : i32
    return %arg0, %arg2 : i32, i32
  }
  func.func @transform_1(%arg0: i32, %arg1: i32, %arg2: i32) -> (i32, i32) {
    %c0_i32 = arith.constant 0 : i32
    return %arg2, %arg1 : i32, i32
  }
  func.func @transform_2(%arg0: i32, %arg1: i32, %arg2: i32) -> (i32, i32) {
    %c0_i32 = arith.constant 0 : i32
    return %arg0, %arg1 : i32, i32
  }
  func.func @transform_3(%arg0: i32, %arg1: i32, %arg2: i32) -> (i32, i32) {
    %c0_i32 = arith.constant 0 : i32
    return %arg0, %arg1 : i32, i32
  }
}

module attributes {stable_mosaic.version = 11 : i64} {
  func.func @_mm_kernel(%arg0: i32, %arg1: i32, %arg2: i32, %arg3: memref<8x384xbf16, #tpu.memory_space<vmem>>, %arg4: memref<384x128xbf16, #tpu.memory_space<vmem>>, %arg5: memref<8x128xf32, #tpu.memory_space<vmem>>, %arg6: memref<8x128xf32, #tpu.memory_space<vmem>>) attributes {dimension_semantics = [#tpu.dimension_semantics<parallel>, #tpu.dimension_semantics<parallel>, #tpu.dimension_semantics<arbitrary>], iteration_bounds = array<i64: 1, 1, 3>, scalar_prefetch = 0 : i64, scratch_operands = 1 : i64, tpu.core_type = #tpu.core_type<tc>, window_params = [{transform_indices = @transform_0, window_bounds = array<i64: 8, 384>}, {transform_indices = @transform_1, window_bounds = array<i64: 384, 128>}, {transform_indices = @transform_2, window_bounds = array<i64: 8, 128>}]} {
    %c0_i32 = arith.constant 0 : i32
    %0 = arith.cmpi eq, %arg2, %c0_i32 : i32
    %1 = arith.extui %0 : i1 to i32
    %c0_i32_0 = arith.constant 0 : i32
    %2 = arith.cmpi ne, %1, %c0_i32_0 : i32
    scf.if %2 {
      %cst_9 = arith.constant 0.000000e+00 : f32
      %12 = vector.broadcast %cst_9 : f32 to vector<8x128xf32>
      %c0_10 = arith.constant 0 : index
      %c0_11 = arith.constant 0 : index
      %13 = vector.load %arg6[%c0_10, %c0_11] : memref<8x128xf32, #tpu.memory_space<vmem>>, vector<8x128xf32>
      tpu.vector_store %arg6[%c0_10, %c0_11], %12 {strides = array<i32>} : memref<8x128xf32, #tpu.memory_space<vmem>>, vector<8x128xf32>,
    } else {
    }
    %c0 = arith.constant 0 : index
    %c0_1 = arith.constant 0 : index
    %3 = vector.load %arg6[%c0, %c0_1] : memref<8x128xf32, #tpu.memory_space<vmem>>, vector<8x128xf32>
    %c0_2 = arith.constant 0 : index
    %c0_3 = arith.constant 0 : index
    %4 = vector.load %arg3[%c0_2, %c0_3] : memref<8x384xbf16, #tpu.memory_space<vmem>>, vector<8x384xbf16>
    %c0_4 = arith.constant 0 : index
    %c0_5 = arith.constant 0 : index
    %5 = vector.load %arg4[%c0_4, %c0_5] : memref<384x128xbf16, #tpu.memory_space<vmem>>, vector<384x128xbf16>
    %cst = arith.constant dense<0.000000e+00> : vector<8x128xf32>
    %6 = tpu.matmul %4, %5, %cst {dimension_numbers = #tpu.dot_dimension_numbers<[1], [0], [0], [1], [0, 0, 1, 1], [], []>} : vector<8x384xbf16>, vector<384x128xbf16>, vector<8x128xf32> -> vector<8x128xf32>
    %7 = arith.addf %3, %6 : vector<8x128xf32>
    %c0_6 = arith.constant 0 : index
    %c0_7 = arith.constant 0 : index
    %8 = vector.load %arg6[%c0_6, %c0_7] : memref<8x128xf32, #tpu.memory_space<vmem>>, vector<8x128xf32>
    tpu.vector_store %arg6[%c0_6, %c0_7], %7 {strides = array<i32>} : memref<8x128xf32, #tpu.memory_space<vmem>>, vector<8x128xf32>,
    %c2_i32 = arith.constant 2 : i32
    %9 = arith.cmpi eq, %arg2, %c2_i32 : i32
    %10 = arith.extui %9 : i1 to i32
    %c0_i32_8 = arith.constant 0 : i32
    %11 = arith.cmpi ne, %10, %c0_i32_8 : i32
    scf.if %11 {
      %c0_9 = arith.constant 0 : index
      %c0_10 = arith.constant 0 : index
      %12 = vector.load %arg6[%c0_9, %c0_10] : memref<8x128xf32, #tpu.memory_space<vmem>>, vector<8x128xf32>
      %cst_11 = arith.constant 0.000000e+00 : f32
      %13 = vector.broadcast %cst_11 : f32 to vector<8x128xf32>
      %14 = arith.maximumf %12, %13 : vector<8x128xf32>
      %c0_12 = arith.constant 0 : index
      %c0_13 = arith.constant 0 : index
      %15 = vector.load %arg5[%c0_12, %c0_13] : memref<8x128xf32, #tpu.memory_space<vmem>>, vector<8x128xf32>
      tpu.vector_store %arg5[%c0_12, %c0_13], %14 {strides = array<i32>} : memref<8x128xf32, #tpu.memory_space<vmem>>, vector<8x128xf32>,
    } else {
    }
    return
  }
  func.func @transform_0(%arg0: i32, %arg1: i32, %arg2: i32) -> (i32, i32) {
    %c0_i32 = arith.constant 0 : i32
    return %arg0, %arg2 : i32, i32
  }
  func.func @transform_1(%arg0: i32, %arg1: i32, %arg2: i32) -> (i32, i32) {
    %c0_i32 = arith.constant 0 : i32
    return %arg2, %arg1 : i32, i32
  }
  func.func @transform_2(%arg0: i32, %arg1: i32, %arg2: i32) -> (i32, i32) {
    %c0_i32 = arith.constant 0 : i32
    return %arg0, %arg1 : i32, i32
  }
}

module attributes {stable_mosaic.version = 11 : i64} {
  func.func @_mm_kernel(%arg0: i32, %arg1: i32, %arg2: i32, %arg3: memref<8x128xbf16, #tpu.memory_space<vmem>>, %arg4: memref<128x128xbf16, #tpu.memory_space<vmem>>, %arg5: memref<8x128xf32, #tpu.memory_space<vmem>>, %arg6: memref<8x128xf32, #tpu.memory_space<vmem>>) attributes {dimension_semantics = [#tpu.dimension_semantics<parallel>, #tpu.dimension_semantics<parallel>, #tpu.dimension_semantics<arbitrary>], iteration_bounds = array<i64: 1, 1, 1>, scalar_prefetch = 0 : i64, scratch_operands = 1 : i64, tpu.core_type = #tpu.core_type<tc>, window_params = [{transform_indices = @transform_0, window_bounds = array<i64: 8, 128>}, {transform_indices = @transform_1, window_bounds = array<i64: 128, 128>}, {transform_indices = @transform_2, window_bounds = array<i64: 8, 128>}]} {
    %c0_i32 = arith.constant 0 : i32
    %0 = arith.cmpi eq, %arg2, %c0_i32 : i32
    %1 = arith.extui %0 : i1 to i32
    %c0_i32_0 = arith.constant 0 : i32
    %2 = arith.cmpi ne, %1, %c0_i32_0 : i32
    scf.if %2 {
      %cst_10 = arith.constant 0.000000e+00 : f32
      %12 = vector.broadcast %cst_10 : f32 to vector<8x128xf32>
      %c0_11 = arith.constant 0 : index
      %c0_12 = arith.constant 0 : index
      %13 = vector.load %arg6[%c0_11, %c0_12] : memref<8x128xf32, #tpu.memory_space<vmem>>, vector<8x128xf32>
      tpu.vector_store %arg6[%c0_11, %c0_12], %12 {strides = array<i32>} : memref<8x128xf32, #tpu.memory_space<vmem>>, vector<8x128xf32>,
    } else {
    }
    %c0 = arith.constant 0 : index
    %c0_1 = arith.constant 0 : index
    %3 = vector.load %arg6[%c0, %c0_1] : memref<8x128xf32, #tpu.memory_space<vmem>>, vector<8x128xf32>
    %c0_2 = arith.constant 0 : index
    %c0_3 = arith.constant 0 : index
    %4 = vector.load %arg3[%c0_2, %c0_3] : memref<8x128xbf16, #tpu.memory_space<vmem>>, vector<8x128xbf16>
    %c0_4 = arith.constant 0 : index
    %c0_5 = arith.constant 0 : index
    %5 = vector.load %arg4[%c0_4, %c0_5] : memref<128x128xbf16, #tpu.memory_space<vmem>>, vector<128x128xbf16>
    %cst = arith.constant dense<0.000000e+00> : vector<8x128xf32>
    %6 = tpu.matmul %4, %5, %cst {dimension_numbers = #tpu.dot_dimension_numbers<[1], [0], [0], [1], [0, 0, 1, 1], [], []>} : vector<8x128xbf16>, vector<128x128xbf16>, vector<8x128xf32> -> vector<8x128xf32>
    %7 = arith.addf %3, %6 : vector<8x128xf32>
    %c0_6 = arith.constant 0 : index
    %c0_7 = arith.constant 0 : index
    %8 = vector.load %arg6[%c0_6, %c0_7] : memref<8x128xf32, #tpu.memory_space<vmem>>, vector<8x128xf32>
    tpu.vector_store %arg6[%c0_6, %c0_7], %7 {strides = array<i32>} : memref<8x128xf32, #tpu.memory_space<vmem>>, vector<8x128xf32>,
    %c0_i32_8 = arith.constant 0 : i32
    %9 = arith.cmpi eq, %arg2, %c0_i32_8 : i32
    %10 = arith.extui %9 : i1 to i32
    %c0_i32_9 = arith.constant 0 : i32
    %11 = arith.cmpi ne, %10, %c0_i32_9 : i32
    scf.if %11 {
      %c0_10 = arith.constant 0 : index
      %c0_11 = arith.constant 0 : index
      %12 = vector.load %arg6[%c0_10, %c0_11] : memref<8x128xf32, #tpu.memory_space<vmem>>, vector<8x128xf32>
      %c0_12 = arith.constant 0 : index
      %c0_13 = arith.constant 0 : index
      %13 = vector.load %arg5[%c0_12, %c0_13] : memref<8x128xf32, #tpu.memory_space<vmem>>, vector<8x128xf32>
      tpu.vector_store %arg5[%c0_12, %c0_13], %12 {strides = array<i32>} : memref<8x128xf32, #tpu.memory_space<vmem>>, vector<8x128xf32>,
    } else {
    }
    return
  }
  func.func @transform_0(%arg0: i32, %arg1: i32, %arg2: i32) -> (i32, i32) {
    %c0_i32 = arith.constant 0 : i32
    return %arg0, %arg2 : i32, i32
  }
  func.func @transform_1(%arg0: i32, %arg1: i32, %arg2: i32) -> (i32, i32) {
    %c0_i32 = arith.constant 0 : i32
    return %arg2, %arg1 : i32, i32
  }
  func.func @transform_2(%arg0: i32, %arg1: i32, %arg2: i32) -> (i32, i32) {
    %c0_i32 = arith.constant 0 : i32
    return %arg0, %arg1 : i32, i32
  }
}

module attributes {stable_mosaic.version = 11 : i64} {
  func.func @_mm_res_kernel(%arg0: i32, %arg1: i32, %arg2: i32, %arg3: memref<8x384xbf16, #tpu.memory_space<vmem>>, %arg4: memref<384x128xbf16, #tpu.memory_space<vmem>>, %arg5: memref<8x128xf32, #tpu.memory_space<vmem>>, %arg6: memref<8x128xf32, #tpu.memory_space<vmem>>, %arg7: memref<8x128xf32, #tpu.memory_space<vmem>>) attributes {dimension_semantics = [#tpu.dimension_semantics<parallel>, #tpu.dimension_semantics<parallel>, #tpu.dimension_semantics<arbitrary>], iteration_bounds = array<i64: 1, 1, 3>, scalar_prefetch = 0 : i64, scratch_operands = 1 : i64, tpu.core_type = #tpu.core_type<tc>, window_params = [{transform_indices = @transform_0, window_bounds = array<i64: 8, 384>}, {transform_indices = @transform_1, window_bounds = array<i64: 384, 128>}, {transform_indices = @transform_2, window_bounds = array<i64: 8, 128>}, {transform_indices = @transform_3, window_bounds = array<i64: 8, 128>}]} {
    %c0_i32 = arith.constant 0 : i32
    %0 = arith.cmpi eq, %arg2, %c0_i32 : i32
    %1 = arith.extui %0 : i1 to i32
    %c0_i32_0 = arith.constant 0 : i32
    %2 = arith.cmpi ne, %1, %c0_i32_0 : i32
    scf.if %2 {
      %cst_9 = arith.constant 0.000000e+00 : f32
      %12 = vector.broadcast %cst_9 : f32 to vector<8x128xf32>
      %c0_10 = arith.constant 0 : index
      %c0_11 = arith.constant 0 : index
      %13 = vector.load %arg7[%c0_10, %c0_11] : memref<8x128xf32, #tpu.memory_space<vmem>>, vector<8x128xf32>
      tpu.vector_store %arg7[%c0_10, %c0_11], %12 {strides = array<i32>} : memref<8x128xf32, #tpu.memory_space<vmem>>, vector<8x128xf32>,
    } else {
    }
    %c0 = arith.constant 0 : index
    %c0_1 = arith.constant 0 : index
    %3 = vector.load %arg7[%c0, %c0_1] : memref<8x128xf32, #tpu.memory_space<vmem>>, vector<8x128xf32>
    %c0_2 = arith.constant 0 : index
    %c0_3 = arith.constant 0 : index
    %4 = vector.load %arg3[%c0_2, %c0_3] : memref<8x384xbf16, #tpu.memory_space<vmem>>, vector<8x384xbf16>
    %c0_4 = arith.constant 0 : index
    %c0_5 = arith.constant 0 : index
    %5 = vector.load %arg4[%c0_4, %c0_5] : memref<384x128xbf16, #tpu.memory_space<vmem>>, vector<384x128xbf16>
    %cst = arith.constant dense<0.000000e+00> : vector<8x128xf32>
    %6 = tpu.matmul %4, %5, %cst {dimension_numbers = #tpu.dot_dimension_numbers<[1], [0], [0], [1], [0, 0, 1, 1], [], []>} : vector<8x384xbf16>, vector<384x128xbf16>, vector<8x128xf32> -> vector<8x128xf32>
    %7 = arith.addf %3, %6 : vector<8x128xf32>
    %c0_6 = arith.constant 0 : index
    %c0_7 = arith.constant 0 : index
    %8 = vector.load %arg7[%c0_6, %c0_7] : memref<8x128xf32, #tpu.memory_space<vmem>>, vector<8x128xf32>
    tpu.vector_store %arg7[%c0_6, %c0_7], %7 {strides = array<i32>} : memref<8x128xf32, #tpu.memory_space<vmem>>, vector<8x128xf32>,
    %c2_i32 = arith.constant 2 : i32
    %9 = arith.cmpi eq, %arg2, %c2_i32 : i32
    %10 = arith.extui %9 : i1 to i32
    %c0_i32_8 = arith.constant 0 : i32
    %11 = arith.cmpi ne, %10, %c0_i32_8 : i32
    scf.if %11 {
      %c0_9 = arith.constant 0 : index
      %c0_10 = arith.constant 0 : index
      %12 = vector.load %arg7[%c0_9, %c0_10] : memref<8x128xf32, #tpu.memory_space<vmem>>, vector<8x128xf32>
      %c0_11 = arith.constant 0 : index
      %c0_12 = arith.constant 0 : index
      %13 = vector.load %arg5[%c0_11, %c0_12] : memref<8x128xf32, #tpu.memory_space<vmem>>, vector<8x128xf32>
      %14 = arith.addf %12, %13 : vector<8x128xf32>
      %cst_13 = arith.constant 0.000000e+00 : f32
      %15 = vector.broadcast %cst_13 : f32 to vector<8x128xf32>
      %16 = arith.maximumf %14, %15 : vector<8x128xf32>
      %c0_14 = arith.constant 0 : index
      %c0_15 = arith.constant 0 : index
      %17 = vector.load %arg6[%c0_14, %c0_15] : memref<8x128xf32, #tpu.memory_space<vmem>>, vector<8x128xf32>
      tpu.vector_store %arg6[%c0_14, %c0_15], %16 {strides = array<i32>} : memref<8x128xf32, #tpu.memory_space<vmem>>, vector<8x128xf32>,
    } else {
    }
    return
  }
  func.func @transform_0(%arg0: i32, %arg1: i32, %arg2: i32) -> (i32, i32) {
    %c0_i32 = arith.constant 0 : i32
    return %arg0, %arg2 : i32, i32
  }
  func.func @transform_1(%arg0: i32, %arg1: i32, %arg2: i32) -> (i32, i32) {
    %c0_i32 = arith.constant 0 : i32
    return %arg2, %arg1 : i32, i32
  }
  func.func @transform_2(%arg0: i32, %arg1: i32, %arg2: i32) -> (i32, i32) {
    %c0_i32 = arith.constant 0 : i32
    return %arg0, %arg1 : i32, i32
  }
  func.func @transform_3(%arg0: i32, %arg1: i32, %arg2: i32) -> (i32, i32) {
    %c0_i32 = arith.constant 0 : i32
    return %arg0, %arg1 : i32, i32
  }
}

module attributes {stable_mosaic.version = 11 : i64} {
  func.func @_mm_kernel(%arg0: i32, %arg1: i32, %arg2: i32, %arg3: memref<8x384xbf16, #tpu.memory_space<vmem>>, %arg4: memref<384x256xbf16, #tpu.memory_space<vmem>>, %arg5: memref<8x256xf32, #tpu.memory_space<vmem>>, %arg6: memref<8x256xf32, #tpu.memory_space<vmem>>) attributes {dimension_semantics = [#tpu.dimension_semantics<parallel>, #tpu.dimension_semantics<parallel>, #tpu.dimension_semantics<arbitrary>], iteration_bounds = array<i64: 1, 1, 3>, scalar_prefetch = 0 : i64, scratch_operands = 1 : i64, tpu.core_type = #tpu.core_type<tc>, window_params = [{transform_indices = @transform_0, window_bounds = array<i64: 8, 384>}, {transform_indices = @transform_1, window_bounds = array<i64: 384, 256>}, {transform_indices = @transform_2, window_bounds = array<i64: 8, 256>}]} {
    %c0_i32 = arith.constant 0 : i32
    %0 = arith.cmpi eq, %arg2, %c0_i32 : i32
    %1 = arith.extui %0 : i1 to i32
    %c0_i32_0 = arith.constant 0 : i32
    %2 = arith.cmpi ne, %1, %c0_i32_0 : i32
    scf.if %2 {
      %cst_9 = arith.constant 0.000000e+00 : f32
      %12 = vector.broadcast %cst_9 : f32 to vector<8x256xf32>
      %c0_10 = arith.constant 0 : index
      %c0_11 = arith.constant 0 : index
      %13 = vector.load %arg6[%c0_10, %c0_11] : memref<8x256xf32, #tpu.memory_space<vmem>>, vector<8x256xf32>
      tpu.vector_store %arg6[%c0_10, %c0_11], %12 {strides = array<i32>} : memref<8x256xf32, #tpu.memory_space<vmem>>, vector<8x256xf32>,
    } else {
    }
    %c0 = arith.constant 0 : index
    %c0_1 = arith.constant 0 : index
    %3 = vector.load %arg6[%c0, %c0_1] : memref<8x256xf32, #tpu.memory_space<vmem>>, vector<8x256xf32>
    %c0_2 = arith.constant 0 : index
    %c0_3 = arith.constant 0 : index
    %4 = vector.load %arg3[%c0_2, %c0_3] : memref<8x384xbf16, #tpu.memory_space<vmem>>, vector<8x384xbf16>
    %c0_4 = arith.constant 0 : index
    %c0_5 = arith.constant 0 : index
    %5 = vector.load %arg4[%c0_4, %c0_5] : memref<384x256xbf16, #tpu.memory_space<vmem>>, vector<384x256xbf16>
    %cst = arith.constant dense<0.000000e+00> : vector<8x256xf32>
    %6 = tpu.matmul %4, %5, %cst {dimension_numbers = #tpu.dot_dimension_numbers<[1], [0], [0], [1], [0, 0, 1, 1], [], []>} : vector<8x384xbf16>, vector<384x256xbf16>, vector<8x256xf32> -> vector<8x256xf32>
    %7 = arith.addf %3, %6 : vector<8x256xf32>
    %c0_6 = arith.constant 0 : index
    %c0_7 = arith.constant 0 : index
    %8 = vector.load %arg6[%c0_6, %c0_7] : memref<8x256xf32, #tpu.memory_space<vmem>>, vector<8x256xf32>
    tpu.vector_store %arg6[%c0_6, %c0_7], %7 {strides = array<i32>} : memref<8x256xf32, #tpu.memory_space<vmem>>, vector<8x256xf32>,
    %c2_i32 = arith.constant 2 : i32
    %9 = arith.cmpi eq, %arg2, %c2_i32 : i32
    %10 = arith.extui %9 : i1 to i32
    %c0_i32_8 = arith.constant 0 : i32
    %11 = arith.cmpi ne, %10, %c0_i32_8 : i32
    scf.if %11 {
      %c0_9 = arith.constant 0 : index
      %c0_10 = arith.constant 0 : index
      %12 = vector.load %arg6[%c0_9, %c0_10] : memref<8x256xf32, #tpu.memory_space<vmem>>, vector<8x256xf32>
      %cst_11 = arith.constant 0.000000e+00 : f32
      %13 = vector.broadcast %cst_11 : f32 to vector<8x256xf32>
      %14 = arith.maximumf %12, %13 : vector<8x256xf32>
      %c0_12 = arith.constant 0 : index
      %c0_13 = arith.constant 0 : index
      %15 = vector.load %arg5[%c0_12, %c0_13] : memref<8x256xf32, #tpu.memory_space<vmem>>, vector<8x256xf32>
      tpu.vector_store %arg5[%c0_12, %c0_13], %14 {strides = array<i32>} : memref<8x256xf32, #tpu.memory_space<vmem>>, vector<8x256xf32>,
    } else {
    }
    return
  }
  func.func @transform_0(%arg0: i32, %arg1: i32, %arg2: i32) -> (i32, i32) {
    %c0_i32 = arith.constant 0 : i32
    return %arg0, %arg2 : i32, i32
  }
  func.func @transform_1(%arg0: i32, %arg1: i32, %arg2: i32) -> (i32, i32) {
    %c0_i32 = arith.constant 0 : i32
    return %arg2, %arg1 : i32, i32
  }
  func.func @transform_2(%arg0: i32, %arg1: i32, %arg2: i32) -> (i32, i32) {
    %c0_i32 = arith.constant 0 : i32
    return %arg0, %arg1 : i32, i32
  }
}

module attributes {stable_mosaic.version = 11 : i64} {
  func.func @_mm_kernel(%arg0: i32, %arg1: i32, %arg2: i32, %arg3: memref<8x128xbf16, #tpu.memory_space<vmem>>, %arg4: memref<128x256xbf16, #tpu.memory_space<vmem>>, %arg5: memref<8x256xf32, #tpu.memory_space<vmem>>, %arg6: memref<8x256xf32, #tpu.memory_space<vmem>>) attributes {dimension_semantics = [#tpu.dimension_semantics<parallel>, #tpu.dimension_semantics<parallel>, #tpu.dimension_semantics<arbitrary>], iteration_bounds = array<i64: 1, 1, 1>, scalar_prefetch = 0 : i64, scratch_operands = 1 : i64, tpu.core_type = #tpu.core_type<tc>, window_params = [{transform_indices = @transform_0, window_bounds = array<i64: 8, 128>}, {transform_indices = @transform_1, window_bounds = array<i64: 128, 256>}, {transform_indices = @transform_2, window_bounds = array<i64: 8, 256>}]} {
    %c0_i32 = arith.constant 0 : i32
    %0 = arith.cmpi eq, %arg2, %c0_i32 : i32
    %1 = arith.extui %0 : i1 to i32
    %c0_i32_0 = arith.constant 0 : i32
    %2 = arith.cmpi ne, %1, %c0_i32_0 : i32
    scf.if %2 {
      %cst_10 = arith.constant 0.000000e+00 : f32
      %12 = vector.broadcast %cst_10 : f32 to vector<8x256xf32>
      %c0_11 = arith.constant 0 : index
      %c0_12 = arith.constant 0 : index
      %13 = vector.load %arg6[%c0_11, %c0_12] : memref<8x256xf32, #tpu.memory_space<vmem>>, vector<8x256xf32>
      tpu.vector_store %arg6[%c0_11, %c0_12], %12 {strides = array<i32>} : memref<8x256xf32, #tpu.memory_space<vmem>>, vector<8x256xf32>,
    } else {
    }
    %c0 = arith.constant 0 : index
    %c0_1 = arith.constant 0 : index
    %3 = vector.load %arg6[%c0, %c0_1] : memref<8x256xf32, #tpu.memory_space<vmem>>, vector<8x256xf32>
    %c0_2 = arith.constant 0 : index
    %c0_3 = arith.constant 0 : index
    %4 = vector.load %arg3[%c0_2, %c0_3] : memref<8x128xbf16, #tpu.memory_space<vmem>>, vector<8x128xbf16>
    %c0_4 = arith.constant 0 : index
    %c0_5 = arith.constant 0 : index
    %5 = vector.load %arg4[%c0_4, %c0_5] : memref<128x256xbf16, #tpu.memory_space<vmem>>, vector<128x256xbf16>
    %cst = arith.constant dense<0.000000e+00> : vector<8x256xf32>
    %6 = tpu.matmul %4, %5, %cst {dimension_numbers = #tpu.dot_dimension_numbers<[1], [0], [0], [1], [0, 0, 1, 1], [], []>} : vector<8x128xbf16>, vector<128x256xbf16>, vector<8x256xf32> -> vector<8x256xf32>
    %7 = arith.addf %3, %6 : vector<8x256xf32>
    %c0_6 = arith.constant 0 : index
    %c0_7 = arith.constant 0 : index
    %8 = vector.load %arg6[%c0_6, %c0_7] : memref<8x256xf32, #tpu.memory_space<vmem>>, vector<8x256xf32>
    tpu.vector_store %arg6[%c0_6, %c0_7], %7 {strides = array<i32>} : memref<8x256xf32, #tpu.memory_space<vmem>>, vector<8x256xf32>,
    %c0_i32_8 = arith.constant 0 : i32
    %9 = arith.cmpi eq, %arg2, %c0_i32_8 : i32
    %10 = arith.extui %9 : i1 to i32
    %c0_i32_9 = arith.constant 0 : i32
    %11 = arith.cmpi ne, %10, %c0_i32_9 : i32
    scf.if %11 {
      %c0_10 = arith.constant 0 : index
      %c0_11 = arith.constant 0 : index
      %12 = vector.load %arg6[%c0_10, %c0_11] : memref<8x256xf32, #tpu.memory_space<vmem>>, vector<8x256xf32>
      %c0_12 = arith.constant 0 : index
      %c0_13 = arith.constant 0 : index
      %13 = vector.load %arg5[%c0_12, %c0_13] : memref<8x256xf32, #tpu.memory_space<vmem>>, vector<8x256xf32>
      tpu.vector_store %arg5[%c0_12, %c0_13], %12 {strides = array<i32>} : memref<8x256xf32, #tpu.memory_space<vmem>>, vector<8x256xf32>,
    } else {
    }
    return
  }
  func.func @transform_0(%arg0: i32, %arg1: i32, %arg2: i32) -> (i32, i32) {
    %c0_i32 = arith.constant 0 : i32
    return %arg0, %arg2 : i32, i32
  }
  func.func @transform_1(%arg0: i32, %arg1: i32, %arg2: i32) -> (i32, i32) {
    %c0_i32 = arith.constant 0 : i32
    return %arg2, %arg1 : i32, i32
  }
  func.func @transform_2(%arg0: i32, %arg1: i32, %arg2: i32) -> (i32, i32) {
    %c0_i32 = arith.constant 0 : i32
    return %arg0, %arg1 : i32, i32
  }
}

module attributes {stable_mosaic.version = 11 : i64} {
  func.func @_mm_res_kernel(%arg0: i32, %arg1: i32, %arg2: i32, %arg3: memref<8x384xbf16, #tpu.memory_space<vmem>>, %arg4: memref<384x256xbf16, #tpu.memory_space<vmem>>, %arg5: memref<8x256xf32, #tpu.memory_space<vmem>>, %arg6: memref<8x256xf32, #tpu.memory_space<vmem>>, %arg7: memref<8x256xf32, #tpu.memory_space<vmem>>) attributes {dimension_semantics = [#tpu.dimension_semantics<parallel>, #tpu.dimension_semantics<parallel>, #tpu.dimension_semantics<arbitrary>], iteration_bounds = array<i64: 1, 1, 6>, scalar_prefetch = 0 : i64, scratch_operands = 1 : i64, tpu.core_type = #tpu.core_type<tc>, window_params = [{transform_indices = @transform_0, window_bounds = array<i64: 8, 384>}, {transform_indices = @transform_1, window_bounds = array<i64: 384, 256>}, {transform_indices = @transform_2, window_bounds = array<i64: 8, 256>}, {transform_indices = @transform_3, window_bounds = array<i64: 8, 256>}]} {
    %c0_i32 = arith.constant 0 : i32
    %0 = arith.cmpi eq, %arg2, %c0_i32 : i32
    %1 = arith.extui %0 : i1 to i32
    %c0_i32_0 = arith.constant 0 : i32
    %2 = arith.cmpi ne, %1, %c0_i32_0 : i32
    scf.if %2 {
      %cst_9 = arith.constant 0.000000e+00 : f32
      %12 = vector.broadcast %cst_9 : f32 to vector<8x256xf32>
      %c0_10 = arith.constant 0 : index
      %c0_11 = arith.constant 0 : index
      %13 = vector.load %arg7[%c0_10, %c0_11] : memref<8x256xf32, #tpu.memory_space<vmem>>, vector<8x256xf32>
      tpu.vector_store %arg7[%c0_10, %c0_11], %12 {strides = array<i32>} : memref<8x256xf32, #tpu.memory_space<vmem>>, vector<8x256xf32>,
    } else {
    }
    %c0 = arith.constant 0 : index
    %c0_1 = arith.constant 0 : index
    %3 = vector.load %arg7[%c0, %c0_1] : memref<8x256xf32, #tpu.memory_space<vmem>>, vector<8x256xf32>
    %c0_2 = arith.constant 0 : index
    %c0_3 = arith.constant 0 : index
    %4 = vector.load %arg3[%c0_2, %c0_3] : memref<8x384xbf16, #tpu.memory_space<vmem>>, vector<8x384xbf16>
    %c0_4 = arith.constant 0 : index
    %c0_5 = arith.constant 0 : index
    %5 = vector.load %arg4[%c0_4, %c0_5] : memref<384x256xbf16, #tpu.memory_space<vmem>>, vector<384x256xbf16>
    %cst = arith.constant dense<0.000000e+00> : vector<8x256xf32>
    %6 = tpu.matmul %4, %5, %cst {dimension_numbers = #tpu.dot_dimension_numbers<[1], [0], [0], [1], [0, 0, 1, 1], [], []>} : vector<8x384xbf16>, vector<384x256xbf16>, vector<8x256xf32> -> vector<8x256xf32>
    %7 = arith.addf %3, %6 : vector<8x256xf32>
    %c0_6 = arith.constant 0 : index
    %c0_7 = arith.constant 0 : index
    %8 = vector.load %arg7[%c0_6, %c0_7] : memref<8x256xf32, #tpu.memory_space<vmem>>, vector<8x256xf32>
    tpu.vector_store %arg7[%c0_6, %c0_7], %7 {strides = array<i32>} : memref<8x256xf32, #tpu.memory_space<vmem>>, vector<8x256xf32>,
    %c5_i32 = arith.constant 5 : i32
    %9 = arith.cmpi eq, %arg2, %c5_i32 : i32
    %10 = arith.extui %9 : i1 to i32
    %c0_i32_8 = arith.constant 0 : i32
    %11 = arith.cmpi ne, %10, %c0_i32_8 : i32
    scf.if %11 {
      %c0_9 = arith.constant 0 : index
      %c0_10 = arith.constant 0 : index
      %12 = vector.load %arg7[%c0_9, %c0_10] : memref<8x256xf32, #tpu.memory_space<vmem>>, vector<8x256xf32>
      %c0_11 = arith.constant 0 : index
      %c0_12 = arith.constant 0 : index
      %13 = vector.load %arg5[%c0_11, %c0_12] : memref<8x256xf32, #tpu.memory_space<vmem>>, vector<8x256xf32>
      %14 = arith.addf %12, %13 : vector<8x256xf32>
      %cst_13 = arith.constant 0.000000e+00 : f32
      %15 = vector.broadcast %cst_13 : f32 to vector<8x256xf32>
      %16 = arith.maximumf %14, %15 : vector<8x256xf32>
      %c0_14 = arith.constant 0 : index
      %c0_15 = arith.constant 0 : index
      %17 = vector.load %arg6[%c0_14, %c0_15] : memref<8x256xf32, #tpu.memory_space<vmem>>, vector<8x256xf32>
      tpu.vector_store %arg6[%c0_14, %c0_15], %16 {strides = array<i32>} : memref<8x256xf32, #tpu.memory_space<vmem>>, vector<8x256xf32>,
    } else {
    }
    return
  }
  func.func @transform_0(%arg0: i32, %arg1: i32, %arg2: i32) -> (i32, i32) {
    %c0_i32 = arith.constant 0 : i32
    return %arg0, %arg2 : i32, i32
  }
  func.func @transform_1(%arg0: i32, %arg1: i32, %arg2: i32) -> (i32, i32) {
    %c0_i32 = arith.constant 0 : i32
    return %arg2, %arg1 : i32, i32
  }
  func.func @transform_2(%arg0: i32, %arg1: i32, %arg2: i32) -> (i32, i32) {
    %c0_i32 = arith.constant 0 : i32
    return %arg0, %arg1 : i32, i32
  }
  func.func @transform_3(%arg0: i32, %arg1: i32, %arg2: i32) -> (i32, i32) {
    %c0_i32 = arith.constant 0 : i32
    return %arg0, %arg1 : i32, i32
  }
}

module attributes {stable_mosaic.version = 11 : i64} {
  func.func @_mm_kernel(%arg0: i32, %arg1: i32, %arg2: i32, %arg3: memref<8x384xbf16, #tpu.memory_space<vmem>>, %arg4: memref<384x256xbf16, #tpu.memory_space<vmem>>, %arg5: memref<8x256xf32, #tpu.memory_space<vmem>>, %arg6: memref<8x256xf32, #tpu.memory_space<vmem>>) attributes {dimension_semantics = [#tpu.dimension_semantics<parallel>, #tpu.dimension_semantics<parallel>, #tpu.dimension_semantics<arbitrary>], iteration_bounds = array<i64: 1, 1, 6>, scalar_prefetch = 0 : i64, scratch_operands = 1 : i64, tpu.core_type = #tpu.core_type<tc>, window_params = [{transform_indices = @transform_0, window_bounds = array<i64: 8, 384>}, {transform_indices = @transform_1, window_bounds = array<i64: 384, 256>}, {transform_indices = @transform_2, window_bounds = array<i64: 8, 256>}]} {
    %c0_i32 = arith.constant 0 : i32
    %0 = arith.cmpi eq, %arg2, %c0_i32 : i32
    %1 = arith.extui %0 : i1 to i32
    %c0_i32_0 = arith.constant 0 : i32
    %2 = arith.cmpi ne, %1, %c0_i32_0 : i32
    scf.if %2 {
      %cst_9 = arith.constant 0.000000e+00 : f32
      %12 = vector.broadcast %cst_9 : f32 to vector<8x256xf32>
      %c0_10 = arith.constant 0 : index
      %c0_11 = arith.constant 0 : index
      %13 = vector.load %arg6[%c0_10, %c0_11] : memref<8x256xf32, #tpu.memory_space<vmem>>, vector<8x256xf32>
      tpu.vector_store %arg6[%c0_10, %c0_11], %12 {strides = array<i32>} : memref<8x256xf32, #tpu.memory_space<vmem>>, vector<8x256xf32>,
    } else {
    }
    %c0 = arith.constant 0 : index
    %c0_1 = arith.constant 0 : index
    %3 = vector.load %arg6[%c0, %c0_1] : memref<8x256xf32, #tpu.memory_space<vmem>>, vector<8x256xf32>
    %c0_2 = arith.constant 0 : index
    %c0_3 = arith.constant 0 : index
    %4 = vector.load %arg3[%c0_2, %c0_3] : memref<8x384xbf16, #tpu.memory_space<vmem>>, vector<8x384xbf16>
    %c0_4 = arith.constant 0 : index
    %c0_5 = arith.constant 0 : index
    %5 = vector.load %arg4[%c0_4, %c0_5] : memref<384x256xbf16, #tpu.memory_space<vmem>>, vector<384x256xbf16>
    %cst = arith.constant dense<0.000000e+00> : vector<8x256xf32>
    %6 = tpu.matmul %4, %5, %cst {dimension_numbers = #tpu.dot_dimension_numbers<[1], [0], [0], [1], [0, 0, 1, 1], [], []>} : vector<8x384xbf16>, vector<384x256xbf16>, vector<8x256xf32> -> vector<8x256xf32>
    %7 = arith.addf %3, %6 : vector<8x256xf32>
    %c0_6 = arith.constant 0 : index
    %c0_7 = arith.constant 0 : index
    %8 = vector.load %arg6[%c0_6, %c0_7] : memref<8x256xf32, #tpu.memory_space<vmem>>, vector<8x256xf32>
    tpu.vector_store %arg6[%c0_6, %c0_7], %7 {strides = array<i32>} : memref<8x256xf32, #tpu.memory_space<vmem>>, vector<8x256xf32>,
    %c5_i32 = arith.constant 5 : i32
    %9 = arith.cmpi eq, %arg2, %c5_i32 : i32
    %10 = arith.extui %9 : i1 to i32
    %c0_i32_8 = arith.constant 0 : i32
    %11 = arith.cmpi ne, %10, %c0_i32_8 : i32
    scf.if %11 {
      %c0_9 = arith.constant 0 : index
      %c0_10 = arith.constant 0 : index
      %12 = vector.load %arg6[%c0_9, %c0_10] : memref<8x256xf32, #tpu.memory_space<vmem>>, vector<8x256xf32>
      %cst_11 = arith.constant 0.000000e+00 : f32
      %13 = vector.broadcast %cst_11 : f32 to vector<8x256xf32>
      %14 = arith.maximumf %12, %13 : vector<8x256xf32>
      %c0_12 = arith.constant 0 : index
      %c0_13 = arith.constant 0 : index
      %15 = vector.load %arg5[%c0_12, %c0_13] : memref<8x256xf32, #tpu.memory_space<vmem>>, vector<8x256xf32>
      tpu.vector_store %arg5[%c0_12, %c0_13], %14 {strides = array<i32>} : memref<8x256xf32, #tpu.memory_space<vmem>>, vector<8x256xf32>,
    } else {
    }
    return
  }
  func.func @transform_0(%arg0: i32, %arg1: i32, %arg2: i32) -> (i32, i32) {
    %c0_i32 = arith.constant 0 : i32
    return %arg0, %arg2 : i32, i32
  }
  func.func @transform_1(%arg0: i32, %arg1: i32, %arg2: i32) -> (i32, i32) {
    %c0_i32 = arith.constant 0 : i32
    return %arg2, %arg1 : i32, i32
  }
  func.func @transform_2(%arg0: i32, %arg1: i32, %arg2: i32) -> (i32, i32) {
    %c0_i32 = arith.constant 0 : i32
    return %arg0, %arg1 : i32, i32
  }
}

</mosaic_0001>

<llo_original>
// kernel: resnet_forward.17
$region0: #{resnet_forward.17}
  #allocation0 [shape = 'u32[]', space=smem, size = 0x4, offset = 0x4, fixed_abs, tag = 'smem constant byte address 0x4 - core index']
  #allocation1 [shape = 'u32[144,128]{1,0:T(1,128)}', space=vmem, size = 0x12000, scoped, tag = 'internal scratch']
  %s0 = inlined_call_operand.vmem [shape: f32[32,128], index: 0, kind: input, shape index: {}]
  %s1 = inlined_call_operand.vmem [shape: f32[32,128], index: 1, kind: input, shape index: {}]
  %s2 = inlined_call_operand.vmem [shape: f32[32,128], index: 2, kind: input, shape index: {}]
  %s3 = inlined_call_operand.vmem [shape: f32[32,128], index: 3, kind: input, shape index: {}]
  %s4 = inlined_call_operand.vmem [shape: f32[32,128], index: 4, kind: input, shape index: {}]
  %s5 = inlined_call_operand.vmem [shape: f32[32,128], index: 5, kind: input, shape index: {}]
  %s6 = inlined_call_operand.vmem [shape: f32[32,128], index: 6, kind: input, shape index: {}]
  %s7 = inlined_call_operand.vmem [shape: f32[32,128], index: 7, kind: input, shape index: {}]
  %s8 = inlined_call_operand.vmem [shape: f32[32,128], index: 8, kind: input, shape index: {}]
  %s9 = inlined_call_operand.vmem [shape: f32[32,128], index: 9, kind: output, shape index: {}]
  %s10 = sld [smem:[#allocation0]]
  $region46: #{resnet_forward.17} parent=0
    _
  %s12 = ssub.s32 1, %s10
  %s13 = scalar_select 0, %s12, %s10
  // Predicated region
  $region2: #{resnet_forward.17} parent=0 // pred_check
    _
  $region3: #{resnet_forward.17} parent=0 // pred_check_branch
    %15 = sbr.rel (0) target = $region5
  $region4: #{resnet_forward.17} parent=0 // pred_region
    _
  $region5: #{resnet_forward.17} parent=0 // pred_fallthru
    _
  // Predicated region
  $region6: #{resnet_forward.17} parent=0 // pred_check
    _
  $region7: #{resnet_forward.17} parent=0 // pred_check_branch
    %17 = sbr.rel (0) target = $region9
  $region8: #{resnet_forward.17} parent=0 // pred_region
    _
  $region9: #{resnet_forward.17} parent=0 // pred_fallthru
    _
  // Predicated region
  $region10: #{resnet_forward.17} parent=0 // pred_check
    _
  $region11: #{resnet_forward.17} parent=0 // pred_check_branch
    %19 = sbr.rel (0) target = $region13
  $region12: #{resnet_forward.17} parent=0 // pred_region
    _
  $region13: #{resnet_forward.17} parent=0 // pred_fallthru
    _
  // Predicated region
  $region14: #{resnet_forward.17} parent=0 // pred_check
    _
  $region15: #{resnet_forward.17} parent=0 // pred_check_branch
    %21 = sbr.rel (0) target = $region17
  $region16: #{resnet_forward.17} parent=0 // pred_region
    _
  $region17: #{resnet_forward.17} parent=0 // pred_fallthru
    _
  // Predicated region
  $region18: #{resnet_forward.17} parent=0 // pred_check
    _
  $region19: #{resnet_forward.17} parent=0 // pred_check_branch
    %23 = sbr.rel (0) target = $region21
  $region20: #{resnet_forward.17} parent=0 // pred_region
    _
  $region21: #{resnet_forward.17} parent=0 // pred_fallthru
    _
  // Predicated region
  $region22: #{resnet_forward.17} parent=0 // pred_check
    _
  $region23: #{resnet_forward.17} parent=0 // pred_check_branch
    %25 = sbr.rel (0) target = $region25
  $region24: #{resnet_forward.17} parent=0 // pred_region
    _
  $region25: #{resnet_forward.17} parent=0 // pred_fallthru
    _
  // Predicated region
  $region26: #{resnet_forward.17} parent=0 // pred_check
    _
  $region27: #{resnet_forward.17} parent=0 // pred_check_branch
    %27 = sbr.rel (0) target = $region29
  $region28: #{resnet_forward.17} parent=0 // pred_region
    _
  $region29: #{resnet_forward.17} parent=0 // pred_fallthru
    _
  // Predicated region
  $region30: #{resnet_forward.17} parent=0 // pred_check
    _
  $region31: #{resnet_forward.17} parent=0 // pred_check_branch
    %29 = sbr.rel (0) target = $region33
  $region32: #{resnet_forward.17} parent=0 // pred_region
    _
  $region33: #{resnet_forward.17} parent=0 // pred_fallthru
    _
  // Predicated region
  $region34: #{resnet_forward.17} parent=0 // pred_check
    _
  $region35: #{resnet_forward.17} parent=0 // pred_check_branch
    %31 = sbr.rel (0) target = $region37
  $region36: #{resnet_forward.17} parent=0 // pred_region
    _
  $region37: #{resnet_forward.17} parent=0 // pred_fallthru
    _
  %v32 = vld [vmem:[%s0] sm:$0xff]
  %v33 = vld [vmem:[%s0 + $0x8] sm:$0xff]
  %v34 = vld [vmem:[%s0 + $0x10] sm:$0xff]
  %v35 = vld [vmem:[%s0 + $0x18] sm:$0xff]
  %v36 = vld [vmem:[%s1] sm:$0xff]
  %v37 = vld [vmem:[%s1 + $0x8] sm:$0xff]
  %v38 = vld [vmem:[%s1 + $0x10] sm:$0xff]
  %v39 = vld [vmem:[%s1 + $0x18] sm:$0xff]
  %v40 = vmax.f32 %v32, %v36
  %v41 = vmax.f32 %v33, %v37
  %v42 = vmax.f32 %v34, %v38
  %v43 = vmax.f32 %v35, %v39
  %v44 = vld [vmem:[%s2] sm:$0xff]
  %v45 = vld [vmem:[%s2 + $0x8] sm:$0xff]
  %v46 = vld [vmem:[%s2 + $0x10] sm:$0xff]
  %v47 = vld [vmem:[%s2 + $0x18] sm:$0xff]
  %v48 = vmax.f32 %v40, %v44
  %v49 = vmax.f32 %v41, %v45
  %v50 = vmax.f32 %v42, %v46
  %v51 = vmax.f32 %v43, %v47
  %v52 = vld [vmem:[%s3] sm:$0xff]
  %v53 = vld [vmem:[%s3 + $0x8] sm:$0xff]
  %v54 = vld [vmem:[%s3 + $0x10] sm:$0xff]
  %v55 = vld [vmem:[%s3 + $0x18] sm:$0xff]
  %v56 = vmax.f32 %v48, %v52
  %v57 = vmax.f32 %v49, %v53
  %v58 = vmax.f32 %v50, %v54
  %v59 = vmax.f32 %v51, %v55
  %v60 = vld [vmem:[%s4] sm:$0xff]
  %v61 = vld [vmem:[%s4 + $0x8] sm:$0xff]
  %v62 = vld [vmem:[%s4 + $0x10] sm:$0xff]
  %v63 = vld [vmem:[%s4 + $0x18] sm:$0xff]
  %v64 = vmax.f32 %v56, %v60
  %v65 = vmax.f32 %v57, %v61
  %v66 = vmax.f32 %v58, %v62
  %v67 = vmax.f32 %v59, %v63
  %v68 = vld [vmem:[%s5] sm:$0xff]
  %v69 = vld [vmem:[%s5 + $0x8] sm:$0xff]
  %v70 = vld [vmem:[%s5 + $0x10] sm:$0xff]
  %v71 = vld [vmem:[%s5 + $0x18] sm:$0xff]
  %v72 = vmax.f32 %v64, %v68
  %v73 = vmax.f32 %v65, %v69
  %v74 = vmax.f32 %v66, %v70
  %v75 = vmax.f32 %v67, %v71
  %v76 = vld [vmem:[%s6] sm:$0xff]
  %v77 = vld [vmem:[%s6 + $0x8] sm:$0xff]
  %v78 = vld [vmem:[%s6 + $0x10] sm:$0xff]
  %v79 = vld [vmem:[%s6 + $0x18] sm:$0xff]
  %v80 = vmax.f32 %v72, %v76
  %v81 = vmax.f32 %v73, %v77
  %v82 = vmax.f32 %v74, %v78
  %v83 = vmax.f32 %v75, %v79
  %v84 = vld [vmem:[%s7] sm:$0xff]
  %v85 = vld [vmem:[%s7 + $0x8] sm:$0xff]
  %v86 = vld [vmem:[%s7 + $0x10] sm:$0xff]
  %v87 = vld [vmem:[%s7 + $0x18] sm:$0xff]
  %v88 = vmax.f32 %v80, %v84
  %v89 = vmax.f32 %v81, %v85
  %v90 = vmax.f32 %v82, %v86
  %v91 = vmax.f32 %v83, %v87
  %v92 = vld [vmem:[%s8] sm:$0xff]
  %v93 = vld [vmem:[%s8 + $0x8] sm:$0xff]
  %v94 = vld [vmem:[%s8 + $0x10] sm:$0xff]
  %v95 = vld [vmem:[%s8 + $0x18] sm:$0xff]
  %v96 = vmax.f32 %v88, %v92
  %v97 = vmax.f32 %v89, %v93
  %v98 = vmax.f32 %v90, %v94
  %v99 = vmax.f32 %v91, %v95
  %100 = vst [vmem:[%s9] sm:$0xff] %v96
  %101 = vst [vmem:[%s9 + $0x8] sm:$0xff] %v97
  %102 = vst [vmem:[%s9 + $0x10] sm:$0xff] %v98
  %103 = vst [vmem:[%s9 + $0x18] sm:$0xff] %v99
  // Predicated region
  $region38: #{resnet_forward.17} parent=0 // pred_check
    _
  $region39: #{resnet_forward.17} parent=0 // pred_check_branch
    %105 = sbr.rel (0) target = $region41
  $region40: #{resnet_forward.17} parent=0 // pred_region
    _
  $region41: #{resnet_forward.17} parent=0 // pred_fallthru
    _
  // Predicated region
  $region42: #{resnet_forward.17} parent=0 // pred_check
    _
  $region43: #{resnet_forward.17} parent=0 // pred_check_branch
    %107 = sbr.rel (0) target = $region45
  $region44: #{resnet_forward.17} parent=0 // pred_region
    _
  $region45: #{resnet_forward.17} parent=0 // pred_fallthru
    _

// kernel: resnet_forward.16
$region0: #{resnet_forward.16}
  #allocation0 [shape = 'u32[]', space=smem, size = 0x4, offset = 0x4, fixed_abs, tag = 'smem constant byte address 0x4 - core index']
  #allocation1 [shape = 'u32[144,128]{1,0:T(1,128)}', space=vmem, size = 0x12000, scoped, tag = 'internal scratch']
  #allocation2 [shape = 'f32[128,128]{1,0:T(8,128)}', space=vmem, size = 0x10000, scoped, tag = 'scratch operand']
  %s0 = inlined_call_operand.vmem [shape: bf16[128,128], index: 0, kind: input, shape index: {}]
  %s1 = inlined_call_operand.vmem [shape: bf16[128,128], index: 1, kind: input, shape index: {}]
  %s2 = inlined_call_operand.vmem [shape: f32[128,128], index: 2, kind: output, shape index: {}]
  %s3 = sld [smem:[#allocation0]]
  $region26: #{resnet_forward.16} parent=0
    _
  %s5 = ssub.s32 1, %s3
  %s6 = scalar_select 0, %s5, %s3
  // Predicated region
  $region2: #{resnet_forward.16} parent=0 // pred_check
    _
  $region3: #{resnet_forward.16} parent=0 // pred_check_branch
    %8 = sbr.rel (0) target = $region5
  $region4: #{resnet_forward.16} parent=0 // pred_region
    _
  $region5: #{resnet_forward.16} parent=0 // pred_fallthru
    _
  // Predicated region
  $region6: #{resnet_forward.16} parent=0 // pred_check
    _
  $region7: #{resnet_forward.16} parent=0 // pred_check_branch
    %10 = sbr.rel (0) target = $region9
  $region8: #{resnet_forward.16} parent=0 // pred_region
    _
  $region9: #{resnet_forward.16} parent=0 // pred_fallthru
    _
  %p12 = scmp.eq.s32.totalorder 0, 0
  // Predicated region
  $region10: #{resnet_forward.16} parent=0 // pred_check
    %p13 = pneg %p12
  $region11: #{resnet_forward.16} parent=0 // pred_check_branch
    %15 = sbr.rel (%p13) target = $region13
  $region12: #{resnet_forward.16} parent=0 // pred_region
    %16 = vst [vmem:[#allocation2] sm:$0xff] 0.0
    %17 = vst [vmem:[#allocation2 + $0x8] sm:$0xff] 0.0
    %18 = vst [vmem:[#allocation2 + $0x10] sm:$0xff] 0.0
    %19 = vst [vmem:[#allocation2 + $0x18] sm:$0xff] 0.0
    %20 = vst [vmem:[#allocation2 + $0x20] sm:$0xff] 0.0
    %21 = vst [vmem:[#allocation2 + $0x28] sm:$0xff] 0.0
    %22 = vst [vmem:[#allocation2 + $0x30] sm:$0xff] 0.0
    %23 = vst [vmem:[#allocation2 + $0x38] sm:$0xff] 0.0
    %24 = vst [vmem:[#allocation2 + $0x40] sm:$0xff] 0.0
    %25 = vst [vmem:[#allocation2 + $0x48] sm:$0xff] 0.0
    %26 = vst [vmem:[#allocation2 + $0x50] sm:$0xff] 0.0
    %27 = vst [vmem:[#allocation2 + $0x58] sm:$0xff] 0.0
    %28 = vst [vmem:[#allocation2 + $0x60] sm:$0xff] 0.0
    %29 = vst [vmem:[#allocation2 + $0x68] sm:$0xff] 0.0
    %30 = vst [vmem:[#allocation2 + $0x70] sm:$0xff] 0.0
    %31 = vst [vmem:[#allocation2 + $0x78] sm:$0xff] 0.0
  $region13: #{resnet_forward.16} parent=0 // pred_fallthru
    _
  %v32 = vld [vmem:[#allocation2] sm:$0xff]
  %v33 = vld [vmem:[#allocation2 + $0x8] sm:$0xff]
  %v34 = vld [vmem:[#allocation2 + $0x10] sm:$0xff]
  %v35 = vld [vmem:[#allocation2 + $0x18] sm:$0xff]
  %v36 = vld [vmem:[#allocation2 + $0x20] sm:$0xff]
  %v37 = vld [vmem:[#allocation2 + $0x28] sm:$0xff]
  %v38 = vld [vmem:[#allocation2 + $0x30] sm:$0xff]
  %v39 = vld [vmem:[#allocation2 + $0x38] sm:$0xff]
  %v40 = vld [vmem:[#allocation2 + $0x40] sm:$0xff]
  %v41 = vld [vmem:[#allocation2 + $0x48] sm:$0xff]
  %v42 = vld [vmem:[#allocation2 + $0x50] sm:$0xff]
  %v43 = vld [vmem:[#allocation2 + $0x58] sm:$0xff]
  %v44 = vld [vmem:[#allocation2 + $0x60] sm:$0xff]
  %v45 = vld [vmem:[#allocation2 + $0x68] sm:$0xff]
  %v46 = vld [vmem:[#allocation2 + $0x70] sm:$0xff]
  %v47 = vld [vmem:[#allocation2 + $0x78] sm:$0xff]
  %v48 = vld [vmem:[%s0] sm:$0xf]
  %v49 = vld [vmem:[%s0 + $0x4] sm:$0xf]
  %v50 = vld [vmem:[%s0 + $0x8] sm:$0xf]
  %v51 = vld [vmem:[%s0 + $0xc] sm:$0xf]
  %v52 = vld [vmem:[%s0 + $0x10] sm:$0xf]
  %v53 = vld [vmem:[%s0 + $0x14] sm:$0xf]
  %v54 = vld [vmem:[%s0 + $0x18] sm:$0xf]
  %v55 = vld [vmem:[%s0 + $0x1c] sm:$0xf]
  %v56 = vld [vmem:[%s0 + $0x20] sm:$0xf]
  %v57 = vld [vmem:[%s0 + $0x24] sm:$0xf]
  %v58 = vld [vmem:[%s0 + $0x28] sm:$0xf]
  %v59 = vld [vmem:[%s0 + $0x2c] sm:$0xf]
  %v60 = vld [vmem:[%s0 + $0x30] sm:$0xf]
  %v61 = vld [vmem:[%s0 + $0x34] sm:$0xf]
  %v62 = vld [vmem:[%s0 + $0x38] sm:$0xf]
  %v63 = vld [vmem:[%s0 + $0x3c] sm:$0xf]
  %v64 = vld [vmem:[%s1] sm:$0xf]
  %v65 = vld [vmem:[%s1 + $0x4] sm:$0xf]
  %v66 = vld [vmem:[%s1 + $0x8] sm:$0xf]
  %v67 = vld [vmem:[%s1 + $0xc] sm:$0xf]
  %v68 = vld [vmem:[%s1 + $0x10] sm:$0xf]
  %v69 = vld [vmem:[%s1 + $0x14] sm:$0xf]
  %v70 = vld [vmem:[%s1 + $0x18] sm:$0xf]
  %v71 = vld [vmem:[%s1 + $0x1c] sm:$0xf]
  %v72 = vld [vmem:[%s1 + $0x20] sm:$0xf]
  %v73 = vld [vmem:[%s1 + $0x24] sm:$0xf]
  %v74 = vld [vmem:[%s1 + $0x28] sm:$0xf]
  %v75 = vld [vmem:[%s1 + $0x2c] sm:$0xf]
  %v76 = vld [vmem:[%s1 + $0x30] sm:$0xf]
  %v77 = vld [vmem:[%s1 + $0x34] sm:$0xf]
  %v78 = vld [vmem:[%s1 + $0x38] sm:$0xf]
  %v79 = vld [vmem:[%s1 + $0x3c] sm:$0xf]
  %v96 = vunpack.c.l.b16 %v48
  %v97 = vunpack.c.l.b16 %v49
  %v98 = vunpack.c.l.b16 %v50
  %v99 = vunpack.c.l.b16 %v51
  %v100 = vunpack.c.l.b16 %v52
  %v101 = vunpack.c.l.b16 %v53
  %v102 = vunpack.c.l.b16 %v54
  %v103 = vunpack.c.l.b16 %v55
  %v104 = vunpack.c.l.b16 %v56
  %v105 = vunpack.c.l.b16 %v57
  %v106 = vunpack.c.l.b16 %v58
  %v107 = vunpack.c.l.b16 %v59
  %v108 = vunpack.c.l.b16 %v60
  %v109 = vunpack.c.l.b16 %v61
  %v110 = vunpack.c.l.b16 %v62
  %v111 = vunpack.c.l.b16 %v63
  %v112 = vpack.c.b16 %v97, %v96
  %v113 = vpack.c.b16 %v99, %v98
  %v114 = vpack.c.b16 %v101, %v100
  %v115 = vpack.c.b16 %v103, %v102
  %v116 = vpack.c.b16 %v105, %v104
  %v117 = vpack.c.b16 %v107, %v106
  %v118 = vpack.c.b16 %v109, %v108
  %v119 = vpack.c.b16 %v111, %v110
  %v144 = vunpack.c.l.b16 %v64
  %v145 = vunpack.c.l.b16 %v65
  %v146 = vunpack.c.l.b16 %v66
  %v147 = vunpack.c.l.b16 %v67
  %v148 = vunpack.c.l.b16 %v68
  %v149 = vunpack.c.l.b16 %v69
  %v150 = vunpack.c.l.b16 %v70
  %v151 = vunpack.c.l.b16 %v71
  %v152 = vunpack.c.l.b16 %v72
  %v153 = vunpack.c.l.b16 %v73
  %v154 = vunpack.c.l.b16 %v74
  %v155 = vunpack.c.l.b16 %v75
  %v156 = vunpack.c.l.b16 %v76
  %v157 = vunpack.c.l.b16 %v77
  %v158 = vunpack.c.l.b16 %v78
  %v159 = vunpack.c.l.b16 %v79
  %v160 = vpack.c.b16 %v145, %v144
  %v161 = vpack.c.b16 %v147, %v146
  %v162 = vpack.c.b16 %v149, %v148
  %v163 = vpack.c.b16 %v151, %v150
  %v164 = vpack.c.b16 %v153, %v152
  %v165 = vpack.c.b16 %v155, %v154
  %v166 = vpack.c.b16 %v157, %v156
  %v167 = vpack.c.b16 %v159, %v158
  %176 = vmatprep.subr.bf16.mxu0 0
  %177 = vmatpush1.bf16.msra.mxu0 %v160
  %178 = vmatprep.subr.bf16.mxu0 0
  %179 = vmatpush1.bf16.msra.mxu0 %v161
  %180 = vmatprep.subr.bf16.mxu0 0
  %181 = vmatpush1.bf16.msra.mxu0 %v162
  %182 = vmatprep.subr.bf16.mxu0 0
  %183 = vmatpush1.bf16.msra.mxu0 %v163
  %184 = vmatprep.subr.bf16.mxu0 0
  %185 = vmatpush1.bf16.msra.mxu0 %v164
  %186 = vmatprep.subr.bf16.mxu0 0
  %187 = vmatpush1.bf16.msra.mxu0 %v165
  %188 = vmatprep.subr.bf16.mxu0 0
  %189 = vmatpush1.bf16.msra.mxu0 %v166
  %190 = vmatprep.subr.bf16.mxu0 0
  %191 = vmatpush1.bf16.msra.mxu0 %v167
  %192 = vmatprep.subr.bf16.mxu0 0
  %193 = vmatpush1.bf16.msra.mxu0 0
  %194 = vmatprep.subr.bf16.mxu0 0
  %195 = vmatpush1.bf16.msra.mxu0 0
  %196 = vmatprep.subr.bf16.mxu0 0
  %197 = vmatpush1.bf16.msra.mxu0 0
  %198 = vmatprep.subr.bf16.mxu0 0
  %199 = vmatpush1.bf16.msra.mxu0 0
  %200 = vmatprep.subr.bf16.mxu0 0
  %201 = vmatpush1.bf16.msra.mxu0 0
  %202 = vmatprep.subr.bf16.mxu0 0
  %203 = vmatpush1.bf16.msra.mxu0 0
  %204 = vmatprep.subr.bf16.mxu0 0
  %205 = vmatpush1.bf16.msra.mxu0 0
  %206 = vmatprep.subr.bf16.mxu0 0
  %207 = vmatpush1.bf16.msra.mxu0 0
  %208 = vmatprep.mubr.bf16.mxu0 0
  %209 = vmatmul.mubr.bf16.gmra.mrb[0].mxu0 %v112
  %v210 = vpop.f32.mrb[0].mxu0
  %v211 = vadd.f32 0.0, %v210
  %v212 = vpop.f32.mrb[0].mxu0
  %v213 = vpop.f32.mrb[0].mxu0
  %v214 = vadd.f32 0.0, %v213
  %v215 = vpop.f32.mrb[0].mxu0
  %216 = vmatprep.mubr.bf16.mxu0 0
  %217 = vmatmul.mubr.bf16.gmra.mrb[0].mxu0 %v113
  %v218 = vpop.f32.mrb[0].mxu0
  %v219 = vadd.f32 0.0, %v218
  %v220 = vpop.f32.mrb[0].mxu0
  %v221 = vpop.f32.mrb[0].mxu0
  %v222 = vadd.f32 0.0, %v221
  %v223 = vpop.f32.mrb[0].mxu0
  %224 = vmatprep.mubr.bf16.mxu0 0
  %225 = vmatmul.mubr.bf16.gmra.mrb[0].mxu0 %v114
  %v226 = vpop.f32.mrb[0].mxu0
  %v227 = vadd.f32 0.0, %v226
  %v228 = vpop.f32.mrb[0].mxu0
  %v229 = vpop.f32.mrb[0].mxu0
  %v230 = vadd.f32 0.0, %v229
  %v231 = vpop.f32.mrb[0].mxu0
  %232 = vmatprep.mubr.bf16.mxu0 0
  %233 = vmatmul.mubr.bf16.gmra.mrb[0].mxu0 %v115
  %v234 = vpop.f32.mrb[0].mxu0
  %v235 = vadd.f32 0.0, %v234
  %v236 = vpop.f32.mrb[0].mxu0
  %v237 = vpop.f32.mrb[0].mxu0
  %v238 = vadd.f32 0.0, %v237
  %v239 = vpop.f32.mrb[0].mxu0
  %240 = vmatprep.mubr.bf16.mxu0 0
  %241 = vmatmul.mubr.bf16.gmra.mrb[0].mxu0 %v116
  %v242 = vpop.f32.mrb[0].mxu0
  %v243 = vadd.f32 0.0, %v242
  %v244 = vpop.f32.mrb[0].mxu0
  %v245 = vpop.f32.mrb[0].mxu0
  %v246 = vadd.f32 0.0, %v245
  %v247 = vpop.f32.mrb[0].mxu0
  %248 = vmatprep.mubr.bf16.mxu0 0
  %249 = vmatmul.mubr.bf16.gmra.mrb[0].mxu0 %v117
  %v250 = vpop.f32.mrb[0].mxu0
  %v251 = vadd.f32 0.0, %v250
  %v252 = vpop.f32.mrb[0].mxu0
  %v253 = vpop.f32.mrb[0].mxu0
  %v254 = vadd.f32 0.0, %v253
  %v255 = vpop.f32.mrb[0].mxu0
  %256 = vmatprep.mubr.bf16.mxu0 0
  %257 = vmatmul.mubr.bf16.gmra.mrb[0].mxu0 %v118
  %v258 = vpop.f32.mrb[0].mxu0
  %v259 = vadd.f32 0.0, %v258
  %v260 = vpop.f32.mrb[0].mxu0
  %v261 = vpop.f32.mrb[0].mxu0
  %v262 = vadd.f32 0.0, %v261
  %v263 = vpop.f32.mrb[0].mxu0
  %264 = vmatprep.mubr.bf16.mxu0 0
  %265 = vmatmul.mubr.bf16.gmra.mrb[0].mxu0 %v119
  %v266 = vpop.f32.mrb[0].mxu0
  %v267 = vadd.f32 0.0, %v266
  %v268 = vpop.f32.mrb[0].mxu0
  %v269 = vpop.f32.mrb[0].mxu0
  %v270 = vadd.f32 0.0, %v269
  %v271 = vpop.f32.mrb[0].mxu0
  %272 = vdwg.mxu0
  %v273 = vadd.f32 %v32, %v211
  %v274 = vadd.f32 %v33, %v214
  %v275 = vadd.f32 %v34, %v219
  %v276 = vadd.f32 %v35, %v222
  %v277 = vadd.f32 %v36, %v227
  %v278 = vadd.f32 %v37, %v230
  %v279 = vadd.f32 %v38, %v235
  %v280 = vadd.f32 %v39, %v238
  %v281 = vadd.f32 %v40, %v243
  %v282 = vadd.f32 %v41, %v246
  %v283 = vadd.f32 %v42, %v251
  %v284 = vadd.f32 %v43, %v254
  %v285 = vadd.f32 %v44, %v259
  %v286 = vadd.f32 %v45, %v262
  %v287 = vadd.f32 %v46, %v267
  %v288 = vadd.f32 %v47, %v270
  %289 = vst [vmem:[#allocation2] sm:$0xff] %v273
  %290 = vst [vmem:[#allocation2 + $0x8] sm:$0xff] %v274
  %291 = vst [vmem:[#allocation2 + $0x10] sm:$0xff] %v275
  %292 = vst [vmem:[#allocation2 + $0x18] sm:$0xff] %v276
  %293 = vst [vmem:[#allocation2 + $0x20] sm:$0xff] %v277
  %294 = vst [vmem:[#allocation2 + $0x28] sm:$0xff] %v278
  %295 = vst [vmem:[#allocation2 + $0x30] sm:$0xff] %v279
  %296 = vst [vmem:[#allocation2 + $0x38] sm:$0xff] %v280
  %297 = vst [vmem:[#allocation2 + $0x40] sm:$0xff] %v281
  %298 = vst [vmem:[#allocation2 + $0x48] sm:$0xff] %v282
  %299 = vst [vmem:[#allocation2 + $0x50] sm:$0xff] %v283
  %300 = vst [vmem:[#allocation2 + $0x58] sm:$0xff] %v284
  %301 = vst [vmem:[#allocation2 + $0x60] sm:$0xff] %v285
  %302 = vst [vmem:[#allocation2 + $0x68] sm:$0xff] %v286
  %303 = vst [vmem:[#allocation2 + $0x70] sm:$0xff] %v287
  %304 = vst [vmem:[#allocation2 + $0x78] sm:$0xff] %v288
  // Predicated region
  $region14: #{resnet_forward.16} parent=0 // pred_check
    %p305 = pneg %p12
  $region15: #{resnet_forward.16} parent=0 // pred_check_branch
    %307 = sbr.rel (%p305) target = $region17
  $region16: #{resnet_forward.16} parent=0 // pred_region
    %v308 = vld [vmem:[#allocation2] sm:$0xff]
    %v309 = vld [vmem:[#allocation2 + $0x8] sm:$0xff]
    %v310 = vld [vmem:[#allocation2 + $0x10] sm:$0xff]
    %v311 = vld [vmem:[#allocation2 + $0x18] sm:$0xff]
    %v312 = vld [vmem:[#allocation2 + $0x20] sm:$0xff]
    %v313 = vld [vmem:[#allocation2 + $0x28] sm:$0xff]
    %v314 = vld [vmem:[#allocation2 + $0x30] sm:$0xff]
    %v315 = vld [vmem:[#allocation2 + $0x38] sm:$0xff]
    %v316 = vld [vmem:[#allocation2 + $0x40] sm:$0xff]
    %v317 = vld [vmem:[#allocation2 + $0x48] sm:$0xff]
    %v318 = vld [vmem:[#allocation2 + $0x50] sm:$0xff]
    %v319 = vld [vmem:[#allocation2 + $0x58] sm:$0xff]
    %v320 = vld [vmem:[#allocation2 + $0x60] sm:$0xff]
    %v321 = vld [vmem:[#allocation2 + $0x68] sm:$0xff]
    %v322 = vld [vmem:[#allocation2 + $0x70] sm:$0xff]
    %v323 = vld [vmem:[#allocation2 + $0x78] sm:$0xff]
    %v324 = vmax.f32 %v308, 0.0
    %v325 = vmax.f32 %v309, 0.0
    %v326 = vmax.f32 %v310, 0.0
    %v327 = vmax.f32 %v311, 0.0
    %v328 = vmax.f32 %v312, 0.0
    %v329 = vmax.f32 %v313, 0.0
    %v330 = vmax.f32 %v314, 0.0
    %v331 = vmax.f32 %v315, 0.0
    %v332 = vmax.f32 %v316, 0.0
    %v333 = vmax.f32 %v317, 0.0
    %v334 = vmax.f32 %v318, 0.0
    %v335 = vmax.f32 %v319, 0.0
    %v336 = vmax.f32 %v320, 0.0
    %v337 = vmax.f32 %v321, 0.0
    %v338 = vmax.f32 %v322, 0.0
    %v339 = vmax.f32 %v323, 0.0
    %340 = vst [vmem:[%s2] sm:$0xff] %v324
    %341 = vst [vmem:[%s2 + $0x8] sm:$0xff] %v325
    %342 = vst [vmem:[%s2 + $0x10] sm:$0xff] %v326
    %343 = vst [vmem:[%s2 + $0x18] sm:$0xff] %v327
    %344 = vst [vmem:[%s2 + $0x20] sm:$0xff] %v328
    %345 = vst [vmem:[%s2 + $0x28] sm:$0xff] %v329
    %346 = vst [vmem:[%s2 + $0x30] sm:$0xff] %v330
    %347 = vst [vmem:[%s2 + $0x38] sm:$0xff] %v331
    %348 = vst [vmem:[%s2 + $0x40] sm:$0xff] %v332
    %349 = vst [vmem:[%s2 + $0x48] sm:$0xff] %v333
    %350 = vst [vmem:[%s2 + $0x50] sm:$0xff] %v334
    %351 = vst [vmem:[%s2 + $0x58] sm:$0xff] %v335
    %352 = vst [vmem:[%s2 + $0x60] sm:$0xff] %v336
    %353 = vst [vmem:[%s2 + $0x68] sm:$0xff] %v337
    %354 = vst [vmem:[%s2 + $0x70] sm:$0xff] %v338
    %355 = vst [vmem:[%s2 + $0x78] sm:$0xff] %v339
  $region17: #{resnet_forward.16} parent=0 // pred_fallthru
    _
  // Predicated region
  $region18: #{resnet_forward.16} parent=0 // pred_check
    _
  $region19: #{resnet_forward.16} parent=0 // pred_check_branch
    %357 = sbr.rel (0) target = $region21
  $region20: #{resnet_forward.16} parent=0 // pred_region
    _
  $region21: #{resnet_forward.16} parent=0 // pred_fallthru
    _
  // Predicated region
  $region22: #{resnet_forward.16} parent=0 // pred_check
    _
  $region23: #{resnet_forward.16} parent=0 // pred_check_branch
    %359 = sbr.rel (0) target = $region25
  $region24: #{resnet_forward.16} parent=0 // pred_region
    _
  $region25: #{resnet_forward.16} parent=0 // pred_fallthru
    _

// kernel: resnet_forward.18
$region0: #{resnet_forward.18}
  #allocation0 [shape = 'u32[]', space=smem, size = 0x4, offset = 0x4, fixed_abs, tag = 'smem constant byte address 0x4 - core index']
  #allocation1 [shape = 'u32[144,128]{1,0:T(1,128)}', space=vmem, size = 0x12000, scoped, tag = 'internal scratch']
  #allocation2 [shape = 'f32[32,128]{1,0:T(8,128)}', space=vmem, size = 0x4000, scoped, tag = 'scratch operand']
  %s0 = inlined_call_operand.vmem [shape: bf16[32,1152], index: 0, kind: input, shape index: {}]
  %s1 = inlined_call_operand.vmem [shape: bf16[1152,128], index: 1, kind: input, shape index: {}]
  %s2 = inlined_call_operand.vmem [shape: f32[32,128], index: 2, kind: output, shape index: {}]
  %s3 = sld [smem:[#allocation0]]
  $region75: #{resnet_forward.18} parent=0
    _
  %s5 = ssub.s32 1, %s3
  %s6 = scalar_select 0, %s5, %s3
  $region1: #{resnet_forward.18} parent=0
    #allocation3 [shape = 'u8[49152]{0}', space=vmem, size = 0xc000, scoped, tag = 'input window, operand 0']
    loop: start=0, step=1, limit=5
    $region2: #{resnet_forward.18} parent=1 // loop_pre_header
      _
    $region3: #{resnet_forward.18} parent=1 // loop_header
      %s8 = sphi 0, %s12
      %p9 = scmp.ge.s32.totalorder %s8, 5
      %s15 = sphi 0, %s34
      %s16 = sphi 0, %s30
      %s17 = sphi 0, %s26
      %s18 = sphi 0, %s15
      %s19 = sphi 0, %s16
      %s20 = sphi 0, %s17
      %s21 = sphi 0, %s18
      %s22 = sphi 0, %s19
      %s23 = sphi 0, %s20
      %s39 = sphi 0, %s41
      %s42 = sphi 0, %s39
      %s43 = sphi 0, %s42
      %s59 = sphi 0, %s43
      %s67 = sphi 0, %s69
      %s70 = sphi 0, %s67
      %s71 = sphi 0, %s70
      %s87 = sphi 0, %s71
      %s95 = sphi 0, %s97
      %s98 = sphi 0, %s95
      %s99 = sphi 0, %s98
      %s115 = sphi 0, %s99
    $region4: #{resnet_forward.18} parent=1 // loop_header_branch
      %11 = sbr.rel (%p9) target = $region8
    $region5: #{resnet_forward.18} parent=1 // loop_body
      %s13 = ssub.s32 %s8, 1
      %s14 = ssub.s32 %s8, 2
      %s24 = sadd.s32 1, %s17
      %p25 = scmp.ge.s32.totalorder %s24, 3
      %s26 = scalar_select %p25, 0, %s24
      %s27 = sadd.s32 1, %s16
      %s28 = scalar_select %p25, %s27, %s16
      %p29 = scmp.ge.s32.totalorder %s28, 1
      %s30 = scalar_select %p29, 0, %s28
      %s31 = sadd.s32 1, %s15
      %s32 = scalar_select %p29, %s31, %s15
      %p33 = scmp.ge.s32.totalorder %s32, 1
      %s34 = scalar_select %p33, 0, %s32
      %s35 = ssub.s32 %s15, %s34
      %s36 = ssub.s32 %s17, %s26
      %s37 = sor.u32 %s35, %s36
      %p38 = scmp.eq.s32.totalorder %s37, 0
      %s40 = sadd.s32 %s39, 1
      %s41 = scalar_select %p38, %s39, %s40
      %p44 = pneg %p38
      %p45 = scmp.eq.s32.totalorder %s8, 2
      %p46 = por %p44, %p45
      %p47 = scmp.ne.s32.totalorder %s39, %s42
      %p48 = scmp.eq.s32.totalorder %s8, 0
      %p49 = por %p47, %p48
      %p50 = scmp.ne.s32.totalorder %s39, %s42
      %p51 = scmp.eq.s32.totalorder %s13, 2
      %p52 = por %p50, %p51
      %p53 = scmp.ne.s32.totalorder %s42, %s43
      %p54 = scmp.eq.s32.totalorder %s13, 0
      %p55 = por %p53, %p54
      %p56 = scmp.ne.s32.totalorder %s42, %s43
      %p57 = scmp.eq.s32.totalorder %s14, 2
      %p58 = por %p56, %p57
      %p60 = scmp.ne.s32.totalorder %s43, %s59
      %p61 = scmp.eq.s32.totalorder %s14, 0
      %p62 = por %p60, %p61
      %s63 = ssub.s32 %s17, %s26
      %s64 = ssub.s32 %s16, %s30
      %s65 = sor.u32 %s63, %s64
      %p66 = scmp.eq.s32.totalorder %s65, 0
      %s68 = sadd.s32 %s67, 1
      %s69 = scalar_select %p66, %s67, %s68
      %p72 = pneg %p66
      %p73 = scmp.eq.s32.totalorder %s8, 2
      %p74 = por %p72, %p73
      %p75 = scmp.ne.s32.totalorder %s67, %s70
      %p76 = scmp.eq.s32.totalorder %s8, 0
      %p77 = por %p75, %p76
      %p78 = scmp.ne.s32.totalorder %s67, %s70
      %p79 = scmp.eq.s32.totalorder %s13, 2
      %p80 = por %p78, %p79
      %p81 = scmp.ne.s32.totalorder %s70, %s71
      %p82 = scmp.eq.s32.totalorder %s13, 0
      %p83 = por %p81, %p82
      %p84 = scmp.ne.s32.totalorder %s70, %s71
      %p85 = scmp.eq.s32.totalorder %s14, 2
      %p86 = por %p84, %p85
      %p88 = scmp.ne.s32.totalorder %s71, %s87
      %p89 = scmp.eq.s32.totalorder %s14, 0
      %p90 = por %p88, %p89
      %s91 = ssub.s32 %s15, %s34
      %s92 = ssub.s32 %s16, %s30
      %s93 = sor.u32 %s91, %s92
      %p94 = scmp.eq.s32.totalorder %s93, 0
      %s96 = sadd.s32 %s95, 1
      %s97 = scalar_select %p94, %s95, %s96
      %p100 = pneg %p94
      %p101 = scmp.eq.s32.totalorder %s8, 2
      %p102 = por %p100, %p101
      %p103 = scmp.ne.s32.totalorder %s95, %s98
      %p104 = scmp.eq.s32.totalorder %s8, 0
      %p105 = por %p103, %p104
      %p106 = scmp.ne.s32.totalorder %s95, %s98
      %p107 = scmp.eq.s32.totalorder %s13, 2
      %p108 = por %p106, %p107
      %p109 = scmp.ne.s32.totalorder %s98, %s99
      %p110 = scmp.eq.s32.totalorder %s13, 0
      %p111 = por %p109, %p110
      %p112 = scmp.ne.s32.totalorder %s98, %s99
      %p113 = scmp.eq.s32.totalorder %s14, 2
      %p114 = por %p112, %p113
      %p116 = scmp.ne.s32.totalorder %s99, %s115
      %p117 = scmp.eq.s32.totalorder %s14, 0
      %p118 = por %p116, %p117
      %p119 = scmp.le.s32.totalorder 1, %s8
      %p120 = scmp.lt.s32.totalorder %s8, 4
      %p121 = pnand %p119, %p120
      %p122 = pneg %p121
      // Predicated region
      $region9: #{resnet_forward.18} parent=5 // pred_check
        _
      $region10: #{resnet_forward.18} parent=5 // pred_check_branch
        %124 = sbr.rel (%p121) target = $region12
      $region11: #{resnet_forward.18} parent=5 // pred_region
        %s125 = ssub.s32 %s8, 1
      $region12: #{resnet_forward.18} parent=5 // pred_fallthru
        _
      %p126 = scmp.lt.s32.totalorder %s8, 3
      // Predicated region
      $region13: #{resnet_forward.18} parent=5 // pred_check
        %p127 = pneg %p126
      $region14: #{resnet_forward.18} parent=5 // pred_check_branch
        %129 = sbr.rel (%p127) target = $region16
      $region15: #{resnet_forward.18} parent=5 // pred_region
        // Predicated region
        $region17: #{resnet_forward.18} parent=15 // pred_check
          %p130 = pneg %p49
        $region18: #{resnet_forward.18} parent=15 // pred_check_branch
          %132 = sbr.rel (%p130) target = $region20
        $region19: #{resnet_forward.18} parent=15 // pred_region
          %s133 = sand.u32 %s39, 1
          %s134 = sand.u32 %s39, 1
          %s135 = smul.addr %s134, 48
          %s136 = scalar_lea.vmem [#allocation3], %s135
          %s137 = smul.u32 4, %s15
          %s138 = smul.u32 3, %s17
          %s139 = smul.addr %s137, 9
          %s140 = sadd.s32 %s138, %s139
          %s141 = smul.addr %s140, 4
          %s142 = scalar_lea.vmem %s0, %s141
          // Predicated region
          $region21: #{resnet_forward.18} parent=19 // pred_check
            _
          $region22: #{resnet_forward.18} parent=19 // pred_check_branch
            %144 = sbr.rel (0) target = $region24
          $region23: #{resnet_forward.18} parent=19 // pred_region
            // Predicated region
            $region25: #{resnet_forward.18} parent=23 // pred_check
              _
            $region26: #{resnet_forward.18} parent=23 // pred_check_branch
              %146 = sbr.rel (0) target = $region28
            $region27: #{resnet_forward.18} parent=23 // pred_region
              %s147 = scalar_lea.vmem %s142, 8
              %s148 = scalar_lea.vmem %s136, 8 [#allocation3]
              loop: start=0, step=1, limit=1
              $region29: #{resnet_forward.18} parent=27 // loop_pre_header
                _
              $region30: #{resnet_forward.18} parent=27 // loop_header
                %s150 = sphi 0, %s154
                %p151 = scmp.ge.s32.totalorder %s150, 1
                %s155 = sphi %s142, %s142
                %s156 = sphi %s136, %s136
              $region31: #{resnet_forward.18} parent=27 // loop_header_branch
                %153 = sbr.rel (%p151) target = $region35
              $region32: #{resnet_forward.18} parent=27 // loop_body
                %v157 = vld [vmem:[%s155] sm:$0xff]
                %158 = vst [vmem:[%s156] sm:$0xff] %v157
                %v159 = vld [vmem:[%s155 + $0x24] sm:$0xff]
                %160 = vst [vmem:[%s156 + $0xc] sm:$0xff] %v159
                %v161 = vld [vmem:[%s155 + $0x48] sm:$0xff]
                %162 = vst [vmem:[%s156 + $0x18] sm:$0xff] %v161
                %v163 = vld [vmem:[%s155 + $0x6c] sm:$0xff]
                %164 = vst [vmem:[%s156 + $0x24] sm:$0xff] %v163
              $region33: #{resnet_forward.18} parent=27 // loop_footer
                %s154 = sadd.s32 1, %s150
              $region34: #{resnet_forward.18} parent=27 // loop_footer_branch
                %149 = sbr.rel target = $region30
              $region35: #{resnet_forward.18} parent=27 // loop_exit
                _
              loop: start=0, step=1, limit=1
              $region36: #{resnet_forward.18} parent=27 // loop_pre_header
                _
              $region37: #{resnet_forward.18} parent=27 // loop_header
                %s167 = sphi 0, %s171
                %p168 = scmp.ge.s32.totalorder %s167, 1
                %s172 = sphi %s147, %s147
                %s173 = sphi %s148, %s148
              $region38: #{resnet_forward.18} parent=27 // loop_header_branch
                %170 = sbr.rel (%p168) target = $region42
              $region39: #{resnet_forward.18} parent=27 // loop_body
                %v174 = vld [vmem:[%s172] sm:$0xf]
                %175 = vst [vmem:[%s173] sm:$0xf] %v174
                %v176 = vld [vmem:[%s172 + $0x24] sm:$0xf]
                %177 = vst [vmem:[%s173 + $0xc] sm:$0xf] %v176
                %v178 = vld [vmem:[%s172 + $0x48] sm:$0xf]
                %179 = vst [vmem:[%s173 + $0x18] sm:$0xf] %v178
                %v180 = vld [vmem:[%s172 + $0x6c] sm:$0xf]
                %181 = vst [vmem:[%s173 + $0x24] sm:$0xf] %v180
              $region40: #{resnet_forward.18} parent=27 // loop_footer
                %s171 = sadd.s32 1, %s167
              $region41: #{resnet_forward.18} parent=27 // loop_footer_branch
                %166 = sbr.rel target = $region37
              $region42: #{resnet_forward.18} parent=27 // loop_exit
                _
            $region28: #{resnet_forward.18} parent=23 // pred_fallthru
              _
          $region24: #{resnet_forward.18} parent=19 // pred_fallthru
            _
          %182 = vnop
        $region20: #{resnet_forward.18} parent=15 // pred_fallthru
          _
        // Predicated region
        $region43: #{resnet_forward.18} parent=15 // pred_check
          %p183 = pneg %p77
        $region44: #{resnet_forward.18} parent=15 // pred_check_branch
          %185 = sbr.rel (%p183) target = $region46
        $region45: #{resnet_forward.18} parent=15 // pred_region
          %s186 = smul.u32 48, %s17
          %p187 = scmp.lt.s32.totalorder %s186, 143
          %s188 = scalar_select %p187, %s186, 143
          %p189 = scmp.lt.s32.totalorder %s16, 0
          %s190 = scalar_select %p189, %s16, 0
          %s191 = sadd.s32 %s190, %s188
          %s192 = smul.addr %s191, 4
          %s193 = scalar_lea.vmem %s1, %s192
          %s194 = smul.u32 48, %s17
        $region46: #{resnet_forward.18} parent=15 // pred_fallthru
          _
      $region16: #{resnet_forward.18} parent=5 // pred_fallthru
        _
      %p195 = scmp.le.s32.totalorder 1, %s8
      %p196 = scmp.lt.s32.totalorder %s8, 4
      %p197 = pnand %p195, %p196
      %p198 = pneg %p197
      // Predicated region
      $region47: #{resnet_forward.18} parent=5 // pred_check
        _
      $region48: #{resnet_forward.18} parent=5 // pred_check_branch
        %200 = sbr.rel (%p197) target = $region50
      $region49: #{resnet_forward.18} parent=5 // pred_region
        %s201 = ssub.s32 %s8, 1
        %s202 = sand.u32 %s42, 1
        %s203 = sand.u32 %s42, 1
        %s204 = smul.addr %s203, 48
        %s205 = scalar_lea.vmem [#allocation3], %s204
        // Predicated region
        $region51: #{resnet_forward.18} parent=49 // pred_check
          %p206 = pneg %p55
        $region52: #{resnet_forward.18} parent=49 // pred_check_branch
          %208 = sbr.rel (%p206) target = $region54
        $region53: #{resnet_forward.18} parent=49 // pred_region
          _
        $region54: #{resnet_forward.18} parent=49 // pred_fallthru
          _
        %s209 = sand.u32 %s42, 1
        %s210 = sand.u32 %s42, 1
        %s211 = smul.addr %s210, 48
        %s212 = scalar_lea.vmem [#allocation3], %s211
        %p213 = pneg %p55
        %p214 = pneg %p52
        %s215 = smul.u32 48, %s20
        %p216 = scmp.lt.s32.totalorder %s215, 143
        %s217 = scalar_select %p216, %s215, 143
        %p218 = scmp.lt.s32.totalorder %s19, 0
        %s219 = scalar_select %p218, %s19, 0
        %s220 = sadd.s32 %s219, %s217
        %s221 = smul.addr %s220, 4
        %s222 = scalar_lea.vmem %s1, %s221
        %p223 = pneg %p83
        %p224 = pneg %p80
        %p225 = pneg %p111
        %p226 = pneg %p108
        %s227 = smul.u32 4, %s18
        %p228 = scmp.lt.s32.totalorder %s227, 3
        %s229 = scalar_select %p228, %s227, 3
        %p230 = scmp.lt.s32.totalorder %s19, 0
        %s231 = scalar_select %p230, %s19, 0
        %s232 = sadd.s32 %s231, %s229
        %s233 = smul.addr %s232, 8
        %s234 = scalar_lea.vmem %s2, %s233
        %s235 = smul.u32 4, %s18
        %s236 = smul.u32 3, %s20
        %s237 = smul.u32 48, %s20
        %p238 = scmp.lt.s32.totalorder %s237, 143
        %s239 = scalar_select %p238, %s237, 143
        %p240 = scmp.lt.s32.totalorder %s19, 0
        %s241 = scalar_select %p240, %s19, 0
        %s242 = sadd.s32 %s241, %s239
        %s243 = smul.addr %s242, 4
        %s244 = scalar_lea.vmem %s1, %s243
        %s245 = smul.u32 48, %s20
        %s246 = smul.u32 4, %s18
        %p247 = scmp.lt.s32.totalorder %s246, 3
        %s248 = scalar_select %p247, %s246, 3
        %p249 = scmp.lt.s32.totalorder %s19, 0
        %s250 = scalar_select %p249, %s19, 0
        %s251 = sadd.s32 %s250, %s248
        %s252 = smul.addr %s251, 8
        %s253 = scalar_lea.vmem %s2, %s252
        %s254 = smul.u32 4, %s18
        %p256 = scmp.eq.s32.totalorder %s20, 0
        // Predicated region
        $region55: #{resnet_forward.18} parent=49 // pred_check
          %p257 = pneg %p256
        $region56: #{resnet_forward.18} parent=49 // pred_check_branch
          %259 = sbr.rel (%p257) target = $region58
        $region57: #{resnet_forward.18} parent=49 // pred_region
          %260 = vst [vmem:[#allocation2] sm:$0xff] 0.0
          %261 = vst [vmem:[#allocation2 + $0x8] sm:$0xff] 0.0
          %262 = vst [vmem:[#allocation2 + $0x10] sm:$0xff] 0.0
          %263 = vst [vmem:[#allocation2 + $0x18] sm:$0xff] 0.0
        $region58: #{resnet_forward.18} parent=49 // pred_fallthru
          _
        %v264 = vld [vmem:[#allocation2] sm:$0xff]
        %v265 = vld [vmem:[#allocation2 + $0x8] sm:$0xff]
        %v266 = vld [vmem:[#allocation2 + $0x10] sm:$0xff]
        %v267 = vld [vmem:[#allocation2 + $0x18] sm:$0xff]
        %v268 = vld [vmem:[%s205] sm:$0xff]
        %v269 = vld [vmem:[%s205 + $0x8] sm:$0xf]
        %v270 = vld [vmem:[%s205 + $0xc] sm:$0xff]
        %v271 = vld [vmem:[%s205 + $0x14] sm:$0xf]
        %v272 = vld [vmem:[%s205 + $0x18] sm:$0xff]
        %v273 = vld [vmem:[%s205 + $0x20] sm:$0xf]
        %v274 = vld [vmem:[%s205 + $0x24] sm:$0xff]
        %v275 = vld [vmem:[%s205 + $0x2c] sm:$0xf]
        %v276 = vld [vmem:[%s244] sm:$0xf]
        %v277 = vld [vmem:[%s244 + $0x4] sm:$0xf]
        %v278 = vld [vmem:[%s244 + $0x8] sm:$0xf]
        %v279 = vld [vmem:[%s244 + $0xc] sm:$0xf]
        %v280 = vld [vmem:[%s244 + $0x10] sm:$0xf]
        %v281 = vld [vmem:[%s244 + $0x14] sm:$0xf]
        %v282 = vld [vmem:[%s244 + $0x18] sm:$0xf]
        %v283 = vld [vmem:[%s244 + $0x1c] sm:$0xf]
        %v284 = vld [vmem:[%s244 + $0x20] sm:$0xf]
        %v285 = vld [vmem:[%s244 + $0x24] sm:$0xf]
        %v286 = vld [vmem:[%s244 + $0x28] sm:$0xf]
        %v287 = vld [vmem:[%s244 + $0x2c] sm:$0xf]
        %v288 = vld [vmem:[%s244 + $0x30] sm:$0xf]
        %v289 = vld [vmem:[%s244 + $0x34] sm:$0xf]
        %v290 = vld [vmem:[%s244 + $0x38] sm:$0xf]
        %v291 = vld [vmem:[%s244 + $0x3c] sm:$0xf]
        %v292 = vld [vmem:[%s244 + $0x40] sm:$0xf]
        %v293 = vld [vmem:[%s244 + $0x44] sm:$0xf]
        %v294 = vld [vmem:[%s244 + $0x48] sm:$0xf]
        %v295 = vld [vmem:[%s244 + $0x4c] sm:$0xf]
        %v296 = vld [vmem:[%s244 + $0x50] sm:$0xf]
        %v297 = vld [vmem:[%s244 + $0x54] sm:$0xf]
        %v298 = vld [vmem:[%s244 + $0x58] sm:$0xf]
        %v299 = vld [vmem:[%s244 + $0x5c] sm:$0xf]
        %v300 = vld [vmem:[%s244 + $0x60] sm:$0xf]
        %v301 = vld [vmem:[%s244 + $0x64] sm:$0xf]
        %v302 = vld [vmem:[%s244 + $0x68] sm:$0xf]
        %v303 = vld [vmem:[%s244 + $0x6c] sm:$0xf]
        %v304 = vld [vmem:[%s244 + $0x70] sm:$0xf]
        %v305 = vld [vmem:[%s244 + $0x74] sm:$0xf]
        %v306 = vld [vmem:[%s244 + $0x78] sm:$0xf]
        %v307 = vld [vmem:[%s244 + $0x7c] sm:$0xf]
        %v308 = vld [vmem:[%s244 + $0x80] sm:$0xf]
        %v309 = vld [vmem:[%s244 + $0x84] sm:$0xf]
        %v310 = vld [vmem:[%s244 + $0x88] sm:$0xf]
        %v311 = vld [vmem:[%s244 + $0x8c] sm:$0xf]
        %v312 = vld [vmem:[%s244 + $0x90] sm:$0xf]
        %v313 = vld [vmem:[%s244 + $0x94] sm:$0xf]
        %v314 = vld [vmem:[%s244 + $0x98] sm:$0xf]
        %v315 = vld [vmem:[%s244 + $0x9c] sm:$0xf]
        %v316 = vld [vmem:[%s244 + $0xa0] sm:$0xf]
        %v317 = vld [vmem:[%s244 + $0xa4] sm:$0xf]
        %v318 = vld [vmem:[%s244 + $0xa8] sm:$0xf]
        %v319 = vld [vmem:[%s244 + $0xac] sm:$0xf]
        %v320 = vld [vmem:[%s244 + $0xb0] sm:$0xf]
        %v321 = vld [vmem:[%s244 + $0xb4] sm:$0xf]
        %v322 = vld [vmem:[%s244 + $0xb8] sm:$0xf]
        %v323 = vld [vmem:[%s244 + $0xbc] sm:$0xf]
        %v332 = vunpack.c.l.b16 %v268
        %v333 = vunpack.c.h.b16 %v268
        %v334 = vunpack.c.l.b16 %v269
        %v335 = vunpack.c.l.b16 %v270
        %v336 = vunpack.c.h.b16 %v270
        %v337 = vunpack.c.l.b16 %v271
        %v338 = vunpack.c.l.b16 %v272
        %v339 = vunpack.c.h.b16 %v272
        %v340 = vunpack.c.l.b16 %v273
        %v341 = vunpack.c.l.b16 %v274
        %v342 = vunpack.c.h.b16 %v274
        %v343 = vunpack.c.l.b16 %v275
        %v344 = vpack.c.b16 %v335, %v332
        %v345 = vpack.c.b16 %v336, %v333
        %v346 = vpack.c.b16 %v337, %v334
        %v347 = vpack.c.b16 %v341, %v338
        %v348 = vpack.c.b16 %v342, %v339
        %v349 = vpack.c.b16 %v343, %v340
        %v404 = vunpack.c.l.b16 %v276
        %v405 = vunpack.c.l.b16 %v277
        %v406 = vunpack.c.l.b16 %v278
        %v407 = vunpack.c.l.b16 %v279
        %v408 = vunpack.c.l.b16 %v280
        %v409 = vunpack.c.l.b16 %v281
        %v410 = vunpack.c.l.b16 %v282
        %v411 = vunpack.c.l.b16 %v283
        %v412 = vunpack.c.l.b16 %v284
        %v413 = vunpack.c.l.b16 %v285
        %v414 = vunpack.c.l.b16 %v286
        %v415 = vunpack.c.l.b16 %v287
        %v416 = vunpack.c.l.b16 %v288
        %v417 = vunpack.c.l.b16 %v289
        %v418 = vunpack.c.l.b16 %v290
        %v419 = vunpack.c.l.b16 %v291
        %v420 = vunpack.c.l.b16 %v292
        %v421 = vunpack.c.l.b16 %v293
        %v422 = vunpack.c.l.b16 %v294
        %v423 = vunpack.c.l.b16 %v295
        %v424 = vunpack.c.l.b16 %v296
        %v425 = vunpack.c.l.b16 %v297
        %v426 = vunpack.c.l.b16 %v298
        %v427 = vunpack.c.l.b16 %v299
        %v428 = vunpack.c.l.b16 %v300
        %v429 = vunpack.c.l.b16 %v301
        %v430 = vunpack.c.l.b16 %v302
        %v431 = vunpack.c.l.b16 %v303
        %v432 = vunpack.c.l.b16 %v304
        %v433 = vunpack.c.l.b16 %v305
        %v434 = vunpack.c.l.b16 %v306
        %v435 = vunpack.c.l.b16 %v307
        %v436 = vunpack.c.l.b16 %v308
        %v437 = vunpack.c.l.b16 %v309
        %v438 = vunpack.c.l.b16 %v310
        %v439 = vunpack.c.l.b16 %v311
        %v440 = vunpack.c.l.b16 %v312
        %v441 = vunpack.c.l.b16 %v313
        %v442 = vunpack.c.l.b16 %v314
        %v443 = vunpack.c.l.b16 %v315
        %v444 = vunpack.c.l.b16 %v316
        %v445 = vunpack.c.l.b16 %v317
        %v446 = vunpack.c.l.b16 %v318
        %v447 = vunpack.c.l.b16 %v319
        %v448 = vunpack.c.l.b16 %v320
        %v449 = vunpack.c.l.b16 %v321
        %v450 = vunpack.c.l.b16 %v322
        %v451 = vunpack.c.l.b16 %v323
        %v452 = vpack.c.b16 %v405, %v404
        %v453 = vpack.c.b16 %v407, %v406
        %v454 = vpack.c.b16 %v409, %v408
        %v455 = vpack.c.b16 %v411, %v410
        %v456 = vpack.c.b16 %v413, %v412
        %v457 = vpack.c.b16 %v415, %v414
        %v458 = vpack.c.b16 %v417, %v416
        %v459 = vpack.c.b16 %v419, %v418
        %v460 = vpack.c.b16 %v421, %v420
        %v461 = vpack.c.b16 %v423, %v422
        %v462 = vpack.c.b16 %v425, %v424
        %v463 = vpack.c.b16 %v427, %v426
        %v464 = vpack.c.b16 %v429, %v428
        %v465 = vpack.c.b16 %v431, %v430
        %v466 = vpack.c.b16 %v433, %v432
        %v467 = vpack.c.b16 %v435, %v434
        %v468 = vpack.c.b16 %v437, %v436
        %v469 = vpack.c.b16 %v439, %v438
        %v470 = vpack.c.b16 %v441, %v440
        %v471 = vpack.c.b16 %v443, %v442
        %v472 = vpack.c.b16 %v445, %v444
        %v473 = vpack.c.b16 %v447, %v446
        %v474 = vpack.c.b16 %v449, %v448
        %v475 = vpack.c.b16 %v451, %v450
        %500 = vmatprep.subr.bf16.mxu0 0
        %501 = vmatpush1.bf16.msra.mxu0 %v452
        %502 = vmatprep.subr.bf16.mxu0 0
        %503 = vmatpush1.bf16.msra.mxu0 %v453
        %504 = vmatprep.subr.bf16.mxu0 0
        %505 = vmatpush1.bf16.msra.mxu0 %v454
        %506 = vmatprep.subr.bf16.mxu0 0
        %507 = vmatpush1.bf16.msra.mxu0 %v455
        %508 = vmatprep.subr.bf16.mxu0 0
        %509 = vmatpush1.bf16.msra.mxu0 %v456
        %510 = vmatprep.subr.bf16.mxu0 0
        %511 = vmatpush1.bf16.msra.mxu0 %v457
        %512 = vmatprep.subr.bf16.mxu0 0
        %513 = vmatpush1.bf16.msra.mxu0 %v458
        %514 = vmatprep.subr.bf16.mxu0 0
        %515 = vmatpush1.bf16.msra.mxu0 %v459
        %516 = vmatprep.subr.bf16.mxu0 0
        %517 = vmatpush1.bf16.msra.mxu0 %v460
        %518 = vmatprep.subr.bf16.mxu0 0
        %519 = vmatpush1.bf16.msra.mxu0 %v461
        %520 = vmatprep.subr.bf16.mxu0 0
        %521 = vmatpush1.bf16.msra.mxu0 %v462
        %522 = vmatprep.subr.bf16.mxu0 0
        %523 = vmatpush1.bf16.msra.mxu0 %v463
        %524 = vmatprep.subr.bf16.mxu0 0
        %525 = vmatpush1.bf16.msra.mxu0 %v464
        %526 = vmatprep.subr.bf16.mxu0 0
        %527 = vmatpush1.bf16.msra.mxu0 %v465
        %528 = vmatprep.subr.bf16.mxu0 0
        %529 = vmatpush1.bf16.msra.mxu0 %v466
        %530 = vmatprep.subr.bf16.mxu0 0
        %531 = vmatpush1.bf16.msra.mxu0 %v467
        %532 = vmatprep.mubr.bf16.mxu0 %v345
        %533 = vmatmul.mubr.bf16.gmra.mrb[0].mxu0 %v344
        %v534 = vpop.f32.mrb[0].mxu0
        %v535 = vadd.f32 0.0, %v534
        %v536 = vpop.f32.mrb[0].mxu0
        %v537 = vpop.f32.mrb[0].mxu0
        %v538 = vadd.f32 0.0, %v537
        %v539 = vpop.f32.mrb[0].mxu0
        %540 = vmatprep.mubr.bf16.mxu0 %v348
        %541 = vmatmul.mubr.bf16.gmra.mrb[0].mxu0 %v347
        %v542 = vpop.f32.mrb[0].mxu0
        %v543 = vadd.f32 0.0, %v542
        %v544 = vpop.f32.mrb[0].mxu0
        %v545 = vpop.f32.mrb[0].mxu0
        %v546 = vadd.f32 0.0, %v545
        %v547 = vpop.f32.mrb[0].mxu0
        %548 = vdwg.mxu0
        %549 = vmatprep.subr.bf16.mxu0 0
        %550 = vmatpush1.bf16.msra.mxu0 %v468
        %551 = vmatprep.subr.bf16.mxu0 0
        %552 = vmatpush1.bf16.msra.mxu0 %v469
        %553 = vmatprep.subr.bf16.mxu0 0
        %554 = vmatpush1.bf16.msra.mxu0 %v470
        %555 = vmatprep.subr.bf16.mxu0 0
        %556 = vmatpush1.bf16.msra.mxu0 %v471
        %557 = vmatprep.subr.bf16.mxu0 0
        %558 = vmatpush1.bf16.msra.mxu0 %v472
        %559 = vmatprep.subr.bf16.mxu0 0
        %560 = vmatpush1.bf16.msra.mxu0 %v473
        %561 = vmatprep.subr.bf16.mxu0 0
        %562 = vmatpush1.bf16.msra.mxu0 %v474
        %563 = vmatprep.subr.bf16.mxu0 0
        %564 = vmatpush1.bf16.msra.mxu0 %v475
        %565 = vmatprep.subr.bf16.mxu0 0
        %566 = vmatpush1.bf16.msra.mxu0 0
        %567 = vmatprep.subr.bf16.mxu0 0
        %568 = vmatpush1.bf16.msra.mxu0 0
        %569 = vmatprep.subr.bf16.mxu0 0
        %570 = vmatpush1.bf16.msra.mxu0 0
        %571 = vmatprep.subr.bf16.mxu0 0
        %572 = vmatpush1.bf16.msra.mxu0 0
        %573 = vmatprep.subr.bf16.mxu0 0
        %574 = vmatpush1.bf16.msra.mxu0 0
        %575 = vmatprep.subr.bf16.mxu0 0
        %576 = vmatpush1.bf16.msra.mxu0 0
        %577 = vmatprep.subr.bf16.mxu0 0
        %578 = vmatpush1.bf16.msra.mxu0 0
        %579 = vmatprep.subr.bf16.mxu0 0
        %580 = vmatpush1.bf16.msra.mxu0 0
        %581 = vmatprep.mubr.bf16.mxu0 0
        %582 = vmatmul.mubr.bf16.gmra.mrb[0].mxu0 %v346
        %v583 = vpop.f32.mrb[0].mxu0
        %v584 = vadd.f32 %v535, %v583
        %v585 = vpop.f32.mrb[0].mxu0
        %v586 = vpop.f32.mrb[0].mxu0
        %v587 = vadd.f32 %v538, %v586
        %v588 = vpop.f32.mrb[0].mxu0
        %589 = vmatprep.mubr.bf16.mxu0 0
        %590 = vmatmul.mubr.bf16.gmra.mrb[0].mxu0 %v349
        %v591 = vpop.f32.mrb[0].mxu0
        %v592 = vadd.f32 %v543, %v591
        %v593 = vpop.f32.mrb[0].mxu0
        %v594 = vpop.f32.mrb[0].mxu0
        %v595 = vadd.f32 %v546, %v594
        %v596 = vpop.f32.mrb[0].mxu0
        %597 = vdwg.mxu0
        %v598 = vadd.f32 %v264, %v584
        %v599 = vadd.f32 %v265, %v587
        %v600 = vadd.f32 %v266, %v592
        %v601 = vadd.f32 %v267, %v595
        %602 = vst [vmem:[#allocation2] sm:$0xff] %v598
        %603 = vst [vmem:[#allocation2 + $0x8] sm:$0xff] %v599
        %604 = vst [vmem:[#allocation2 + $0x10] sm:$0xff] %v600
        %605 = vst [vmem:[#allocation2 + $0x18] sm:$0xff] %v601
        %p606 = scmp.eq.s32.totalorder %s20, 2
        // Predicated region
        $region59: #{resnet_forward.18} parent=49 // pred_check
          %p607 = pneg %p606
        $region60: #{resnet_forward.18} parent=49 // pred_check_branch
          %609 = sbr.rel (%p607) target = $region62
        $region61: #{resnet_forward.18} parent=49 // pred_region
          %v610 = vld [vmem:[#allocation2] sm:$0xff]
          %v611 = vld [vmem:[#allocation2 + $0x8] sm:$0xff]
          %v612 = vld [vmem:[#allocation2 + $0x10] sm:$0xff]
          %v613 = vld [vmem:[#allocation2 + $0x18] sm:$0xff]
          %v614 = vmax.f32 %v610, 0.0
          %v615 = vmax.f32 %v611, 0.0
          %v616 = vmax.f32 %v612, 0.0
          %v617 = vmax.f32 %v613, 0.0
          %618 = vst [vmem:[%s253] sm:$0xff] %v614
          %619 = vst [vmem:[%s253 + $0x8] sm:$0xff] %v615
          %620 = vst [vmem:[%s253 + $0x10] sm:$0xff] %v616
          %621 = vst [vmem:[%s253 + $0x18] sm:$0xff] %v617
        $region62: #{resnet_forward.18} parent=49 // pred_fallthru
          _
        %s622 = smul.u32 4, %s18
        %p623 = scmp.lt.s32.totalorder %s622, 3
        %s624 = scalar_select %p623, %s622, 3
        %p625 = scmp.lt.s32.totalorder %s19, 0
        %s626 = scalar_select %p625, %s19, 0
        %s627 = sadd.s32 %s626, %s624
        %s628 = smul.addr %s627, 8
        %s629 = scalar_lea.vmem %s2, %s628
        // Predicated region
        $region63: #{resnet_forward.18} parent=49 // pred_check
          %p630 = pneg %p108
        $region64: #{resnet_forward.18} parent=49 // pred_check_branch
          %632 = sbr.rel (%p630) target = $region66
        $region65: #{resnet_forward.18} parent=49 // pred_region
          %s633 = smul.u32 4, %s18
        $region66: #{resnet_forward.18} parent=49 // pred_fallthru
          _
        // Predicated region
        $region67: #{resnet_forward.18} parent=49 // pred_check
          %p634 = pneg %p108
        $region68: #{resnet_forward.18} parent=49 // pred_check_branch
          %636 = sbr.rel (%p634) target = $region70
        $region69: #{resnet_forward.18} parent=49 // pred_region
          %s637 = smul.u32 4, %s18
          %p638 = scmp.lt.s32.totalorder %s637, 3
          %s639 = scalar_select %p638, %s637, 3
          %p640 = scmp.lt.s32.totalorder %s19, 0
          %s641 = scalar_select %p640, %s19, 0
          %s642 = sadd.s32 %s641, %s639
          %s643 = smul.addr %s642, 8
          %s644 = scalar_lea.vmem %s2, %s643
        $region70: #{resnet_forward.18} parent=49 // pred_fallthru
          _
      $region50: #{resnet_forward.18} parent=5 // pred_fallthru
        _
      %p645 = scmp.le.s32.totalorder 2, %s8
      // Predicated region
      $region71: #{resnet_forward.18} parent=5 // pred_check
        %p646 = pneg %p645
      $region72: #{resnet_forward.18} parent=5 // pred_check_branch
        %648 = sbr.rel (%p646) target = $region74
      $region73: #{resnet_forward.18} parent=5 // pred_region
        %s649 = ssub.s32 %s8, 2
      $region74: #{resnet_forward.18} parent=5 // pred_fallthru
        _
    $region6: #{resnet_forward.18} parent=1 // loop_footer
      %s12 = sadd.s32 1, %s8
    $region7: #{resnet_forward.18} parent=1 // loop_footer_branch
      %7 = sbr.rel target = $region3
    $region8: #{resnet_forward.18} parent=1 // loop_exit
      _

// kernel: resnet_forward.19
$region0: #{resnet_forward.19}
  #allocation0 [shape = 'u32[]', space=smem, size = 0x4, offset = 0x4, fixed_abs, tag = 'smem constant byte address 0x4 - core index']
  #allocation1 [shape = 'u32[144,128]{1,0:T(1,128)}', space=vmem, size = 0x12000, scoped, tag = 'internal scratch']
  #allocation2 [shape = 'f32[32,128]{1,0:T(8,128)}', space=vmem, size = 0x4000, scoped, tag = 'scratch operand']
  %s0 = inlined_call_operand.vmem [shape: bf16[32,1152], index: 0, kind: input, shape index: {}]
  %s1 = inlined_call_operand.vmem [shape: bf16[1152,128], index: 1, kind: input, shape index: {}]
  %s2 = inlined_call_operand.vmem [shape: f32[32,128], index: 2, kind: input, shape index: {}]
  %s3 = inlined_call_operand.vmem [shape: f32[32,128], index: 3, kind: output, shape index: {}]
  %s4 = sld [smem:[#allocation0]]
  $region79: #{resnet_forward.19} parent=0
    _
  %s6 = ssub.s32 1, %s4
  %s7 = scalar_select 0, %s6, %s4
  $region1: #{resnet_forward.19} parent=0
    #allocation3 [shape = 'u8[49152]{0}', space=vmem, size = 0xc000, scoped, tag = 'input window, operand 0']
    loop: start=0, step=1, limit=5
    $region2: #{resnet_forward.19} parent=1 // loop_pre_header
      _
    $region3: #{resnet_forward.19} parent=1 // loop_header
      %s9 = sphi 0, %s13
      %p10 = scmp.ge.s32.totalorder %s9, 5
      %s16 = sphi 0, %s35
      %s17 = sphi 0, %s31
      %s18 = sphi 0, %s27
      %s19 = sphi 0, %s16
      %s20 = sphi 0, %s17
      %s21 = sphi 0, %s18
      %s22 = sphi 0, %s19
      %s23 = sphi 0, %s20
      %s24 = sphi 0, %s21
      %s40 = sphi 0, %s42
      %s43 = sphi 0, %s40
      %s44 = sphi 0, %s43
      %s60 = sphi 0, %s44
      %s68 = sphi 0, %s70
      %s71 = sphi 0, %s68
      %s72 = sphi 0, %s71
      %s88 = sphi 0, %s72
      %s96 = sphi 0, %s98
      %s99 = sphi 0, %s96
      %s100 = sphi 0, %s99
      %s116 = sphi 0, %s100
      %s124 = sphi 0, %s126
      %s127 = sphi 0, %s124
      %s128 = sphi 0, %s127
      %s144 = sphi 0, %s128
    $region4: #{resnet_forward.19} parent=1 // loop_header_branch
      %12 = sbr.rel (%p10) target = $region8
    $region5: #{resnet_forward.19} parent=1 // loop_body
      %s14 = ssub.s32 %s9, 1
      %s15 = ssub.s32 %s9, 2
      %s25 = sadd.s32 1, %s18
      %p26 = scmp.ge.s32.totalorder %s25, 3
      %s27 = scalar_select %p26, 0, %s25
      %s28 = sadd.s32 1, %s17
      %s29 = scalar_select %p26, %s28, %s17
      %p30 = scmp.ge.s32.totalorder %s29, 1
      %s31 = scalar_select %p30, 0, %s29
      %s32 = sadd.s32 1, %s16
      %s33 = scalar_select %p30, %s32, %s16
      %p34 = scmp.ge.s32.totalorder %s33, 1
      %s35 = scalar_select %p34, 0, %s33
      %s36 = ssub.s32 %s16, %s35
      %s37 = ssub.s32 %s18, %s27
      %s38 = sor.u32 %s36, %s37
      %p39 = scmp.eq.s32.totalorder %s38, 0
      %s41 = sadd.s32 %s40, 1
      %s42 = scalar_select %p39, %s40, %s41
      %p45 = pneg %p39
      %p46 = scmp.eq.s32.totalorder %s9, 2
      %p47 = por %p45, %p46
      %p48 = scmp.ne.s32.totalorder %s40, %s43
      %p49 = scmp.eq.s32.totalorder %s9, 0
      %p50 = por %p48, %p49
      %p51 = scmp.ne.s32.totalorder %s40, %s43
      %p52 = scmp.eq.s32.totalorder %s14, 2
      %p53 = por %p51, %p52
      %p54 = scmp.ne.s32.totalorder %s43, %s44
      %p55 = scmp.eq.s32.totalorder %s14, 0
      %p56 = por %p54, %p55
      %p57 = scmp.ne.s32.totalorder %s43, %s44
      %p58 = scmp.eq.s32.totalorder %s15, 2
      %p59 = por %p57, %p58
      %p61 = scmp.ne.s32.totalorder %s44, %s60
      %p62 = scmp.eq.s32.totalorder %s15, 0
      %p63 = por %p61, %p62
      %s64 = ssub.s32 %s18, %s27
      %s65 = ssub.s32 %s17, %s31
      %s66 = sor.u32 %s64, %s65
      %p67 = scmp.eq.s32.totalorder %s66, 0
      %s69 = sadd.s32 %s68, 1
      %s70 = scalar_select %p67, %s68, %s69
      %p73 = pneg %p67
      %p74 = scmp.eq.s32.totalorder %s9, 2
      %p75 = por %p73, %p74
      %p76 = scmp.ne.s32.totalorder %s68, %s71
      %p77 = scmp.eq.s32.totalorder %s9, 0
      %p78 = por %p76, %p77
      %p79 = scmp.ne.s32.totalorder %s68, %s71
      %p80 = scmp.eq.s32.totalorder %s14, 2
      %p81 = por %p79, %p80
      %p82 = scmp.ne.s32.totalorder %s71, %s72
      %p83 = scmp.eq.s32.totalorder %s14, 0
      %p84 = por %p82, %p83
      %p85 = scmp.ne.s32.totalorder %s71, %s72
      %p86 = scmp.eq.s32.totalorder %s15, 2
      %p87 = por %p85, %p86
      %p89 = scmp.ne.s32.totalorder %s72, %s88
      %p90 = scmp.eq.s32.totalorder %s15, 0
      %p91 = por %p89, %p90
      %s92 = ssub.s32 %s16, %s35
      %s93 = ssub.s32 %s17, %s31
      %s94 = sor.u32 %s92, %s93
      %p95 = scmp.eq.s32.totalorder %s94, 0
      %s97 = sadd.s32 %s96, 1
      %s98 = scalar_select %p95, %s96, %s97
      %p101 = pneg %p95
      %p102 = scmp.eq.s32.totalorder %s9, 2
      %p103 = por %p101, %p102
      %p104 = scmp.ne.s32.totalorder %s96, %s99
      %p105 = scmp.eq.s32.totalorder %s9, 0
      %p106 = por %p104, %p105
      %p107 = scmp.ne.s32.totalorder %s96, %s99
      %p108 = scmp.eq.s32.totalorder %s14, 2
      %p109 = por %p107, %p108
      %p110 = scmp.ne.s32.totalorder %s99, %s100
      %p111 = scmp.eq.s32.totalorder %s14, 0
      %p112 = por %p110, %p111
      %p113 = scmp.ne.s32.totalorder %s99, %s100
      %p114 = scmp.eq.s32.totalorder %s15, 2
      %p115 = por %p113, %p114
      %p117 = scmp.ne.s32.totalorder %s100, %s116
      %p118 = scmp.eq.s32.totalorder %s15, 0
      %p119 = por %p117, %p118
      %s120 = ssub.s32 %s16, %s35
      %s121 = ssub.s32 %s17, %s31
      %s122 = sor.u32 %s120, %s121
      %p123 = scmp.eq.s32.totalorder %s122, 0
      %s125 = sadd.s32 %s124, 1
      %s126 = scalar_select %p123, %s124, %s125
      %p129 = pneg %p123
      %p130 = scmp.eq.s32.totalorder %s9, 2
      %p131 = por %p129, %p130
      %p132 = scmp.ne.s32.totalorder %s124, %s127
      %p133 = scmp.eq.s32.totalorder %s9, 0
      %p134 = por %p132, %p133
      %p135 = scmp.ne.s32.totalorder %s124, %s127
      %p136 = scmp.eq.s32.totalorder %s14, 2
      %p137 = por %p135, %p136
      %p138 = scmp.ne.s32.totalorder %s127, %s128
      %p139 = scmp.eq.s32.totalorder %s14, 0
      %p140 = por %p138, %p139
      %p141 = scmp.ne.s32.totalorder %s127, %s128
      %p142 = scmp.eq.s32.totalorder %s15, 2
      %p143 = por %p141, %p142
      %p145 = scmp.ne.s32.totalorder %s128, %s144
      %p146 = scmp.eq.s32.totalorder %s15, 0
      %p147 = por %p145, %p146
      %p148 = scmp.le.s32.totalorder 1, %s9
      %p149 = scmp.lt.s32.totalorder %s9, 4
      %p150 = pnand %p148, %p149
      %p151 = pneg %p150
      // Predicated region
      $region9: #{resnet_forward.19} parent=5 // pred_check
        _
      $region10: #{resnet_forward.19} parent=5 // pred_check_branch
        %153 = sbr.rel (%p150) target = $region12
      $region11: #{resnet_forward.19} parent=5 // pred_region
        %s154 = ssub.s32 %s9, 1
        // Predicated region
        $region13: #{resnet_forward.19} parent=11 // pred_check
          %p155 = pneg %p112
        $region14: #{resnet_forward.19} parent=11 // pred_check_branch
          %157 = sbr.rel (%p155) target = $region16
        $region15: #{resnet_forward.19} parent=11 // pred_region
          %s158 = smul.u32 4, %s19
          %p159 = scmp.lt.s32.totalorder %s158, 3
          %s160 = scalar_select %p159, %s158, 3
          %p161 = scmp.lt.s32.totalorder %s20, 0
          %s162 = scalar_select %p161, %s20, 0
          %s163 = sadd.s32 %s162, %s160
          %s164 = smul.addr %s163, 8
          %s165 = scalar_lea.vmem %s2, %s164
          %s166 = smul.u32 4, %s19
        $region16: #{resnet_forward.19} parent=11 // pred_fallthru
          _
      $region12: #{resnet_forward.19} parent=5 // pred_fallthru
        _
      %p167 = scmp.lt.s32.totalorder %s9, 3
      // Predicated region
      $region17: #{resnet_forward.19} parent=5 // pred_check
        %p168 = pneg %p167
      $region18: #{resnet_forward.19} parent=5 // pred_check_branch
        %170 = sbr.rel (%p168) target = $region20
      $region19: #{resnet_forward.19} parent=5 // pred_region
        // Predicated region
        $region21: #{resnet_forward.19} parent=19 // pred_check
          %p171 = pneg %p50
        $region22: #{resnet_forward.19} parent=19 // pred_check_branch
          %173 = sbr.rel (%p171) target = $region24
        $region23: #{resnet_forward.19} parent=19 // pred_region
          %s174 = sand.u32 %s40, 1
          %s175 = sand.u32 %s40, 1
          %s176 = smul.addr %s175, 48
          %s177 = scalar_lea.vmem [#allocation3], %s176
          %s178 = smul.u32 4, %s16
          %s179 = smul.u32 3, %s18
          %s180 = smul.addr %s178, 9
          %s181 = sadd.s32 %s179, %s180
          %s182 = smul.addr %s181, 4
          %s183 = scalar_lea.vmem %s0, %s182
          // Predicated region
          $region25: #{resnet_forward.19} parent=23 // pred_check
            _
          $region26: #{resnet_forward.19} parent=23 // pred_check_branch
            %185 = sbr.rel (0) target = $region28
          $region27: #{resnet_forward.19} parent=23 // pred_region
            // Predicated region
            $region29: #{resnet_forward.19} parent=27 // pred_check
              _
            $region30: #{resnet_forward.19} parent=27 // pred_check_branch
              %187 = sbr.rel (0) target = $region32
            $region31: #{resnet_forward.19} parent=27 // pred_region
              %s188 = scalar_lea.vmem %s183, 8
              %s189 = scalar_lea.vmem %s177, 8 [#allocation3]
              loop: start=0, step=1, limit=1
              $region33: #{resnet_forward.19} parent=31 // loop_pre_header
                _
              $region34: #{resnet_forward.19} parent=31 // loop_header
                %s191 = sphi 0, %s195
                %p192 = scmp.ge.s32.totalorder %s191, 1
                %s196 = sphi %s183, %s183
                %s197 = sphi %s177, %s177
              $region35: #{resnet_forward.19} parent=31 // loop_header_branch
                %194 = sbr.rel (%p192) target = $region39
              $region36: #{resnet_forward.19} parent=31 // loop_body
                %v198 = vld [vmem:[%s196] sm:$0xff]
                %199 = vst [vmem:[%s197] sm:$0xff] %v198
                %v200 = vld [vmem:[%s196 + $0x24] sm:$0xff]
                %201 = vst [vmem:[%s197 + $0xc] sm:$0xff] %v200
                %v202 = vld [vmem:[%s196 + $0x48] sm:$0xff]
                %203 = vst [vmem:[%s197 + $0x18] sm:$0xff] %v202
                %v204 = vld [vmem:[%s196 + $0x6c] sm:$0xff]
                %205 = vst [vmem:[%s197 + $0x24] sm:$0xff] %v204
              $region37: #{resnet_forward.19} parent=31 // loop_footer
                %s195 = sadd.s32 1, %s191
              $region38: #{resnet_forward.19} parent=31 // loop_footer_branch
                %190 = sbr.rel target = $region34
              $region39: #{resnet_forward.19} parent=31 // loop_exit
                _
              loop: start=0, step=1, limit=1
              $region40: #{resnet_forward.19} parent=31 // loop_pre_header
                _
              $region41: #{resnet_forward.19} parent=31 // loop_header
                %s208 = sphi 0, %s212
                %p209 = scmp.ge.s32.totalorder %s208, 1
                %s213 = sphi %s188, %s188
                %s214 = sphi %s189, %s189
              $region42: #{resnet_forward.19} parent=31 // loop_header_branch
                %211 = sbr.rel (%p209) target = $region46
              $region43: #{resnet_forward.19} parent=31 // loop_body
                %v215 = vld [vmem:[%s213] sm:$0xf]
                %216 = vst [vmem:[%s214] sm:$0xf] %v215
                %v217 = vld [vmem:[%s213 + $0x24] sm:$0xf]
                %218 = vst [vmem:[%s214 + $0xc] sm:$0xf] %v217
                %v219 = vld [vmem:[%s213 + $0x48] sm:$0xf]
                %220 = vst [vmem:[%s214 + $0x18] sm:$0xf] %v219
                %v221 = vld [vmem:[%s213 + $0x6c] sm:$0xf]
                %222 = vst [vmem:[%s214 + $0x24] sm:$0xf] %v221
              $region44: #{resnet_forward.19} parent=31 // loop_footer
                %s212 = sadd.s32 1, %s208
              $region45: #{resnet_forward.19} parent=31 // loop_footer_branch
                %207 = sbr.rel target = $region41
              $region46: #{resnet_forward.19} parent=31 // loop_exit
                _
            $region32: #{resnet_forward.19} parent=27 // pred_fallthru
              _
          $region28: #{resnet_forward.19} parent=23 // pred_fallthru
            _
          %223 = vnop
        $region24: #{resnet_forward.19} parent=19 // pred_fallthru
          _
        // Predicated region
        $region47: #{resnet_forward.19} parent=19 // pred_check
          %p224 = pneg %p78
        $region48: #{resnet_forward.19} parent=19 // pred_check_branch
          %226 = sbr.rel (%p224) target = $region50
        $region49: #{resnet_forward.19} parent=19 // pred_region
          %s227 = smul.u32 48, %s18
          %p228 = scmp.lt.s32.totalorder %s227, 143
          %s229 = scalar_select %p228, %s227, 143
          %p230 = scmp.lt.s32.totalorder %s17, 0
          %s231 = scalar_select %p230, %s17, 0
          %s232 = sadd.s32 %s231, %s229
          %s233 = smul.addr %s232, 4
          %s234 = scalar_lea.vmem %s1, %s233
          %s235 = smul.u32 48, %s18
        $region50: #{resnet_forward.19} parent=19 // pred_fallthru
          _
      $region20: #{resnet_forward.19} parent=5 // pred_fallthru
        _
      %p236 = scmp.le.s32.totalorder 1, %s9
      %p237 = scmp.lt.s32.totalorder %s9, 4
      %p238 = pnand %p236, %p237
      %p239 = pneg %p238
      // Predicated region
      $region51: #{resnet_forward.19} parent=5 // pred_check
        _
      $region52: #{resnet_forward.19} parent=5 // pred_check_branch
        %241 = sbr.rel (%p238) target = $region54
      $region53: #{resnet_forward.19} parent=5 // pred_region
        %s242 = ssub.s32 %s9, 1
        %s243 = sand.u32 %s43, 1
        %s244 = sand.u32 %s43, 1
        %s245 = smul.addr %s244, 48
        %s246 = scalar_lea.vmem [#allocation3], %s245
        // Predicated region
        $region55: #{resnet_forward.19} parent=53 // pred_check
          %p247 = pneg %p56
        $region56: #{resnet_forward.19} parent=53 // pred_check_branch
          %249 = sbr.rel (%p247) target = $region58
        $region57: #{resnet_forward.19} parent=53 // pred_region
          _
        $region58: #{resnet_forward.19} parent=53 // pred_fallthru
          _
        %s250 = sand.u32 %s43, 1
        %s251 = sand.u32 %s43, 1
        %s252 = smul.addr %s251, 48
        %s253 = scalar_lea.vmem [#allocation3], %s252
        %p254 = pneg %p56
        %p255 = pneg %p53
        %s256 = smul.u32 48, %s21
        %p257 = scmp.lt.s32.totalorder %s256, 143
        %s258 = scalar_select %p257, %s256, 143
        %p259 = scmp.lt.s32.totalorder %s20, 0
        %s260 = scalar_select %p259, %s20, 0
        %s261 = sadd.s32 %s260, %s258
        %s262 = smul.addr %s261, 4
        %s263 = scalar_lea.vmem %s1, %s262
        %p264 = pneg %p84
        %p265 = pneg %p81
        %s266 = smul.u32 4, %s19
        %p267 = scmp.lt.s32.totalorder %s266, 3
        %s268 = scalar_select %p267, %s266, 3
        %p269 = scmp.lt.s32.totalorder %s20, 0
        %s270 = scalar_select %p269, %s20, 0
        %s271 = sadd.s32 %s270, %s268
        %s272 = smul.addr %s271, 8
        %s273 = scalar_lea.vmem %s2, %s272
        %p274 = pneg %p112
        %p275 = pneg %p109
        %p276 = pneg %p140
        %p277 = pneg %p137
        %s278 = smul.u32 4, %s19
        %p279 = scmp.lt.s32.totalorder %s278, 3
        %s280 = scalar_select %p279, %s278, 3
        %p281 = scmp.lt.s32.totalorder %s20, 0
        %s282 = scalar_select %p281, %s20, 0
        %s283 = sadd.s32 %s282, %s280
        %s284 = smul.addr %s283, 8
        %s285 = scalar_lea.vmem %s3, %s284
        %s286 = smul.u32 4, %s19
        %s287 = smul.u32 3, %s21
        %s288 = smul.u32 48, %s21
        %p289 = scmp.lt.s32.totalorder %s288, 143
        %s290 = scalar_select %p289, %s288, 143
        %p291 = scmp.lt.s32.totalorder %s20, 0
        %s292 = scalar_select %p291, %s20, 0
        %s293 = sadd.s32 %s292, %s290
        %s294 = smul.addr %s293, 4
        %s295 = scalar_lea.vmem %s1, %s294
        %s296 = smul.u32 48, %s21
        %s297 = smul.u32 4, %s19
        %p298 = scmp.lt.s32.totalorder %s297, 3
        %s299 = scalar_select %p298, %s297, 3
        %p300 = scmp.lt.s32.totalorder %s20, 0
        %s301 = scalar_select %p300, %s20, 0
        %s302 = sadd.s32 %s301, %s299
        %s303 = smul.addr %s302, 8
        %s304 = scalar_lea.vmem %s2, %s303
        %s305 = smul.u32 4, %s19
        %s306 = smul.u32 4, %s19
        %p307 = scmp.lt.s32.totalorder %s306, 3
        %s308 = scalar_select %p307, %s306, 3
        %p309 = scmp.lt.s32.totalorder %s20, 0
        %s310 = scalar_select %p309, %s20, 0
        %s311 = sadd.s32 %s310, %s308
        %s312 = smul.addr %s311, 8
        %s313 = scalar_lea.vmem %s3, %s312
        %s314 = smul.u32 4, %s19
        %p316 = scmp.eq.s32.totalorder %s21, 0
        // Predicated region
        $region59: #{resnet_forward.19} parent=53 // pred_check
          %p317 = pneg %p316
        $region60: #{resnet_forward.19} parent=53 // pred_check_branch
          %319 = sbr.rel (%p317) target = $region62
        $region61: #{resnet_forward.19} parent=53 // pred_region
          %320 = vst [vmem:[#allocation2] sm:$0xff] 0.0
          %321 = vst [vmem:[#allocation2 + $0x8] sm:$0xff] 0.0
          %322 = vst [vmem:[#allocation2 + $0x10] sm:$0xff] 0.0
          %323 = vst [vmem:[#allocation2 + $0x18] sm:$0xff] 0.0
        $region62: #{resnet_forward.19} parent=53 // pred_fallthru
          _
        %v324 = vld [vmem:[#allocation2] sm:$0xff]
        %v325 = vld [vmem:[#allocation2 + $0x8] sm:$0xff]
        %v326 = vld [vmem:[#allocation2 + $0x10] sm:$0xff]
        %v327 = vld [vmem:[#allocation2 + $0x18] sm:$0xff]
        %v328 = vld [vmem:[%s246] sm:$0xff]
        %v329 = vld [vmem:[%s246 + $0x8] sm:$0xf]
        %v330 = vld [vmem:[%s246 + $0xc] sm:$0xff]
        %v331 = vld [vmem:[%s246 + $0x14] sm:$0xf]
        %v332 = vld [vmem:[%s246 + $0x18] sm:$0xff]
        %v333 = vld [vmem:[%s246 + $0x20] sm:$0xf]
        %v334 = vld [vmem:[%s246 + $0x24] sm:$0xff]
        %v335 = vld [vmem:[%s246 + $0x2c] sm:$0xf]
        %v336 = vld [vmem:[%s295] sm:$0xf]
        %v337 = vld [vmem:[%s295 + $0x4] sm:$0xf]
        %v338 = vld [vmem:[%s295 + $0x8] sm:$0xf]
        %v339 = vld [vmem:[%s295 + $0xc] sm:$0xf]
        %v340 = vld [vmem:[%s295 + $0x10] sm:$0xf]
        %v341 = vld [vmem:[%s295 + $0x14] sm:$0xf]
        %v342 = vld [vmem:[%s295 + $0x18] sm:$0xf]
        %v343 = vld [vmem:[%s295 + $0x1c] sm:$0xf]
        %v344 = vld [vmem:[%s295 + $0x20] sm:$0xf]
        %v345 = vld [vmem:[%s295 + $0x24] sm:$0xf]
        %v346 = vld [vmem:[%s295 + $0x28] sm:$0xf]
        %v347 = vld [vmem:[%s295 + $0x2c] sm:$0xf]
        %v348 = vld [vmem:[%s295 + $0x30] sm:$0xf]
        %v349 = vld [vmem:[%s295 + $0x34] sm:$0xf]
        %v350 = vld [vmem:[%s295 + $0x38] sm:$0xf]
        %v351 = vld [vmem:[%s295 + $0x3c] sm:$0xf]
        %v352 = vld [vmem:[%s295 + $0x40] sm:$0xf]
        %v353 = vld [vmem:[%s295 + $0x44] sm:$0xf]
        %v354 = vld [vmem:[%s295 + $0x48] sm:$0xf]
        %v355 = vld [vmem:[%s295 + $0x4c] sm:$0xf]
        %v356 = vld [vmem:[%s295 + $0x50] sm:$0xf]
        %v357 = vld [vmem:[%s295 + $0x54] sm:$0xf]
        %v358 = vld [vmem:[%s295 + $0x58] sm:$0xf]
        %v359 = vld [vmem:[%s295 + $0x5c] sm:$0xf]
        %v360 = vld [vmem:[%s295 + $0x60] sm:$0xf]
        %v361 = vld [vmem:[%s295 + $0x64] sm:$0xf]
        %v362 = vld [vmem:[%s295 + $0x68] sm:$0xf]
        %v363 = vld [vmem:[%s295 + $0x6c] sm:$0xf]
        %v364 = vld [vmem:[%s295 + $0x70] sm:$0xf]
        %v365 = vld [vmem:[%s295 + $0x74] sm:$0xf]
        %v366 = vld [vmem:[%s295 + $0x78] sm:$0xf]
        %v367 = vld [vmem:[%s295 + $0x7c] sm:$0xf]
        %v368 = vld [vmem:[%s295 + $0x80] sm:$0xf]
        %v369 = vld [vmem:[%s295 + $0x84] sm:$0xf]
        %v370 = vld [vmem:[%s295 + $0x88] sm:$0xf]
        %v371 = vld [vmem:[%s295 + $0x8c] sm:$0xf]
        %v372 = vld [vmem:[%s295 + $0x90] sm:$0xf]
        %v373 = vld [vmem:[%s295 + $0x94] sm:$0xf]
        %v374 = vld [vmem:[%s295 + $0x98] sm:$0xf]
        %v375 = vld [vmem:[%s295 + $0x9c] sm:$0xf]
        %v376 = vld [vmem:[%s295 + $0xa0] sm:$0xf]
        %v377 = vld [vmem:[%s295 + $0xa4] sm:$0xf]
        %v378 = vld [vmem:[%s295 + $0xa8] sm:$0xf]
        %v379 = vld [vmem:[%s295 + $0xac] sm:$0xf]
        %v380 = vld [vmem:[%s295 + $0xb0] sm:$0xf]
        %v381 = vld [vmem:[%s295 + $0xb4] sm:$0xf]
        %v382 = vld [vmem:[%s295 + $0xb8] sm:$0xf]
        %v383 = vld [vmem:[%s295 + $0xbc] sm:$0xf]
        %v392 = vunpack.c.l.b16 %v328
        %v393 = vunpack.c.h.b16 %v328
        %v394 = vunpack.c.l.b16 %v329
        %v395 = vunpack.c.l.b16 %v330
        %v396 = vunpack.c.h.b16 %v330
        %v397 = vunpack.c.l.b16 %v331
        %v398 = vunpack.c.l.b16 %v332
        %v399 = vunpack.c.h.b16 %v332
        %v400 = vunpack.c.l.b16 %v333
        %v401 = vunpack.c.l.b16 %v334
        %v402 = vunpack.c.h.b16 %v334
        %v403 = vunpack.c.l.b16 %v335
        %v404 = vpack.c.b16 %v395, %v392
        %v405 = vpack.c.b16 %v396, %v393
        %v406 = vpack.c.b16 %v397, %v394
        %v407 = vpack.c.b16 %v401, %v398
        %v408 = vpack.c.b16 %v402, %v399
        %v409 = vpack.c.b16 %v403, %v400
        %v464 = vunpack.c.l.b16 %v336
        %v465 = vunpack.c.l.b16 %v337
        %v466 = vunpack.c.l.b16 %v338
        %v467 = vunpack.c.l.b16 %v339
        %v468 = vunpack.c.l.b16 %v340
        %v469 = vunpack.c.l.b16 %v341
        %v470 = vunpack.c.l.b16 %v342
        %v471 = vunpack.c.l.b16 %v343
        %v472 = vunpack.c.l.b16 %v344
        %v473 = vunpack.c.l.b16 %v345
        %v474 = vunpack.c.l.b16 %v346
        %v475 = vunpack.c.l.b16 %v347
        %v476 = vunpack.c.l.b16 %v348
        %v477 = vunpack.c.l.b16 %v349
        %v478 = vunpack.c.l.b16 %v350
        %v479 = vunpack.c.l.b16 %v351
        %v480 = vunpack.c.l.b16 %v352
        %v481 = vunpack.c.l.b16 %v353
        %v482 = vunpack.c.l.b16 %v354
        %v483 = vunpack.c.l.b16 %v355
        %v484 = vunpack.c.l.b16 %v356
        %v485 = vunpack.c.l.b16 %v357
        %v486 = vunpack.c.l.b16 %v358
        %v487 = vunpack.c.l.b16 %v359
        %v488 = vunpack.c.l.b16 %v360
        %v489 = vunpack.c.l.b16 %v361
        %v490 = vunpack.c.l.b16 %v362
        %v491 = vunpack.c.l.b16 %v363
        %v492 = vunpack.c.l.b16 %v364
        %v493 = vunpack.c.l.b16 %v365
        %v494 = vunpack.c.l.b16 %v366
        %v495 = vunpack.c.l.b16 %v367
        %v496 = vunpack.c.l.b16 %v368
        %v497 = vunpack.c.l.b16 %v369
        %v498 = vunpack.c.l.b16 %v370
        %v499 = vunpack.c.l.b16 %v371
        %v500 = vunpack.c.l.b16 %v372
        %v501 = vunpack.c.l.b16 %v373
        %v502 = vunpack.c.l.b16 %v374
        %v503 = vunpack.c.l.b16 %v375
        %v504 = vunpack.c.l.b16 %v376
        %v505 = vunpack.c.l.b16 %v377
        %v506 = vunpack.c.l.b16 %v378
        %v507 = vunpack.c.l.b16 %v379
        %v508 = vunpack.c.l.b16 %v380
        %v509 = vunpack.c.l.b16 %v381
        %v510 = vunpack.c.l.b16 %v382
        %v511 = vunpack.c.l.b16 %v383
        %v512 = vpack.c.b16 %v465, %v464
        %v513 = vpack.c.b16 %v467, %v466
        %v514 = vpack.c.b16 %v469, %v468
        %v515 = vpack.c.b16 %v471, %v470
        %v516 = vpack.c.b16 %v473, %v472
        %v517 = vpack.c.b16 %v475, %v474
        %v518 = vpack.c.b16 %v477, %v476
        %v519 = vpack.c.b16 %v479, %v478
        %v520 = vpack.c.b16 %v481, %v480
        %v521 = vpack.c.b16 %v483, %v482
        %v522 = vpack.c.b16 %v485, %v484
        %v523 = vpack.c.b16 %v487, %v486
        %v524 = vpack.c.b16 %v489, %v488
        %v525 = vpack.c.b16 %v491, %v490
        %v526 = vpack.c.b16 %v493, %v492
        %v527 = vpack.c.b16 %v495, %v494
        %v528 = vpack.c.b16 %v497, %v496
        %v529 = vpack.c.b16 %v499, %v498
        %v530 = vpack.c.b16 %v501, %v500
        %v531 = vpack.c.b16 %v503, %v502
        %v532 = vpack.c.b16 %v505, %v504
        %v533 = vpack.c.b16 %v507, %v506
        %v534 = vpack.c.b16 %v509, %v508
        %v535 = vpack.c.b16 %v511, %v510
        %560 = vmatprep.subr.bf16.mxu0 0
        %561 = vmatpush1.bf16.msra.mxu0 %v512
        %562 = vmatprep.subr.bf16.mxu0 0
        %563 = vmatpush1.bf16.msra.mxu0 %v513
        %564 = vmatprep.subr.bf16.mxu0 0
        %565 = vmatpush1.bf16.msra.mxu0 %v514
        %566 = vmatprep.subr.bf16.mxu0 0
        %567 = vmatpush1.bf16.msra.mxu0 %v515
        %568 = vmatprep.subr.bf16.mxu0 0
        %569 = vmatpush1.bf16.msra.mxu0 %v516
        %570 = vmatprep.subr.bf16.mxu0 0
        %571 = vmatpush1.bf16.msra.mxu0 %v517
        %572 = vmatprep.subr.bf16.mxu0 0
        %573 = vmatpush1.bf16.msra.mxu0 %v518
        %574 = vmatprep.subr.bf16.mxu0 0
        %575 = vmatpush1.bf16.msra.mxu0 %v519
        %576 = vmatprep.subr.bf16.mxu0 0
        %577 = vmatpush1.bf16.msra.mxu0 %v520
        %578 = vmatprep.subr.bf16.mxu0 0
        %579 = vmatpush1.bf16.msra.mxu0 %v521
        %580 = vmatprep.subr.bf16.mxu0 0
        %581 = vmatpush1.bf16.msra.mxu0 %v522
        %582 = vmatprep.subr.bf16.mxu0 0
        %583 = vmatpush1.bf16.msra.mxu0 %v523
        %584 = vmatprep.subr.bf16.mxu0 0
        %585 = vmatpush1.bf16.msra.mxu0 %v524
        %586 = vmatprep.subr.bf16.mxu0 0
        %587 = vmatpush1.bf16.msra.mxu0 %v525
        %588 = vmatprep.subr.bf16.mxu0 0
        %589 = vmatpush1.bf16.msra.mxu0 %v526
        %590 = vmatprep.subr.bf16.mxu0 0
        %591 = vmatpush1.bf16.msra.mxu0 %v527
        %592 = vmatprep.mubr.bf16.mxu0 %v405
        %593 = vmatmul.mubr.bf16.gmra.mrb[0].mxu0 %v404
        %v594 = vpop.f32.mrb[0].mxu0
        %v595 = vadd.f32 0.0, %v594
        %v596 = vpop.f32.mrb[0].mxu0
        %v597 = vpop.f32.mrb[0].mxu0
        %v598 = vadd.f32 0.0, %v597
        %v599 = vpop.f32.mrb[0].mxu0
        %600 = vmatprep.mubr.bf16.mxu0 %v408
        %601 = vmatmul.mubr.bf16.gmra.mrb[0].mxu0 %v407
        %v602 = vpop.f32.mrb[0].mxu0
        %v603 = vadd.f32 0.0, %v602
        %v604 = vpop.f32.mrb[0].mxu0
        %v605 = vpop.f32.mrb[0].mxu0
        %v606 = vadd.f32 0.0, %v605
        %v607 = vpop.f32.mrb[0].mxu0
        %608 = vdwg.mxu0
        %609 = vmatprep.subr.bf16.mxu0 0
        %610 = vmatpush1.bf16.msra.mxu0 %v528
        %611 = vmatprep.subr.bf16.mxu0 0
        %612 = vmatpush1.bf16.msra.mxu0 %v529
        %613 = vmatprep.subr.bf16.mxu0 0
        %614 = vmatpush1.bf16.msra.mxu0 %v530
        %615 = vmatprep.subr.bf16.mxu0 0
        %616 = vmatpush1.bf16.msra.mxu0 %v531
        %617 = vmatprep.subr.bf16.mxu0 0
        %618 = vmatpush1.bf16.msra.mxu0 %v532
        %619 = vmatprep.subr.bf16.mxu0 0
        %620 = vmatpush1.bf16.msra.mxu0 %v533
        %621 = vmatprep.subr.bf16.mxu0 0
        %622 = vmatpush1.bf16.msra.mxu0 %v534
        %623 = vmatprep.subr.bf16.mxu0 0
        %624 = vmatpush1.bf16.msra.mxu0 %v535
        %625 = vmatprep.subr.bf16.mxu0 0
        %626 = vmatpush1.bf16.msra.mxu0 0
        %627 = vmatprep.subr.bf16.mxu0 0
        %628 = vmatpush1.bf16.msra.mxu0 0
        %629 = vmatprep.subr.bf16.mxu0 0
        %630 = vmatpush1.bf16.msra.mxu0 0
        %631 = vmatprep.subr.bf16.mxu0 0
        %632 = vmatpush1.bf16.msra.mxu0 0
        %633 = vmatprep.subr.bf16.mxu0 0
        %634 = vmatpush1.bf16.msra.mxu0 0
        %635 = vmatprep.subr.bf16.mxu0 0
        %636 = vmatpush1.bf16.msra.mxu0 0
        %637 = vmatprep.subr.bf16.mxu0 0
        %638 = vmatpush1.bf16.msra.mxu0 0
        %639 = vmatprep.subr.bf16.mxu0 0
        %640 = vmatpush1.bf16.msra.mxu0 0
        %641 = vmatprep.mubr.bf16.mxu0 0
        %642 = vmatmul.mubr.bf16.gmra.mrb[0].mxu0 %v406
        %v643 = vpop.f32.mrb[0].mxu0
        %v644 = vadd.f32 %v595, %v643
        %v645 = vpop.f32.mrb[0].mxu0
        %v646 = vpop.f32.mrb[0].mxu0
        %v647 = vadd.f32 %v598, %v646
        %v648 = vpop.f32.mrb[0].mxu0
        %649 = vmatprep.mubr.bf16.mxu0 0
        %650 = vmatmul.mubr.bf16.gmra.mrb[0].mxu0 %v409
        %v651 = vpop.f32.mrb[0].mxu0
        %v652 = vadd.f32 %v603, %v651
        %v653 = vpop.f32.mrb[0].mxu0
        %v654 = vpop.f32.mrb[0].mxu0
        %v655 = vadd.f32 %v606, %v654
        %v656 = vpop.f32.mrb[0].mxu0
        %657 = vdwg.mxu0
        %v658 = vadd.f32 %v324, %v644
        %v659 = vadd.f32 %v325, %v647
        %v660 = vadd.f32 %v326, %v652
        %v661 = vadd.f32 %v327, %v655
        %662 = vst [vmem:[#allocation2] sm:$0xff] %v658
        %663 = vst [vmem:[#allocation2 + $0x8] sm:$0xff] %v659
        %664 = vst [vmem:[#allocation2 + $0x10] sm:$0xff] %v660
        %665 = vst [vmem:[#allocation2 + $0x18] sm:$0xff] %v661
        %p666 = scmp.eq.s32.totalorder %s21, 2
        // Predicated region
        $region63: #{resnet_forward.19} parent=53 // pred_check
          %p667 = pneg %p666
        $region64: #{resnet_forward.19} parent=53 // pred_check_branch
          %669 = sbr.rel (%p667) target = $region66
        $region65: #{resnet_forward.19} parent=53 // pred_region
          %v670 = vld [vmem:[#allocation2] sm:$0xff]
          %v671 = vld [vmem:[#allocation2 + $0x8] sm:$0xff]
          %v672 = vld [vmem:[#allocation2 + $0x10] sm:$0xff]
          %v673 = vld [vmem:[#allocation2 + $0x18] sm:$0xff]
          %v674 = vld [vmem:[%s304] sm:$0xff]
          %v675 = vld [vmem:[%s304 + $0x8] sm:$0xff]
          %v676 = vld [vmem:[%s304 + $0x10] sm:$0xff]
          %v677 = vld [vmem:[%s304 + $0x18] sm:$0xff]
          %v678 = vadd.f32 %v670, %v674
          %v679 = vadd.f32 %v671, %v675
          %v680 = vadd.f32 %v672, %v676
          %v681 = vadd.f32 %v673, %v677
          %v682 = vmax.f32 %v678, 0.0
          %v683 = vmax.f32 %v679, 0.0
          %v684 = vmax.f32 %v680, 0.0
          %v685 = vmax.f32 %v681, 0.0
          %686 = vst [vmem:[%s313] sm:$0xff] %v682
          %687 = vst [vmem:[%s313 + $0x8] sm:$0xff] %v683
          %688 = vst [vmem:[%s313 + $0x10] sm:$0xff] %v684
          %689 = vst [vmem:[%s313 + $0x18] sm:$0xff] %v685
        $region66: #{resnet_forward.19} parent=53 // pred_fallthru
          _
        %s690 = smul.u32 4, %s19
        %p691 = scmp.lt.s32.totalorder %s690, 3
        %s692 = scalar_select %p691, %s690, 3
        %p693 = scmp.lt.s32.totalorder %s20, 0
        %s694 = scalar_select %p693, %s20, 0
        %s695 = sadd.s32 %s694, %s692
        %s696 = smul.addr %s695, 8
        %s697 = scalar_lea.vmem %s3, %s696
        // Predicated region
        $region67: #{resnet_forward.19} parent=53 // pred_check
          %p698 = pneg %p137
        $region68: #{resnet_forward.19} parent=53 // pred_check_branch
          %700 = sbr.rel (%p698) target = $region70
        $region69: #{resnet_forward.19} parent=53 // pred_region
          %s701 = smul.u32 4, %s19
        $region70: #{resnet_forward.19} parent=53 // pred_fallthru
          _
        // Predicated region
        $region71: #{resnet_forward.19} parent=53 // pred_check
          %p702 = pneg %p137
        $region72: #{resnet_forward.19} parent=53 // pred_check_branch
          %704 = sbr.rel (%p702) target = $region74
        $region73: #{resnet_forward.19} parent=53 // pred_region
          %s705 = smul.u32 4, %s19
          %p706 = scmp.lt.s32.totalorder %s705, 3
          %s707 = scalar_select %p706, %s705, 3
          %p708 = scmp.lt.s32.totalorder %s20, 0
          %s709 = scalar_select %p708, %s20, 0
          %s710 = sadd.s32 %s709, %s707
          %s711 = smul.addr %s710, 8
          %s712 = scalar_lea.vmem %s3, %s711
        $region74: #{resnet_forward.19} parent=53 // pred_fallthru
          _
      $region54: #{resnet_forward.19} parent=5 // pred_fallthru
        _
      %p713 = scmp.le.s32.totalorder 2, %s9
      // Predicated region
      $region75: #{resnet_forward.19} parent=5 // pred_check
        %p714 = pneg %p713
      $region76: #{resnet_forward.19} parent=5 // pred_check_branch
        %716 = sbr.rel (%p714) target = $region78
      $region77: #{resnet_forward.19} parent=5 // pred_region
        %s717 = ssub.s32 %s9, 2
      $region78: #{resnet_forward.19} parent=5 // pred_fallthru
        _
    $region6: #{resnet_forward.19} parent=1 // loop_footer
      %s13 = sadd.s32 1, %s9
    $region7: #{resnet_forward.19} parent=1 // loop_footer_branch
      %8 = sbr.rel target = $region3
    $region8: #{resnet_forward.19} parent=1 // loop_exit
      _

// kernel: resnet_forward.22
$region0: #{resnet_forward.22}
  #allocation0 [shape = 'u32[]', space=smem, size = 0x4, offset = 0x4, fixed_abs, tag = 'smem constant byte address 0x4 - core index']
  #allocation1 [shape = 'u32[144,128]{1,0:T(1,128)}', space=vmem, size = 0x12000, scoped, tag = 'internal scratch']
  #allocation2 [shape = 'f32[8,128]{1,0:T(8,128)}', space=vmem, size = 0x1000, scoped, tag = 'scratch operand']
  %s0 = inlined_call_operand.vmem [shape: bf16[8,1152], index: 0, kind: input, shape index: {}]
  %s1 = inlined_call_operand.vmem [shape: bf16[1152,128], index: 1, kind: input, shape index: {}]
  %s2 = inlined_call_operand.vmem [shape: f32[8,128], index: 2, kind: output, shape index: {}]
  %s3 = sld [smem:[#allocation0]]
  $region49: #{resnet_forward.22} parent=0
    _
  %s5 = ssub.s32 1, %s3
  %s6 = scalar_select 0, %s5, %s3
  loop: start=0, step=1, limit=5
  $region2: #{resnet_forward.22} parent=0 // loop_pre_header
    _
  $region3: #{resnet_forward.22} parent=0 // loop_header
    %s8 = sphi 0, %s12
    %p9 = scmp.ge.s32.totalorder %s8, 5
    %s15 = sphi 0, %s34
    %s16 = sphi 0, %s30
    %s17 = sphi 0, %s26
    %s18 = sphi 0, %s15
    %s19 = sphi 0, %s16
    %s20 = sphi 0, %s17
    %s21 = sphi 0, %s18
    %s22 = sphi 0, %s19
    %s23 = sphi 0, %s20
    %s39 = sphi 0, %s41
    %s42 = sphi 0, %s39
    %s43 = sphi 0, %s42
    %s59 = sphi 0, %s43
    %s67 = sphi 0, %s69
    %s70 = sphi 0, %s67
    %s71 = sphi 0, %s70
    %s87 = sphi 0, %s71
    %s95 = sphi 0, %s97
    %s98 = sphi 0, %s95
    %s99 = sphi 0, %s98
    %s115 = sphi 0, %s99
  $region4: #{resnet_forward.22} parent=0 // loop_header_branch
    %11 = sbr.rel (%p9) target = $region8
  $region5: #{resnet_forward.22} parent=0 // loop_body
    %s13 = ssub.s32 %s8, 1
    %s14 = ssub.s32 %s8, 2
    %s24 = sadd.s32 1, %s17
    %p25 = scmp.ge.s32.totalorder %s24, 3
    %s26 = scalar_select %p25, 0, %s24
    %s27 = sadd.s32 1, %s16
    %s28 = scalar_select %p25, %s27, %s16
    %p29 = scmp.ge.s32.totalorder %s28, 1
    %s30 = scalar_select %p29, 0, %s28
    %s31 = sadd.s32 1, %s15
    %s32 = scalar_select %p29, %s31, %s15
    %p33 = scmp.ge.s32.totalorder %s32, 1
    %s34 = scalar_select %p33, 0, %s32
    %s35 = ssub.s32 %s15, %s34
    %s36 = ssub.s32 %s17, %s26
    %s37 = sor.u32 %s35, %s36
    %p38 = scmp.eq.s32.totalorder %s37, 0
    %s40 = sadd.s32 %s39, 1
    %s41 = scalar_select %p38, %s39, %s40
    %p44 = pneg %p38
    %p45 = scmp.eq.s32.totalorder %s8, 2
    %p46 = por %p44, %p45
    %p47 = scmp.ne.s32.totalorder %s39, %s42
    %p48 = scmp.eq.s32.totalorder %s8, 0
    %p49 = por %p47, %p48
    %p50 = scmp.ne.s32.totalorder %s39, %s42
    %p51 = scmp.eq.s32.totalorder %s13, 2
    %p52 = por %p50, %p51
    %p53 = scmp.ne.s32.totalorder %s42, %s43
    %p54 = scmp.eq.s32.totalorder %s13, 0
    %p55 = por %p53, %p54
    %p56 = scmp.ne.s32.totalorder %s42, %s43
    %p57 = scmp.eq.s32.totalorder %s14, 2
    %p58 = por %p56, %p57
    %p60 = scmp.ne.s32.totalorder %s43, %s59
    %p61 = scmp.eq.s32.totalorder %s14, 0
    %p62 = por %p60, %p61
    %s63 = ssub.s32 %s17, %s26
    %s64 = ssub.s32 %s16, %s30
    %s65 = sor.u32 %s63, %s64
    %p66 = scmp.eq.s32.totalorder %s65, 0
    %s68 = sadd.s32 %s67, 1
    %s69 = scalar_select %p66, %s67, %s68
    %p72 = pneg %p66
    %p73 = scmp.eq.s32.totalorder %s8, 2
    %p74 = por %p72, %p73
    %p75 = scmp.ne.s32.totalorder %s67, %s70
    %p76 = scmp.eq.s32.totalorder %s8, 0
    %p77 = por %p75, %p76
    %p78 = scmp.ne.s32.totalorder %s67, %s70
    %p79 = scmp.eq.s32.totalorder %s13, 2
    %p80 = por %p78, %p79
    %p81 = scmp.ne.s32.totalorder %s70, %s71
    %p82 = scmp.eq.s32.totalorder %s13, 0
    %p83 = por %p81, %p82
    %p84 = scmp.ne.s32.totalorder %s70, %s71
    %p85 = scmp.eq.s32.totalorder %s14, 2
    %p86 = por %p84, %p85
    %p88 = scmp.ne.s32.totalorder %s71, %s87
    %p89 = scmp.eq.s32.totalorder %s14, 0
    %p90 = por %p88, %p89
    %s91 = ssub.s32 %s15, %s34
    %s92 = ssub.s32 %s16, %s30
    %s93 = sor.u32 %s91, %s92
    %p94 = scmp.eq.s32.totalorder %s93, 0
    %s96 = sadd.s32 %s95, 1
    %s97 = scalar_select %p94, %s95, %s96
    %p100 = pneg %p94
    %p101 = scmp.eq.s32.totalorder %s8, 2
    %p102 = por %p100, %p101
    %p103 = scmp.ne.s32.totalorder %s95, %s98
    %p104 = scmp.eq.s32.totalorder %s8, 0
    %p105 = por %p103, %p104
    %p106 = scmp.ne.s32.totalorder %s95, %s98
    %p107 = scmp.eq.s32.totalorder %s13, 2
    %p108 = por %p106, %p107
    %p109 = scmp.ne.s32.totalorder %s98, %s99
    %p110 = scmp.eq.s32.totalorder %s13, 0
    %p111 = por %p109, %p110
    %p112 = scmp.ne.s32.totalorder %s98, %s99
    %p113 = scmp.eq.s32.totalorder %s14, 2
    %p114 = por %p112, %p113
    %p116 = scmp.ne.s32.totalorder %s99, %s115
    %p117 = scmp.eq.s32.totalorder %s14, 0
    %p118 = por %p116, %p117
    %p119 = scmp.le.s32.totalorder 1, %s8
    %p120 = scmp.lt.s32.totalorder %s8, 4
    %p121 = pnand %p119, %p120
    %p122 = pneg %p121
    // Predicated region
    $region9: #{resnet_forward.22} parent=5 // pred_check
      _
    $region10: #{resnet_forward.22} parent=5 // pred_check_branch
      %124 = sbr.rel (%p121) target = $region12
    $region11: #{resnet_forward.22} parent=5 // pred_region
      %s125 = ssub.s32 %s8, 1
    $region12: #{resnet_forward.22} parent=5 // pred_fallthru
      _
    %p126 = scmp.lt.s32.totalorder %s8, 3
    // Predicated region
    $region13: #{resnet_forward.22} parent=5 // pred_check
      %p127 = pneg %p126
    $region14: #{resnet_forward.22} parent=5 // pred_check_branch
      %129 = sbr.rel (%p127) target = $region16
    $region15: #{resnet_forward.22} parent=5 // pred_region
      // Predicated region
      $region17: #{resnet_forward.22} parent=15 // pred_check
        %p130 = pneg %p49
      $region18: #{resnet_forward.22} parent=15 // pred_check_branch
        %132 = sbr.rel (%p130) target = $region20
      $region19: #{resnet_forward.22} parent=15 // pred_region
        %s133 = smul.u32 3, %s17
        %p134 = scmp.lt.s32.totalorder %s15, 0
        %s135 = scalar_select %p134, %s15, 0
        %p136 = scmp.lt.s32.totalorder %s133, 8
        %s137 = scalar_select %p136, %s133, 8
        %s138 = smul.addr %s135, 9
        %s139 = sadd.s32 %s137, %s138
        %s140 = smul.addr %s139, 4
        %s141 = scalar_lea.vmem %s0, %s140
        %s142 = smul.u32 3, %s17
      $region20: #{resnet_forward.22} parent=15 // pred_fallthru
        _
      // Predicated region
      $region21: #{resnet_forward.22} parent=15 // pred_check
        %p143 = pneg %p77
      $region22: #{resnet_forward.22} parent=15 // pred_check_branch
        %145 = sbr.rel (%p143) target = $region24
      $region23: #{resnet_forward.22} parent=15 // pred_region
        %s146 = smul.u32 48, %s17
        %p147 = scmp.lt.s32.totalorder %s146, 143
        %s148 = scalar_select %p147, %s146, 143
        %p149 = scmp.lt.s32.totalorder %s16, 0
        %s150 = scalar_select %p149, %s16, 0
        %s151 = sadd.s32 %s150, %s148
        %s152 = smul.addr %s151, 4
        %s153 = scalar_lea.vmem %s1, %s152
        %s154 = smul.u32 48, %s17
      $region24: #{resnet_forward.22} parent=15 // pred_fallthru
        _
    $region16: #{resnet_forward.22} parent=5 // pred_fallthru
      _
    %p155 = scmp.le.s32.totalorder 1, %s8
    %p156 = scmp.lt.s32.totalorder %s8, 4
    %p157 = pnand %p155, %p156
    %p158 = pneg %p157
    // Predicated region
    $region25: #{resnet_forward.22} parent=5 // pred_check
      _
    $region26: #{resnet_forward.22} parent=5 // pred_check_branch
      %160 = sbr.rel (%p157) target = $region28
    $region27: #{resnet_forward.22} parent=5 // pred_region
      %s161 = ssub.s32 %s8, 1
      %s162 = smul.u32 3, %s20
      %p163 = scmp.lt.s32.totalorder %s18, 0
      %s164 = scalar_select %p163, %s18, 0
      %p165 = scmp.lt.s32.totalorder %s162, 8
      %s166 = scalar_select %p165, %s162, 8
      %s167 = smul.addr %s164, 9
      %s168 = sadd.s32 %s166, %s167
      %s169 = smul.addr %s168, 4
      %s170 = scalar_lea.vmem %s0, %s169
      %p171 = pneg %p55
      %p172 = pneg %p52
      %s173 = smul.u32 48, %s20
      %p174 = scmp.lt.s32.totalorder %s173, 143
      %s175 = scalar_select %p174, %s173, 143
      %p176 = scmp.lt.s32.totalorder %s19, 0
      %s177 = scalar_select %p176, %s19, 0
      %s178 = sadd.s32 %s177, %s175
      %s179 = smul.addr %s178, 4
      %s180 = scalar_lea.vmem %s1, %s179
      %p181 = pneg %p83
      %p182 = pneg %p80
      %p183 = pneg %p111
      %p184 = pneg %p108
      %p185 = scmp.lt.s32.totalorder %s18, 0
      %s186 = scalar_select %p185, %s18, 0
      %p187 = scmp.lt.s32.totalorder %s19, 0
      %s188 = scalar_select %p187, %s19, 0
      %s189 = sadd.s32 %s188, %s186
      %s190 = smul.addr %s189, 8
      %s191 = scalar_lea.vmem %s2, %s190
      %s192 = smul.u32 3, %s20
      %p193 = scmp.lt.s32.totalorder %s18, 0
      %s194 = scalar_select %p193, %s18, 0
      %p195 = scmp.lt.s32.totalorder %s192, 8
      %s196 = scalar_select %p195, %s192, 8
      %s197 = smul.addr %s194, 9
      %s198 = sadd.s32 %s196, %s197
      %s199 = smul.addr %s198, 4
      %s200 = scalar_lea.vmem %s0, %s199
      %s201 = smul.u32 3, %s20
      %s202 = smul.u32 48, %s20
      %p203 = scmp.lt.s32.totalorder %s202, 143
      %s204 = scalar_select %p203, %s202, 143
      %p205 = scmp.lt.s32.totalorder %s19, 0
      %s206 = scalar_select %p205, %s19, 0
      %s207 = sadd.s32 %s206, %s204
      %s208 = smul.addr %s207, 4
      %s209 = scalar_lea.vmem %s1, %s208
      %s210 = smul.u32 48, %s20
      %p211 = scmp.lt.s32.totalorder %s18, 0
      %s212 = scalar_select %p211, %s18, 0
      %p213 = scmp.lt.s32.totalorder %s19, 0
      %s214 = scalar_select %p213, %s19, 0
      %s215 = sadd.s32 %s214, %s212
      %s216 = smul.addr %s215, 8
      %s217 = scalar_lea.vmem %s2, %s216
      %p219 = scmp.eq.s32.totalorder %s20, 0
      // Predicated region
      $region29: #{resnet_forward.22} parent=27 // pred_check
        %p220 = pneg %p219
      $region30: #{resnet_forward.22} parent=27 // pred_check_branch
        %222 = sbr.rel (%p220) target = $region32
      $region31: #{resnet_forward.22} parent=27 // pred_region
        %223 = vst [vmem:[#allocation2] sm:$0xff] 0.0
      $region32: #{resnet_forward.22} parent=27 // pred_fallthru
        _
      %v224 = vld [vmem:[#allocation2] sm:$0xff]
      %v225 = vld [vmem:[%s200] sm:$0xff]
      %v226 = vld [vmem:[%s200 + $0x8] sm:$0xf]
      %v227 = vld [vmem:[%s209] sm:$0xf]
      %v228 = vld [vmem:[%s209 + $0x4] sm:$0xf]
      %v229 = vld [vmem:[%s209 + $0x8] sm:$0xf]
      %v230 = vld [vmem:[%s209 + $0xc] sm:$0xf]
      %v231 = vld [vmem:[%s209 + $0x10] sm:$0xf]
      %v232 = vld [vmem:[%s209 + $0x14] sm:$0xf]
      %v233 = vld [vmem:[%s209 + $0x18] sm:$0xf]
      %v234 = vld [vmem:[%s209 + $0x1c] sm:$0xf]
      %v235 = vld [vmem:[%s209 + $0x20] sm:$0xf]
      %v236 = vld [vmem:[%s209 + $0x24] sm:$0xf]
      %v237 = vld [vmem:[%s209 + $0x28] sm:$0xf]
      %v238 = vld [vmem:[%s209 + $0x2c] sm:$0xf]
      %v239 = vld [vmem:[%s209 + $0x30] sm:$0xf]
      %v240 = vld [vmem:[%s209 + $0x34] sm:$0xf]
      %v241 = vld [vmem:[%s209 + $0x38] sm:$0xf]
      %v242 = vld [vmem:[%s209 + $0x3c] sm:$0xf]
      %v243 = vld [vmem:[%s209 + $0x40] sm:$0xf]
      %v244 = vld [vmem:[%s209 + $0x44] sm:$0xf]
      %v245 = vld [vmem:[%s209 + $0x48] sm:$0xf]
      %v246 = vld [vmem:[%s209 + $0x4c] sm:$0xf]
      %v247 = vld [vmem:[%s209 + $0x50] sm:$0xf]
      %v248 = vld [vmem:[%s209 + $0x54] sm:$0xf]
      %v249 = vld [vmem:[%s209 + $0x58] sm:$0xf]
      %v250 = vld [vmem:[%s209 + $0x5c] sm:$0xf]
      %v251 = vld [vmem:[%s209 + $0x60] sm:$0xf]
      %v252 = vld [vmem:[%s209 + $0x64] sm:$0xf]
      %v253 = vld [vmem:[%s209 + $0x68] sm:$0xf]
      %v254 = vld [vmem:[%s209 + $0x6c] sm:$0xf]
      %v255 = vld [vmem:[%s209 + $0x70] sm:$0xf]
      %v256 = vld [vmem:[%s209 + $0x74] sm:$0xf]
      %v257 = vld [vmem:[%s209 + $0x78] sm:$0xf]
      %v258 = vld [vmem:[%s209 + $0x7c] sm:$0xf]
      %v259 = vld [vmem:[%s209 + $0x80] sm:$0xf]
      %v260 = vld [vmem:[%s209 + $0x84] sm:$0xf]
      %v261 = vld [vmem:[%s209 + $0x88] sm:$0xf]
      %v262 = vld [vmem:[%s209 + $0x8c] sm:$0xf]
      %v263 = vld [vmem:[%s209 + $0x90] sm:$0xf]
      %v264 = vld [vmem:[%s209 + $0x94] sm:$0xf]
      %v265 = vld [vmem:[%s209 + $0x98] sm:$0xf]
      %v266 = vld [vmem:[%s209 + $0x9c] sm:$0xf]
      %v267 = vld [vmem:[%s209 + $0xa0] sm:$0xf]
      %v268 = vld [vmem:[%s209 + $0xa4] sm:$0xf]
      %v269 = vld [vmem:[%s209 + $0xa8] sm:$0xf]
      %v270 = vld [vmem:[%s209 + $0xac] sm:$0xf]
      %v271 = vld [vmem:[%s209 + $0xb0] sm:$0xf]
      %v272 = vld [vmem:[%s209 + $0xb4] sm:$0xf]
      %v273 = vld [vmem:[%s209 + $0xb8] sm:$0xf]
      %v274 = vld [vmem:[%s209 + $0xbc] sm:$0xf]
      %v277 = vunpack.c.l.b16 %v225
      %v278 = vunpack.c.h.b16 %v225
      %v279 = vunpack.c.l.b16 %v226
      %v280 = vpack.c.b16 %v277, %v277
      %v281 = vpack.c.b16 %v278, %v278
      %v282 = vpack.c.b16 %v279, %v279
      %v334 = vunpack.c.l.b16 %v227
      %v335 = vunpack.c.l.b16 %v228
      %v336 = vunpack.c.l.b16 %v229
      %v337 = vunpack.c.l.b16 %v230
      %v338 = vunpack.c.l.b16 %v231
      %v339 = vunpack.c.l.b16 %v232
      %v340 = vunpack.c.l.b16 %v233
      %v341 = vunpack.c.l.b16 %v234
      %v342 = vunpack.c.l.b16 %v235
      %v343 = vunpack.c.l.b16 %v236
      %v344 = vunpack.c.l.b16 %v237
      %v345 = vunpack.c.l.b16 %v238
      %v346 = vunpack.c.l.b16 %v239
      %v347 = vunpack.c.l.b16 %v240
      %v348 = vunpack.c.l.b16 %v241
      %v349 = vunpack.c.l.b16 %v242
      %v350 = vunpack.c.l.b16 %v243
      %v351 = vunpack.c.l.b16 %v244
      %v352 = vunpack.c.l.b16 %v245
      %v353 = vunpack.c.l.b16 %v246
      %v354 = vunpack.c.l.b16 %v247
      %v355 = vunpack.c.l.b16 %v248
      %v356 = vunpack.c.l.b16 %v249
      %v357 = vunpack.c.l.b16 %v250
      %v358 = vunpack.c.l.b16 %v251
      %v359 = vunpack.c.l.b16 %v252
      %v360 = vunpack.c.l.b16 %v253
      %v361 = vunpack.c.l.b16 %v254
      %v362 = vunpack.c.l.b16 %v255
      %v363 = vunpack.c.l.b16 %v256
      %v364 = vunpack.c.l.b16 %v257
      %v365 = vunpack.c.l.b16 %v258
      %v366 = vunpack.c.l.b16 %v259
      %v367 = vunpack.c.l.b16 %v260
      %v368 = vunpack.c.l.b16 %v261
      %v369 = vunpack.c.l.b16 %v262
      %v370 = vunpack.c.l.b16 %v263
      %v371 = vunpack.c.l.b16 %v264
      %v372 = vunpack.c.l.b16 %v265
      %v373 = vunpack.c.l.b16 %v266
      %v374 = vunpack.c.l.b16 %v267
      %v375 = vunpack.c.l.b16 %v268
      %v376 = vunpack.c.l.b16 %v269
      %v377 = vunpack.c.l.b16 %v270
      %v378 = vunpack.c.l.b16 %v271
      %v379 = vunpack.c.l.b16 %v272
      %v380 = vunpack.c.l.b16 %v273
      %v381 = vunpack.c.l.b16 %v274
      %v382 = vpack.c.b16 %v335, %v334
      %v383 = vpack.c.b16 %v337, %v336
      %v384 = vpack.c.b16 %v339, %v338
      %v385 = vpack.c.b16 %v341, %v340
      %v386 = vpack.c.b16 %v343, %v342
      %v387 = vpack.c.b16 %v345, %v344
      %v388 = vpack.c.b16 %v347, %v346
      %v389 = vpack.c.b16 %v349, %v348
      %v390 = vpack.c.b16 %v351, %v350
      %v391 = vpack.c.b16 %v353, %v352
      %v392 = vpack.c.b16 %v355, %v354
      %v393 = vpack.c.b16 %v357, %v356
      %v394 = vpack.c.b16 %v359, %v358
      %v395 = vpack.c.b16 %v361, %v360
      %v396 = vpack.c.b16 %v363, %v362
      %v397 = vpack.c.b16 %v365, %v364
      %v398 = vpack.c.b16 %v367, %v366
      %v399 = vpack.c.b16 %v369, %v368
      %v400 = vpack.c.b16 %v371, %v370
      %v401 = vpack.c.b16 %v373, %v372
      %v402 = vpack.c.b16 %v375, %v374
      %v403 = vpack.c.b16 %v377, %v376
      %v404 = vpack.c.b16 %v379, %v378
      %v405 = vpack.c.b16 %v381, %v380
      %430 = vmatprep.subr.bf16.mxu0 0
      %431 = vmatpush1.bf16.msra.mxu0 %v382
      %432 = vmatprep.subr.bf16.mxu0 0
      %433 = vmatpush1.bf16.msra.mxu0 %v383
      %434 = vmatprep.subr.bf16.mxu0 0
      %435 = vmatpush1.bf16.msra.mxu0 %v384
      %436 = vmatprep.subr.bf16.mxu0 0
      %437 = vmatpush1.bf16.msra.mxu0 %v385
      %438 = vmatprep.subr.bf16.mxu0 0
      %439 = vmatpush1.bf16.msra.mxu0 %v386
      %440 = vmatprep.subr.bf16.mxu0 0
      %441 = vmatpush1.bf16.msra.mxu0 %v387
      %442 = vmatprep.subr.bf16.mxu0 0
      %443 = vmatpush1.bf16.msra.mxu0 %v388
      %444 = vmatprep.subr.bf16.mxu0 0
      %445 = vmatpush1.bf16.msra.mxu0 %v389
      %446 = vmatprep.subr.bf16.mxu0 0
      %447 = vmatpush1.bf16.msra.mxu0 %v390
      %448 = vmatprep.subr.bf16.mxu0 0
      %449 = vmatpush1.bf16.msra.mxu0 %v391
      %450 = vmatprep.subr.bf16.mxu0 0
      %451 = vmatpush1.bf16.msra.mxu0 %v392
      %452 = vmatprep.subr.bf16.mxu0 0
      %453 = vmatpush1.bf16.msra.mxu0 %v393
      %454 = vmatprep.subr.bf16.mxu0 0
      %455 = vmatpush1.bf16.msra.mxu0 %v394
      %456 = vmatprep.subr.bf16.mxu0 0
      %457 = vmatpush1.bf16.msra.mxu0 %v395
      %458 = vmatprep.subr.bf16.mxu0 0
      %459 = vmatpush1.bf16.msra.mxu0 %v396
      %460 = vmatprep.subr.bf16.mxu0 0
      %461 = vmatpush1.bf16.msra.mxu0 %v397
      %462 = vmatprep.mubr.bf16.mxu0 %v281
      %463 = vmatmul.mubr.bf16.gmra.mrb[0].mxu0 %v280
      %v464 = vpop.f32.mrb[0].mxu0
      %v465 = vadd.f32 0.0, %v464
      %v466 = vpop.f32.mrb[0].mxu0
      %v467 = vpop.f32.mrb[0].mxu0
      %v468 = vpop.f32.mrb[0].mxu0
      %469 = vdwg.mxu0
      %470 = vmatprep.subr.bf16.mxu0 0
      %471 = vmatpush1.bf16.msra.mxu0 %v398
      %472 = vmatprep.subr.bf16.mxu0 0
      %473 = vmatpush1.bf16.msra.mxu0 %v399
      %474 = vmatprep.subr.bf16.mxu0 0
      %475 = vmatpush1.bf16.msra.mxu0 %v400
      %476 = vmatprep.subr.bf16.mxu0 0
      %477 = vmatpush1.bf16.msra.mxu0 %v401
      %478 = vmatprep.subr.bf16.mxu0 0
      %479 = vmatpush1.bf16.msra.mxu0 %v402
      %480 = vmatprep.subr.bf16.mxu0 0
      %481 = vmatpush1.bf16.msra.mxu0 %v403
      %482 = vmatprep.subr.bf16.mxu0 0
      %483 = vmatpush1.bf16.msra.mxu0 %v404
      %484 = vmatprep.subr.bf16.mxu0 0
      %485 = vmatpush1.bf16.msra.mxu0 %v405
      %486 = vmatprep.subr.bf16.mxu0 0
      %487 = vmatpush1.bf16.msra.mxu0 0
      %488 = vmatprep.subr.bf16.mxu0 0
      %489 = vmatpush1.bf16.msra.mxu0 0
      %490 = vmatprep.subr.bf16.mxu0 0
      %491 = vmatpush1.bf16.msra.mxu0 0
      %492 = vmatprep.subr.bf16.mxu0 0
      %493 = vmatpush1.bf16.msra.mxu0 0
      %494 = vmatprep.subr.bf16.mxu0 0
      %495 = vmatpush1.bf16.msra.mxu0 0
      %496 = vmatprep.subr.bf16.mxu0 0
      %497 = vmatpush1.bf16.msra.mxu0 0
      %498 = vmatprep.subr.bf16.mxu0 0
      %499 = vmatpush1.bf16.msra.mxu0 0
      %500 = vmatprep.subr.bf16.mxu0 0
      %501 = vmatpush1.bf16.msra.mxu0 0
      %502 = vmatprep.mubr.bf16.mxu0 0
      %503 = vmatmul.mubr.bf16.gmra.mrb[0].mxu0 %v282
      %v504 = vpop.f32.mrb[0].mxu0
      %v505 = vadd.f32 %v465, %v504
      %v506 = vpop.f32.mrb[0].mxu0
      %v507 = vpop.f32.mrb[0].mxu0
      %v508 = vpop.f32.mrb[0].mxu0
      %509 = vdwg.mxu0
      %v510 = vadd.f32 %v224, %v505
      %511 = vst [vmem:[#allocation2] sm:$0xff] %v510
      %p512 = scmp.eq.s32.totalorder %s20, 2
      // Predicated region
      $region33: #{resnet_forward.22} parent=27 // pred_check
        %p513 = pneg %p512
      $region34: #{resnet_forward.22} parent=27 // pred_check_branch
        %515 = sbr.rel (%p513) target = $region36
      $region35: #{resnet_forward.22} parent=27 // pred_region
        %v516 = vld [vmem:[#allocation2] sm:$0xff]
        %v517 = vmax.f32 %v516, 0.0
        %518 = vst [vmem:[%s217] sm:$0xff] %v517
      $region36: #{resnet_forward.22} parent=27 // pred_fallthru
        _
      %p519 = scmp.lt.s32.totalorder %s18, 0
      %s520 = scalar_select %p519, %s18, 0
      %p521 = scmp.lt.s32.totalorder %s19, 0
      %s522 = scalar_select %p521, %s19, 0
      %s523 = sadd.s32 %s522, %s520
      %s524 = smul.addr %s523, 8
      %s525 = scalar_lea.vmem %s2, %s524
      // Predicated region
      $region37: #{resnet_forward.22} parent=27 // pred_check
        %p526 = pneg %p108
      $region38: #{resnet_forward.22} parent=27 // pred_check_branch
        %528 = sbr.rel (%p526) target = $region40
      $region39: #{resnet_forward.22} parent=27 // pred_region
        _
      $region40: #{resnet_forward.22} parent=27 // pred_fallthru
        _
      // Predicated region
      $region41: #{resnet_forward.22} parent=27 // pred_check
        %p529 = pneg %p108
      $region42: #{resnet_forward.22} parent=27 // pred_check_branch
        %531 = sbr.rel (%p529) target = $region44
      $region43: #{resnet_forward.22} parent=27 // pred_region
        %p532 = scmp.lt.s32.totalorder %s18, 0
        %s533 = scalar_select %p532, %s18, 0
        %p534 = scmp.lt.s32.totalorder %s19, 0
        %s535 = scalar_select %p534, %s19, 0
        %s536 = sadd.s32 %s535, %s533
        %s537 = smul.addr %s536, 8
        %s538 = scalar_lea.vmem %s2, %s537
      $region44: #{resnet_forward.22} parent=27 // pred_fallthru
        _
    $region28: #{resnet_forward.22} parent=5 // pred_fallthru
      _
    %p539 = scmp.le.s32.totalorder 2, %s8
    // Predicated region
    $region45: #{resnet_forward.22} parent=5 // pred_check
      %p540 = pneg %p539
    $region46: #{resnet_forward.22} parent=5 // pred_check_branch
      %542 = sbr.rel (%p540) target = $region48
    $region47: #{resnet_forward.22} parent=5 // pred_region
      %s543 = ssub.s32 %s8, 2
    $region48: #{resnet_forward.22} parent=5 // pred_fallthru
      _
  $region6: #{resnet_forward.22} parent=0 // loop_footer
    %s12 = sadd.s32 1, %s8
  $region7: #{resnet_forward.22} parent=0 // loop_footer_branch
    %7 = sbr.rel target = $region3
  $region8: #{resnet_forward.22} parent=0 // loop_exit
    _

// kernel: resnet_forward.23
$region0: #{resnet_forward.23}
  #allocation0 [shape = 'u32[]', space=smem, size = 0x4, offset = 0x4, fixed_abs, tag = 'smem constant byte address 0x4 - core index']
  #allocation1 [shape = 'u32[144,128]{1,0:T(1,128)}', space=vmem, size = 0x12000, scoped, tag = 'internal scratch']
  #allocation2 [shape = 'f32[8,128]{1,0:T(8,128)}', space=vmem, size = 0x1000, scoped, tag = 'scratch operand']
  %s0 = inlined_call_operand.vmem [shape: bf16[8,128], index: 0, kind: input, shape index: {}]
  %s1 = inlined_call_operand.vmem [shape: bf16[128,128], index: 1, kind: input, shape index: {}]
  %s2 = inlined_call_operand.vmem [shape: f32[8,128], index: 2, kind: output, shape index: {}]
  %s3 = sld [smem:[#allocation0]]
  $region26: #{resnet_forward.23} parent=0
    _
  %s5 = ssub.s32 1, %s3
  %s6 = scalar_select 0, %s5, %s3
  // Predicated region
  $region2: #{resnet_forward.23} parent=0 // pred_check
    _
  $region3: #{resnet_forward.23} parent=0 // pred_check_branch
    %8 = sbr.rel (0) target = $region5
  $region4: #{resnet_forward.23} parent=0 // pred_region
    _
  $region5: #{resnet_forward.23} parent=0 // pred_fallthru
    _
  // Predicated region
  $region6: #{resnet_forward.23} parent=0 // pred_check
    _
  $region7: #{resnet_forward.23} parent=0 // pred_check_branch
    %10 = sbr.rel (0) target = $region9
  $region8: #{resnet_forward.23} parent=0 // pred_region
    _
  $region9: #{resnet_forward.23} parent=0 // pred_fallthru
    _
  %p12 = scmp.eq.s32.totalorder 0, 0
  // Predicated region
  $region10: #{resnet_forward.23} parent=0 // pred_check
    %p13 = pneg %p12
  $region11: #{resnet_forward.23} parent=0 // pred_check_branch
    %15 = sbr.rel (%p13) target = $region13
  $region12: #{resnet_forward.23} parent=0 // pred_region
    %16 = vst [vmem:[#allocation2] sm:$0xff] 0.0
  $region13: #{resnet_forward.23} parent=0 // pred_fallthru
    _
  %v17 = vld [vmem:[#allocation2] sm:$0xff]
  %v18 = vld [vmem:[%s0] sm:$0xf]
  %v19 = vld [vmem:[%s1] sm:$0xf]
  %v20 = vld [vmem:[%s1 + $0x4] sm:$0xf]
  %v21 = vld [vmem:[%s1 + $0x8] sm:$0xf]
  %v22 = vld [vmem:[%s1 + $0xc] sm:$0xf]
  %v23 = vld [vmem:[%s1 + $0x10] sm:$0xf]
  %v24 = vld [vmem:[%s1 + $0x14] sm:$0xf]
  %v25 = vld [vmem:[%s1 + $0x18] sm:$0xf]
  %v26 = vld [vmem:[%s1 + $0x1c] sm:$0xf]
  %v27 = vld [vmem:[%s1 + $0x20] sm:$0xf]
  %v28 = vld [vmem:[%s1 + $0x24] sm:$0xf]
  %v29 = vld [vmem:[%s1 + $0x28] sm:$0xf]
  %v30 = vld [vmem:[%s1 + $0x2c] sm:$0xf]
  %v31 = vld [vmem:[%s1 + $0x30] sm:$0xf]
  %v32 = vld [vmem:[%s1 + $0x34] sm:$0xf]
  %v33 = vld [vmem:[%s1 + $0x38] sm:$0xf]
  %v34 = vld [vmem:[%s1 + $0x3c] sm:$0xf]
  %v51 = vunpack.c.l.b16 %v19
  %v52 = vunpack.c.l.b16 %v20
  %v53 = vunpack.c.l.b16 %v21
  %v54 = vunpack.c.l.b16 %v22
  %v55 = vunpack.c.l.b16 %v23
  %v56 = vunpack.c.l.b16 %v24
  %v57 = vunpack.c.l.b16 %v25
  %v58 = vunpack.c.l.b16 %v26
  %v59 = vunpack.c.l.b16 %v27
  %v60 = vunpack.c.l.b16 %v28
  %v61 = vunpack.c.l.b16 %v29
  %v62 = vunpack.c.l.b16 %v30
  %v63 = vunpack.c.l.b16 %v31
  %v64 = vunpack.c.l.b16 %v32
  %v65 = vunpack.c.l.b16 %v33
  %v66 = vunpack.c.l.b16 %v34
  %v67 = vpack.c.b16 %v52, %v51
  %v68 = vpack.c.b16 %v54, %v53
  %v69 = vpack.c.b16 %v56, %v55
  %v70 = vpack.c.b16 %v58, %v57
  %v71 = vpack.c.b16 %v60, %v59
  %v72 = vpack.c.b16 %v62, %v61
  %v73 = vpack.c.b16 %v64, %v63
  %v74 = vpack.c.b16 %v66, %v65
  %83 = vmatprep.subr.bf16.mxu0 0
  %84 = vmatpush1.bf16.msra.mxu0 %v67
  %85 = vmatprep.subr.bf16.mxu0 0
  %86 = vmatpush1.bf16.msra.mxu0 %v68
  %87 = vmatprep.subr.bf16.mxu0 0
  %88 = vmatpush1.bf16.msra.mxu0 %v69
  %89 = vmatprep.subr.bf16.mxu0 0
  %90 = vmatpush1.bf16.msra.mxu0 %v70
  %91 = vmatprep.subr.bf16.mxu0 0
  %92 = vmatpush1.bf16.msra.mxu0 %v71
  %93 = vmatprep.subr.bf16.mxu0 0
  %94 = vmatpush1.bf16.msra.mxu0 %v72
  %95 = vmatprep.subr.bf16.mxu0 0
  %96 = vmatpush1.bf16.msra.mxu0 %v73
  %97 = vmatprep.subr.bf16.mxu0 0
  %98 = vmatpush1.bf16.msra.mxu0 %v74
  %99 = vmatprep.subr.bf16.mxu0 0
  %100 = vmatpush1.bf16.msra.mxu0 0
  %101 = vmatprep.subr.bf16.mxu0 0
  %102 = vmatpush1.bf16.msra.mxu0 0
  %103 = vmatprep.subr.bf16.mxu0 0
  %104 = vmatpush1.bf16.msra.mxu0 0
  %105 = vmatprep.subr.bf16.mxu0 0
  %106 = vmatpush1.bf16.msra.mxu0 0
  %107 = vmatprep.subr.bf16.mxu0 0
  %108 = vmatpush1.bf16.msra.mxu0 0
  %109 = vmatprep.subr.bf16.mxu0 0
  %110 = vmatpush1.bf16.msra.mxu0 0
  %111 = vmatprep.subr.bf16.mxu0 0
  %112 = vmatpush1.bf16.msra.mxu0 0
  %113 = vmatprep.subr.bf16.mxu0 0
  %114 = vmatpush1.bf16.msra.mxu0 0
  %115 = vmatprep.mubr.bf16.mxu0 0
  %116 = vmatmul.mubr.bf16.gmra.mrb[0].mxu0 %v18
  %v117 = vpop.f32.mrb[0].mxu0
  %v118 = vadd.f32 0.0, %v117
  %v119 = vpop.f32.mrb[0].mxu0
  %v120 = vpop.f32.mrb[0].mxu0
  %v121 = vpop.f32.mrb[0].mxu0
  %122 = vdwg.mxu0
  %v123 = vadd.f32 %v17, %v118
  %124 = vst [vmem:[#allocation2] sm:$0xff] %v123
  // Predicated region
  $region14: #{resnet_forward.23} parent=0 // pred_check
    %p125 = pneg %p12
  $region15: #{resnet_forward.23} parent=0 // pred_check_branch
    %127 = sbr.rel (%p125) target = $region17
  $region16: #{resnet_forward.23} parent=0 // pred_region
    %v128 = vld [vmem:[#allocation2] sm:$0xff]
    %129 = vst [vmem:[%s2] sm:$0xff] %v128
  $region17: #{resnet_forward.23} parent=0 // pred_fallthru
    _
  // Predicated region
  $region18: #{resnet_forward.23} parent=0 // pred_check
    _
  $region19: #{resnet_forward.23} parent=0 // pred_check_branch
    %131 = sbr.rel (0) target = $region21
  $region20: #{resnet_forward.23} parent=0 // pred_region
    _
  $region21: #{resnet_forward.23} parent=0 // pred_fallthru
    _
  // Predicated region
  $region22: #{resnet_forward.23} parent=0 // pred_check
    _
  $region23: #{resnet_forward.23} parent=0 // pred_check_branch
    %133 = sbr.rel (0) target = $region25
  $region24: #{resnet_forward.23} parent=0 // pred_region
    _
  $region25: #{resnet_forward.23} parent=0 // pred_fallthru
    _

// kernel: resnet_forward.24
$region0: #{resnet_forward.24}
  #allocation0 [shape = 'u32[]', space=smem, size = 0x4, offset = 0x4, fixed_abs, tag = 'smem constant byte address 0x4 - core index']
  #allocation1 [shape = 'u32[144,128]{1,0:T(1,128)}', space=vmem, size = 0x12000, scoped, tag = 'internal scratch']
  #allocation2 [shape = 'f32[8,128]{1,0:T(8,128)}', space=vmem, size = 0x1000, scoped, tag = 'scratch operand']
  %s0 = inlined_call_operand.vmem [shape: bf16[8,1152], index: 0, kind: input, shape index: {}]
  %s1 = inlined_call_operand.vmem [shape: bf16[1152,128], index: 1, kind: input, shape index: {}]
  %s2 = inlined_call_operand.vmem [shape: f32[8,128], index: 2, kind: input, shape index: {}]
  %s3 = inlined_call_operand.vmem [shape: f32[8,128], index: 3, kind: output, shape index: {}]
  %s4 = sld [smem:[#allocation0]]
  $region53: #{resnet_forward.24} parent=0
    _
  %s6 = ssub.s32 1, %s4
  %s7 = scalar_select 0, %s6, %s4
  loop: start=0, step=1, limit=5
  $region2: #{resnet_forward.24} parent=0 // loop_pre_header
    _
  $region3: #{resnet_forward.24} parent=0 // loop_header
    %s9 = sphi 0, %s13
    %p10 = scmp.ge.s32.totalorder %s9, 5
    %s16 = sphi 0, %s35
    %s17 = sphi 0, %s31
    %s18 = sphi 0, %s27
    %s19 = sphi 0, %s16
    %s20 = sphi 0, %s17
    %s21 = sphi 0, %s18
    %s22 = sphi 0, %s19
    %s23 = sphi 0, %s20
    %s24 = sphi 0, %s21
    %s40 = sphi 0, %s42
    %s43 = sphi 0, %s40
    %s44 = sphi 0, %s43
    %s60 = sphi 0, %s44
    %s68 = sphi 0, %s70
    %s71 = sphi 0, %s68
    %s72 = sphi 0, %s71
    %s88 = sphi 0, %s72
    %s96 = sphi 0, %s98
    %s99 = sphi 0, %s96
    %s100 = sphi 0, %s99
    %s116 = sphi 0, %s100
    %s124 = sphi 0, %s126
    %s127 = sphi 0, %s124
    %s128 = sphi 0, %s127
    %s144 = sphi 0, %s128
  $region4: #{resnet_forward.24} parent=0 // loop_header_branch
    %12 = sbr.rel (%p10) target = $region8
  $region5: #{resnet_forward.24} parent=0 // loop_body
    %s14 = ssub.s32 %s9, 1
    %s15 = ssub.s32 %s9, 2
    %s25 = sadd.s32 1, %s18
    %p26 = scmp.ge.s32.totalorder %s25, 3
    %s27 = scalar_select %p26, 0, %s25
    %s28 = sadd.s32 1, %s17
    %s29 = scalar_select %p26, %s28, %s17
    %p30 = scmp.ge.s32.totalorder %s29, 1
    %s31 = scalar_select %p30, 0, %s29
    %s32 = sadd.s32 1, %s16
    %s33 = scalar_select %p30, %s32, %s16
    %p34 = scmp.ge.s32.totalorder %s33, 1
    %s35 = scalar_select %p34, 0, %s33
    %s36 = ssub.s32 %s16, %s35
    %s37 = ssub.s32 %s18, %s27
    %s38 = sor.u32 %s36, %s37
    %p39 = scmp.eq.s32.totalorder %s38, 0
    %s41 = sadd.s32 %s40, 1
    %s42 = scalar_select %p39, %s40, %s41
    %p45 = pneg %p39
    %p46 = scmp.eq.s32.totalorder %s9, 2
    %p47 = por %p45, %p46
    %p48 = scmp.ne.s32.totalorder %s40, %s43
    %p49 = scmp.eq.s32.totalorder %s9, 0
    %p50 = por %p48, %p49
    %p51 = scmp.ne.s32.totalorder %s40, %s43
    %p52 = scmp.eq.s32.totalorder %s14, 2
    %p53 = por %p51, %p52
    %p54 = scmp.ne.s32.totalorder %s43, %s44
    %p55 = scmp.eq.s32.totalorder %s14, 0
    %p56 = por %p54, %p55
    %p57 = scmp.ne.s32.totalorder %s43, %s44
    %p58 = scmp.eq.s32.totalorder %s15, 2
    %p59 = por %p57, %p58
    %p61 = scmp.ne.s32.totalorder %s44, %s60
    %p62 = scmp.eq.s32.totalorder %s15, 0
    %p63 = por %p61, %p62
    %s64 = ssub.s32 %s18, %s27
    %s65 = ssub.s32 %s17, %s31
    %s66 = sor.u32 %s64, %s65
    %p67 = scmp.eq.s32.totalorder %s66, 0
    %s69 = sadd.s32 %s68, 1
    %s70 = scalar_select %p67, %s68, %s69
    %p73 = pneg %p67
    %p74 = scmp.eq.s32.totalorder %s9, 2
    %p75 = por %p73, %p74
    %p76 = scmp.ne.s32.totalorder %s68, %s71
    %p77 = scmp.eq.s32.totalorder %s9, 0
    %p78 = por %p76, %p77
    %p79 = scmp.ne.s32.totalorder %s68, %s71
    %p80 = scmp.eq.s32.totalorder %s14, 2
    %p81 = por %p79, %p80
    %p82 = scmp.ne.s32.totalorder %s71, %s72
    %p83 = scmp.eq.s32.totalorder %s14, 0
    %p84 = por %p82, %p83
    %p85 = scmp.ne.s32.totalorder %s71, %s72
    %p86 = scmp.eq.s32.totalorder %s15, 2
    %p87 = por %p85, %p86
    %p89 = scmp.ne.s32.totalorder %s72, %s88
    %p90 = scmp.eq.s32.totalorder %s15, 0
    %p91 = por %p89, %p90
    %s92 = ssub.s32 %s16, %s35
    %s93 = ssub.s32 %s17, %s31
    %s94 = sor.u32 %s92, %s93
    %p95 = scmp.eq.s32.totalorder %s94, 0
    %s97 = sadd.s32 %s96, 1
    %s98 = scalar_select %p95, %s96, %s97
    %p101 = pneg %p95
    %p102 = scmp.eq.s32.totalorder %s9, 2
    %p103 = por %p101, %p102
    %p104 = scmp.ne.s32.totalorder %s96, %s99
    %p105 = scmp.eq.s32.totalorder %s9, 0
    %p106 = por %p104, %p105
    %p107 = scmp.ne.s32.totalorder %s96, %s99
    %p108 = scmp.eq.s32.totalorder %s14, 2
    %p109 = por %p107, %p108
    %p110 = scmp.ne.s32.totalorder %s99, %s100
    %p111 = scmp.eq.s32.totalorder %s14, 0
    %p112 = por %p110, %p111
    %p113 = scmp.ne.s32.totalorder %s99, %s100
    %p114 = scmp.eq.s32.totalorder %s15, 2
    %p115 = por %p113, %p114
    %p117 = scmp.ne.s32.totalorder %s100, %s116
    %p118 = scmp.eq.s32.totalorder %s15, 0
    %p119 = por %p117, %p118
    %s120 = ssub.s32 %s16, %s35
    %s121 = ssub.s32 %s17, %s31
    %s122 = sor.u32 %s120, %s121
    %p123 = scmp.eq.s32.totalorder %s122, 0
    %s125 = sadd.s32 %s124, 1
    %s126 = scalar_select %p123, %s124, %s125
    %p129 = pneg %p123
    %p130 = scmp.eq.s32.totalorder %s9, 2
    %p131 = por %p129, %p130
    %p132 = scmp.ne.s32.totalorder %s124, %s127
    %p133 = scmp.eq.s32.totalorder %s9, 0
    %p134 = por %p132, %p133
    %p135 = scmp.ne.s32.totalorder %s124, %s127
    %p136 = scmp.eq.s32.totalorder %s14, 2
    %p137 = por %p135, %p136
    %p138 = scmp.ne.s32.totalorder %s127, %s128
    %p139 = scmp.eq.s32.totalorder %s14, 0
    %p140 = por %p138, %p139
    %p141 = scmp.ne.s32.totalorder %s127, %s128
    %p142 = scmp.eq.s32.totalorder %s15, 2
    %p143 = por %p141, %p142
    %p145 = scmp.ne.s32.totalorder %s128, %s144
    %p146 = scmp.eq.s32.totalorder %s15, 0
    %p147 = por %p145, %p146
    %p148 = scmp.le.s32.totalorder 1, %s9
    %p149 = scmp.lt.s32.totalorder %s9, 4
    %p150 = pnand %p148, %p149
    %p151 = pneg %p150
    // Predicated region
    $region9: #{resnet_forward.24} parent=5 // pred_check
      _
    $region10: #{resnet_forward.24} parent=5 // pred_check_branch
      %153 = sbr.rel (%p150) target = $region12
    $region11: #{resnet_forward.24} parent=5 // pred_region
      %s154 = ssub.s32 %s9, 1
      // Predicated region
      $region13: #{resnet_forward.24} parent=11 // pred_check
        %p155 = pneg %p112
      $region14: #{resnet_forward.24} parent=11 // pred_check_branch
        %157 = sbr.rel (%p155) target = $region16
      $region15: #{resnet_forward.24} parent=11 // pred_region
        %p158 = scmp.lt.s32.totalorder %s19, 0
        %s159 = scalar_select %p158, %s19, 0
        %p160 = scmp.lt.s32.totalorder %s20, 0
        %s161 = scalar_select %p160, %s20, 0
        %s162 = sadd.s32 %s161, %s159
        %s163 = smul.addr %s162, 8
        %s164 = scalar_lea.vmem %s2, %s163
      $region16: #{resnet_forward.24} parent=11 // pred_fallthru
        _
    $region12: #{resnet_forward.24} parent=5 // pred_fallthru
      _
    %p165 = scmp.lt.s32.totalorder %s9, 3
    // Predicated region
    $region17: #{resnet_forward.24} parent=5 // pred_check
      %p166 = pneg %p165
    $region18: #{resnet_forward.24} parent=5 // pred_check_branch
      %168 = sbr.rel (%p166) target = $region20
    $region19: #{resnet_forward.24} parent=5 // pred_region
      // Predicated region
      $region21: #{resnet_forward.24} parent=19 // pred_check
        %p169 = pneg %p50
      $region22: #{resnet_forward.24} parent=19 // pred_check_branch
        %171 = sbr.rel (%p169) target = $region24
      $region23: #{resnet_forward.24} parent=19 // pred_region
        %s172 = smul.u32 3, %s18
        %p173 = scmp.lt.s32.totalorder %s16, 0
        %s174 = scalar_select %p173, %s16, 0
        %p175 = scmp.lt.s32.totalorder %s172, 8
        %s176 = scalar_select %p175, %s172, 8
        %s177 = smul.addr %s174, 9
        %s178 = sadd.s32 %s176, %s177
        %s179 = smul.addr %s178, 4
        %s180 = scalar_lea.vmem %s0, %s179
        %s181 = smul.u32 3, %s18
      $region24: #{resnet_forward.24} parent=19 // pred_fallthru
        _
      // Predicated region
      $region25: #{resnet_forward.24} parent=19 // pred_check
        %p182 = pneg %p78
      $region26: #{resnet_forward.24} parent=19 // pred_check_branch
        %184 = sbr.rel (%p182) target = $region28
      $region27: #{resnet_forward.24} parent=19 // pred_region
        %s185 = smul.u32 48, %s18
        %p186 = scmp.lt.s32.totalorder %s185, 143
        %s187 = scalar_select %p186, %s185, 143
        %p188 = scmp.lt.s32.totalorder %s17, 0
        %s189 = scalar_select %p188, %s17, 0
        %s190 = sadd.s32 %s189, %s187
        %s191 = smul.addr %s190, 4
        %s192 = scalar_lea.vmem %s1, %s191
        %s193 = smul.u32 48, %s18
      $region28: #{resnet_forward.24} parent=19 // pred_fallthru
        _
    $region20: #{resnet_forward.24} parent=5 // pred_fallthru
      _
    %p194 = scmp.le.s32.totalorder 1, %s9
    %p195 = scmp.lt.s32.totalorder %s9, 4
    %p196 = pnand %p194, %p195
    %p197 = pneg %p196
    // Predicated region
    $region29: #{resnet_forward.24} parent=5 // pred_check
      _
    $region30: #{resnet_forward.24} parent=5 // pred_check_branch
      %199 = sbr.rel (%p196) target = $region32
    $region31: #{resnet_forward.24} parent=5 // pred_region
      %s200 = ssub.s32 %s9, 1
      %s201 = smul.u32 3, %s21
      %p202 = scmp.lt.s32.totalorder %s19, 0
      %s203 = scalar_select %p202, %s19, 0
      %p204 = scmp.lt.s32.totalorder %s201, 8
      %s205 = scalar_select %p204, %s201, 8
      %s206 = smul.addr %s203, 9
      %s207 = sadd.s32 %s205, %s206
      %s208 = smul.addr %s207, 4
      %s209 = scalar_lea.vmem %s0, %s208
      %p210 = pneg %p56
      %p211 = pneg %p53
      %s212 = smul.u32 48, %s21
      %p213 = scmp.lt.s32.totalorder %s212, 143
      %s214 = scalar_select %p213, %s212, 143
      %p215 = scmp.lt.s32.totalorder %s20, 0
      %s216 = scalar_select %p215, %s20, 0
      %s217 = sadd.s32 %s216, %s214
      %s218 = smul.addr %s217, 4
      %s219 = scalar_lea.vmem %s1, %s218
      %p220 = pneg %p84
      %p221 = pneg %p81
      %p222 = scmp.lt.s32.totalorder %s19, 0
      %s223 = scalar_select %p222, %s19, 0
      %p224 = scmp.lt.s32.totalorder %s20, 0
      %s225 = scalar_select %p224, %s20, 0
      %s226 = sadd.s32 %s225, %s223
      %s227 = smul.addr %s226, 8
      %s228 = scalar_lea.vmem %s2, %s227
      %p229 = pneg %p112
      %p230 = pneg %p109
      %p231 = pneg %p140
      %p232 = pneg %p137
      %p233 = scmp.lt.s32.totalorder %s19, 0
      %s234 = scalar_select %p233, %s19, 0
      %p235 = scmp.lt.s32.totalorder %s20, 0
      %s236 = scalar_select %p235, %s20, 0
      %s237 = sadd.s32 %s236, %s234
      %s238 = smul.addr %s237, 8
      %s239 = scalar_lea.vmem %s3, %s238
      %s240 = smul.u32 3, %s21
      %p241 = scmp.lt.s32.totalorder %s19, 0
      %s242 = scalar_select %p241, %s19, 0
      %p243 = scmp.lt.s32.totalorder %s240, 8
      %s244 = scalar_select %p243, %s240, 8
      %s245 = smul.addr %s242, 9
      %s246 = sadd.s32 %s244, %s245
      %s247 = smul.addr %s246, 4
      %s248 = scalar_lea.vmem %s0, %s247
      %s249 = smul.u32 3, %s21
      %s250 = smul.u32 48, %s21
      %p251 = scmp.lt.s32.totalorder %s250, 143
      %s252 = scalar_select %p251, %s250, 143
      %p253 = scmp.lt.s32.totalorder %s20, 0
      %s254 = scalar_select %p253, %s20, 0
      %s255 = sadd.s32 %s254, %s252
      %s256 = smul.addr %s255, 4
      %s257 = scalar_lea.vmem %s1, %s256
      %s258 = smul.u32 48, %s21
      %p259 = scmp.lt.s32.totalorder %s19, 0
      %s260 = scalar_select %p259, %s19, 0
      %p261 = scmp.lt.s32.totalorder %s20, 0
      %s262 = scalar_select %p261, %s20, 0
      %s263 = sadd.s32 %s262, %s260
      %s264 = smul.addr %s263, 8
      %s265 = scalar_lea.vmem %s2, %s264
      %p266 = scmp.lt.s32.totalorder %s19, 0
      %s267 = scalar_select %p266, %s19, 0
      %p268 = scmp.lt.s32.totalorder %s20, 0
      %s269 = scalar_select %p268, %s20, 0
      %s270 = sadd.s32 %s269, %s267
      %s271 = smul.addr %s270, 8
      %s272 = scalar_lea.vmem %s3, %s271
      %p274 = scmp.eq.s32.totalorder %s21, 0
      // Predicated region
      $region33: #{resnet_forward.24} parent=31 // pred_check
        %p275 = pneg %p274
      $region34: #{resnet_forward.24} parent=31 // pred_check_branch
        %277 = sbr.rel (%p275) target = $region36
      $region35: #{resnet_forward.24} parent=31 // pred_region
        %278 = vst [vmem:[#allocation2] sm:$0xff] 0.0
      $region36: #{resnet_forward.24} parent=31 // pred_fallthru
        _
      %v279 = vld [vmem:[#allocation2] sm:$0xff]
      %v280 = vld [vmem:[%s248] sm:$0xff]
      %v281 = vld [vmem:[%s248 + $0x8] sm:$0xf]
      %v282 = vld [vmem:[%s257] sm:$0xf]
      %v283 = vld [vmem:[%s257 + $0x4] sm:$0xf]
      %v284 = vld [vmem:[%s257 + $0x8] sm:$0xf]
      %v285 = vld [vmem:[%s257 + $0xc] sm:$0xf]
      %v286 = vld [vmem:[%s257 + $0x10] sm:$0xf]
      %v287 = vld [vmem:[%s257 + $0x14] sm:$0xf]
      %v288 = vld [vmem:[%s257 + $0x18] sm:$0xf]
      %v289 = vld [vmem:[%s257 + $0x1c] sm:$0xf]
      %v290 = vld [vmem:[%s257 + $0x20] sm:$0xf]
      %v291 = vld [vmem:[%s257 + $0x24] sm:$0xf]
      %v292 = vld [vmem:[%s257 + $0x28] sm:$0xf]
      %v293 = vld [vmem:[%s257 + $0x2c] sm:$0xf]
      %v294 = vld [vmem:[%s257 + $0x30] sm:$0xf]
      %v295 = vld [vmem:[%s257 + $0x34] sm:$0xf]
      %v296 = vld [vmem:[%s257 + $0x38] sm:$0xf]
      %v297 = vld [vmem:[%s257 + $0x3c] sm:$0xf]
      %v298 = vld [vmem:[%s257 + $0x40] sm:$0xf]
      %v299 = vld [vmem:[%s257 + $0x44] sm:$0xf]
      %v300 = vld [vmem:[%s257 + $0x48] sm:$0xf]
      %v301 = vld [vmem:[%s257 + $0x4c] sm:$0xf]
      %v302 = vld [vmem:[%s257 + $0x50] sm:$0xf]
      %v303 = vld [vmem:[%s257 + $0x54] sm:$0xf]
      %v304 = vld [vmem:[%s257 + $0x58] sm:$0xf]
      %v305 = vld [vmem:[%s257 + $0x5c] sm:$0xf]
      %v306 = vld [vmem:[%s257 + $0x60] sm:$0xf]
      %v307 = vld [vmem:[%s257 + $0x64] sm:$0xf]
      %v308 = vld [vmem:[%s257 + $0x68] sm:$0xf]
      %v309 = vld [vmem:[%s257 + $0x6c] sm:$0xf]
      %v310 = vld [vmem:[%s257 + $0x70] sm:$0xf]
      %v311 = vld [vmem:[%s257 + $0x74] sm:$0xf]
      %v312 = vld [vmem:[%s257 + $0x78] sm:$0xf]
      %v313 = vld [vmem:[%s257 + $0x7c] sm:$0xf]
      %v314 = vld [vmem:[%s257 + $0x80] sm:$0xf]
      %v315 = vld [vmem:[%s257 + $0x84] sm:$0xf]
      %v316 = vld [vmem:[%s257 + $0x88] sm:$0xf]
      %v317 = vld [vmem:[%s257 + $0x8c] sm:$0xf]
      %v318 = vld [vmem:[%s257 + $0x90] sm:$0xf]
      %v319 = vld [vmem:[%s257 + $0x94] sm:$0xf]
      %v320 = vld [vmem:[%s257 + $0x98] sm:$0xf]
      %v321 = vld [vmem:[%s257 + $0x9c] sm:$0xf]
      %v322 = vld [vmem:[%s257 + $0xa0] sm:$0xf]
      %v323 = vld [vmem:[%s257 + $0xa4] sm:$0xf]
      %v324 = vld [vmem:[%s257 + $0xa8] sm:$0xf]
      %v325 = vld [vmem:[%s257 + $0xac] sm:$0xf]
      %v326 = vld [vmem:[%s257 + $0xb0] sm:$0xf]
      %v327 = vld [vmem:[%s257 + $0xb4] sm:$0xf]
      %v328 = vld [vmem:[%s257 + $0xb8] sm:$0xf]
      %v329 = vld [vmem:[%s257 + $0xbc] sm:$0xf]
      %v332 = vunpack.c.l.b16 %v280
      %v333 = vunpack.c.h.b16 %v280
      %v334 = vunpack.c.l.b16 %v281
      %v335 = vpack.c.b16 %v332, %v332
      %v336 = vpack.c.b16 %v333, %v333
      %v337 = vpack.c.b16 %v334, %v334
      %v389 = vunpack.c.l.b16 %v282
      %v390 = vunpack.c.l.b16 %v283
      %v391 = vunpack.c.l.b16 %v284
      %v392 = vunpack.c.l.b16 %v285
      %v393 = vunpack.c.l.b16 %v286
      %v394 = vunpack.c.l.b16 %v287
      %v395 = vunpack.c.l.b16 %v288
      %v396 = vunpack.c.l.b16 %v289
      %v397 = vunpack.c.l.b16 %v290
      %v398 = vunpack.c.l.b16 %v291
      %v399 = vunpack.c.l.b16 %v292
      %v400 = vunpack.c.l.b16 %v293
      %v401 = vunpack.c.l.b16 %v294
      %v402 = vunpack.c.l.b16 %v295
      %v403 = vunpack.c.l.b16 %v296
      %v404 = vunpack.c.l.b16 %v297
      %v405 = vunpack.c.l.b16 %v298
      %v406 = vunpack.c.l.b16 %v299
      %v407 = vunpack.c.l.b16 %v300
      %v408 = vunpack.c.l.b16 %v301
      %v409 = vunpack.c.l.b16 %v302
      %v410 = vunpack.c.l.b16 %v303
      %v411 = vunpack.c.l.b16 %v304
      %v412 = vunpack.c.l.b16 %v305
      %v413 = vunpack.c.l.b16 %v306
      %v414 = vunpack.c.l.b16 %v307
      %v415 = vunpack.c.l.b16 %v308
      %v416 = vunpack.c.l.b16 %v309
      %v417 = vunpack.c.l.b16 %v310
      %v418 = vunpack.c.l.b16 %v311
      %v419 = vunpack.c.l.b16 %v312
      %v420 = vunpack.c.l.b16 %v313
      %v421 = vunpack.c.l.b16 %v314
      %v422 = vunpack.c.l.b16 %v315
      %v423 = vunpack.c.l.b16 %v316
      %v424 = vunpack.c.l.b16 %v317
      %v425 = vunpack.c.l.b16 %v318
      %v426 = vunpack.c.l.b16 %v319
      %v427 = vunpack.c.l.b16 %v320
      %v428 = vunpack.c.l.b16 %v321
      %v429 = vunpack.c.l.b16 %v322
      %v430 = vunpack.c.l.b16 %v323
      %v431 = vunpack.c.l.b16 %v324
      %v432 = vunpack.c.l.b16 %v325
      %v433 = vunpack.c.l.b16 %v326
      %v434 = vunpack.c.l.b16 %v327
      %v435 = vunpack.c.l.b16 %v328
      %v436 = vunpack.c.l.b16 %v329
      %v437 = vpack.c.b16 %v390, %v389
      %v438 = vpack.c.b16 %v392, %v391
      %v439 = vpack.c.b16 %v394, %v393
      %v440 = vpack.c.b16 %v396, %v395
      %v441 = vpack.c.b16 %v398, %v397
      %v442 = vpack.c.b16 %v400, %v399
      %v443 = vpack.c.b16 %v402, %v401
      %v444 = vpack.c.b16 %v404, %v403
      %v445 = vpack.c.b16 %v406, %v405
      %v446 = vpack.c.b16 %v408, %v407
      %v447 = vpack.c.b16 %v410, %v409
      %v448 = vpack.c.b16 %v412, %v411
      %v449 = vpack.c.b16 %v414, %v413
      %v450 = vpack.c.b16 %v416, %v415
      %v451 = vpack.c.b16 %v418, %v417
      %v452 = vpack.c.b16 %v420, %v419
      %v453 = vpack.c.b16 %v422, %v421
      %v454 = vpack.c.b16 %v424, %v423
      %v455 = vpack.c.b16 %v426, %v425
      %v456 = vpack.c.b16 %v428, %v427
      %v457 = vpack.c.b16 %v430, %v429
      %v458 = vpack.c.b16 %v432, %v431
      %v459 = vpack.c.b16 %v434, %v433
      %v460 = vpack.c.b16 %v436, %v435
      %485 = vmatprep.subr.bf16.mxu0 0
      %486 = vmatpush1.bf16.msra.mxu0 %v437
      %487 = vmatprep.subr.bf16.mxu0 0
      %488 = vmatpush1.bf16.msra.mxu0 %v438
      %489 = vmatprep.subr.bf16.mxu0 0
      %490 = vmatpush1.bf16.msra.mxu0 %v439
      %491 = vmatprep.subr.bf16.mxu0 0
      %492 = vmatpush1.bf16.msra.mxu0 %v440
      %493 = vmatprep.subr.bf16.mxu0 0
      %494 = vmatpush1.bf16.msra.mxu0 %v441
      %495 = vmatprep.subr.bf16.mxu0 0
      %496 = vmatpush1.bf16.msra.mxu0 %v442
      %497 = vmatprep.subr.bf16.mxu0 0
      %498 = vmatpush1.bf16.msra.mxu0 %v443
      %499 = vmatprep.subr.bf16.mxu0 0
      %500 = vmatpush1.bf16.msra.mxu0 %v444
      %501 = vmatprep.subr.bf16.mxu0 0
      %502 = vmatpush1.bf16.msra.mxu0 %v445
      %503 = vmatprep.subr.bf16.mxu0 0
      %504 = vmatpush1.bf16.msra.mxu0 %v446
      %505 = vmatprep.subr.bf16.mxu0 0
      %506 = vmatpush1.bf16.msra.mxu0 %v447
      %507 = vmatprep.subr.bf16.mxu0 0
      %508 = vmatpush1.bf16.msra.mxu0 %v448
      %509 = vmatprep.subr.bf16.mxu0 0
      %510 = vmatpush1.bf16.msra.mxu0 %v449
      %511 = vmatprep.subr.bf16.mxu0 0
      %512 = vmatpush1.bf16.msra.mxu0 %v450
      %513 = vmatprep.subr.bf16.mxu0 0
      %514 = vmatpush1.bf16.msra.mxu0 %v451
      %515 = vmatprep.subr.bf16.mxu0 0
      %516 = vmatpush1.bf16.msra.mxu0 %v452
      %517 = vmatprep.mubr.bf16.mxu0 %v336
      %518 = vmatmul.mubr.bf16.gmra.mrb[0].mxu0 %v335
      %v519 = vpop.f32.mrb[0].mxu0
      %v520 = vadd.f32 0.0, %v519
      %v521 = vpop.f32.mrb[0].mxu0
      %v522 = vpop.f32.mrb[0].mxu0
      %v523 = vpop.f32.mrb[0].mxu0
      %524 = vdwg.mxu0
      %525 = vmatprep.subr.bf16.mxu0 0
      %526 = vmatpush1.bf16.msra.mxu0 %v453
      %527 = vmatprep.subr.bf16.mxu0 0
      %528 = vmatpush1.bf16.msra.mxu0 %v454
      %529 = vmatprep.subr.bf16.mxu0 0
      %530 = vmatpush1.bf16.msra.mxu0 %v455
      %531 = vmatprep.subr.bf16.mxu0 0
      %532 = vmatpush1.bf16.msra.mxu0 %v456
      %533 = vmatprep.subr.bf16.mxu0 0
      %534 = vmatpush1.bf16.msra.mxu0 %v457
      %535 = vmatprep.subr.bf16.mxu0 0
      %536 = vmatpush1.bf16.msra.mxu0 %v458
      %537 = vmatprep.subr.bf16.mxu0 0
      %538 = vmatpush1.bf16.msra.mxu0 %v459
      %539 = vmatprep.subr.bf16.mxu0 0
      %540 = vmatpush1.bf16.msra.mxu0 %v460
      %541 = vmatprep.subr.bf16.mxu0 0
      %542 = vmatpush1.bf16.msra.mxu0 0
      %543 = vmatprep.subr.bf16.mxu0 0
      %544 = vmatpush1.bf16.msra.mxu0 0
      %545 = vmatprep.subr.bf16.mxu0 0
      %546 = vmatpush1.bf16.msra.mxu0 0
      %547 = vmatprep.subr.bf16.mxu0 0
      %548 = vmatpush1.bf16.msra.mxu0 0
      %549 = vmatprep.subr.bf16.mxu0 0
      %550 = vmatpush1.bf16.msra.mxu0 0
      %551 = vmatprep.subr.bf16.mxu0 0
      %552 = vmatpush1.bf16.msra.mxu0 0
      %553 = vmatprep.subr.bf16.mxu0 0
      %554 = vmatpush1.bf16.msra.mxu0 0
      %555 = vmatprep.subr.bf16.mxu0 0
      %556 = vmatpush1.bf16.msra.mxu0 0
      %557 = vmatprep.mubr.bf16.mxu0 0
      %558 = vmatmul.mubr.bf16.gmra.mrb[0].mxu0 %v337
      %v559 = vpop.f32.mrb[0].mxu0
      %v560 = vadd.f32 %v520, %v559
      %v561 = vpop.f32.mrb[0].mxu0
      %v562 = vpop.f32.mrb[0].mxu0
      %v563 = vpop.f32.mrb[0].mxu0
      %564 = vdwg.mxu0
      %v565 = vadd.f32 %v279, %v560
      %566 = vst [vmem:[#allocation2] sm:$0xff] %v565
      %p567 = scmp.eq.s32.totalorder %s21, 2
      // Predicated region
      $region37: #{resnet_forward.24} parent=31 // pred_check
        %p568 = pneg %p567
      $region38: #{resnet_forward.24} parent=31 // pred_check_branch
        %570 = sbr.rel (%p568) target = $region40
      $region39: #{resnet_forward.24} parent=31 // pred_region
        %v571 = vld [vmem:[#allocation2] sm:$0xff]
        %v572 = vld [vmem:[%s265] sm:$0xff]
        %v573 = vadd.f32 %v571, %v572
        %v574 = vmax.f32 %v573, 0.0
        %575 = vst [vmem:[%s272] sm:$0xff] %v574
      $region40: #{resnet_forward.24} parent=31 // pred_fallthru
        _
      %p576 = scmp.lt.s32.totalorder %s19, 0
      %s577 = scalar_select %p576, %s19, 0
      %p578 = scmp.lt.s32.totalorder %s20, 0
      %s579 = scalar_select %p578, %s20, 0
      %s580 = sadd.s32 %s579, %s577
      %s581 = smul.addr %s580, 8
      %s582 = scalar_lea.vmem %s3, %s581
      // Predicated region
      $region41: #{resnet_forward.24} parent=31 // pred_check
        %p583 = pneg %p137
      $region42: #{resnet_forward.24} parent=31 // pred_check_branch
        %585 = sbr.rel (%p583) target = $region44
      $region43: #{resnet_forward.24} parent=31 // pred_region
        _
      $region44: #{resnet_forward.24} parent=31 // pred_fallthru
        _
      // Predicated region
      $region45: #{resnet_forward.24} parent=31 // pred_check
        %p586 = pneg %p137
      $region46: #{resnet_forward.24} parent=31 // pred_check_branch
        %588 = sbr.rel (%p586) target = $region48
      $region47: #{resnet_forward.24} parent=31 // pred_region
        %p589 = scmp.lt.s32.totalorder %s19, 0
        %s590 = scalar_select %p589, %s19, 0
        %p591 = scmp.lt.s32.totalorder %s20, 0
        %s592 = scalar_select %p591, %s20, 0
        %s593 = sadd.s32 %s592, %s590
        %s594 = smul.addr %s593, 8
        %s595 = scalar_lea.vmem %s3, %s594
      $region48: #{resnet_forward.24} parent=31 // pred_fallthru
        _
    $region32: #{resnet_forward.24} parent=5 // pred_fallthru
      _
    %p596 = scmp.le.s32.totalorder 2, %s9
    // Predicated region
    $region49: #{resnet_forward.24} parent=5 // pred_check
      %p597 = pneg %p596
    $region50: #{resnet_forward.24} parent=5 // pred_check_branch
      %599 = sbr.rel (%p597) target = $region52
    $region51: #{resnet_forward.24} parent=5 // pred_region
      %s600 = ssub.s32 %s9, 2
    $region52: #{resnet_forward.24} parent=5 // pred_fallthru
      _
  $region6: #{resnet_forward.24} parent=0 // loop_footer
    %s13 = sadd.s32 1, %s9
  $region7: #{resnet_forward.24} parent=0 // loop_footer_branch
    %8 = sbr.rel target = $region3
  $region8: #{resnet_forward.24} parent=0 // loop_exit
    _

// kernel: resnet_forward.27
$region0: #{resnet_forward.27}
  #allocation0 [shape = 'u32[]', space=smem, size = 0x4, offset = 0x4, fixed_abs, tag = 'smem constant byte address 0x4 - core index']
  #allocation1 [shape = 'u32[144,128]{1,0:T(1,128)}', space=vmem, size = 0x12000, scoped, tag = 'internal scratch']
  #allocation2 [shape = 'f32[8,256]{1,0:T(8,128)}', space=vmem, size = 0x2000, scoped, tag = 'scratch operand']
  %s0 = inlined_call_operand.vmem [shape: bf16[8,1152], index: 0, kind: input, shape index: {}]
  %s1 = inlined_call_operand.vmem [shape: bf16[1152,256], index: 1, kind: input, shape index: {}]
  %s2 = inlined_call_operand.vmem [shape: f32[8,256], index: 2, kind: output, shape index: {}]
  %s3 = sld [smem:[#allocation0]]
  $region49: #{resnet_forward.27} parent=0
    _
  %s5 = ssub.s32 1, %s3
  %s6 = scalar_select 0, %s5, %s3
  loop: start=0, step=1, limit=5
  $region2: #{resnet_forward.27} parent=0 // loop_pre_header
    _
  $region3: #{resnet_forward.27} parent=0 // loop_header
    %s8 = sphi 0, %s12
    %p9 = scmp.ge.s32.totalorder %s8, 5
    %s15 = sphi 0, %s34
    %s16 = sphi 0, %s30
    %s17 = sphi 0, %s26
    %s18 = sphi 0, %s15
    %s19 = sphi 0, %s16
    %s20 = sphi 0, %s17
    %s21 = sphi 0, %s18
    %s22 = sphi 0, %s19
    %s23 = sphi 0, %s20
    %s39 = sphi 0, %s41
    %s42 = sphi 0, %s39
    %s43 = sphi 0, %s42
    %s59 = sphi 0, %s43
    %s67 = sphi 0, %s69
    %s70 = sphi 0, %s67
    %s71 = sphi 0, %s70
    %s87 = sphi 0, %s71
    %s95 = sphi 0, %s97
    %s98 = sphi 0, %s95
    %s99 = sphi 0, %s98
    %s115 = sphi 0, %s99
  $region4: #{resnet_forward.27} parent=0 // loop_header_branch
    %11 = sbr.rel (%p9) target = $region8
  $region5: #{resnet_forward.27} parent=0 // loop_body
    %s13 = ssub.s32 %s8, 1
    %s14 = ssub.s32 %s8, 2
    %s24 = sadd.s32 1, %s17
    %p25 = scmp.ge.s32.totalorder %s24, 3
    %s26 = scalar_select %p25, 0, %s24
    %s27 = sadd.s32 1, %s16
    %s28 = scalar_select %p25, %s27, %s16
    %p29 = scmp.ge.s32.totalorder %s28, 1
    %s30 = scalar_select %p29, 0, %s28
    %s31 = sadd.s32 1, %s15
    %s32 = scalar_select %p29, %s31, %s15
    %p33 = scmp.ge.s32.totalorder %s32, 1
    %s34 = scalar_select %p33, 0, %s32
    %s35 = ssub.s32 %s15, %s34
    %s36 = ssub.s32 %s17, %s26
    %s37 = sor.u32 %s35, %s36
    %p38 = scmp.eq.s32.totalorder %s37, 0
    %s40 = sadd.s32 %s39, 1
    %s41 = scalar_select %p38, %s39, %s40
    %p44 = pneg %p38
    %p45 = scmp.eq.s32.totalorder %s8, 2
    %p46 = por %p44, %p45
    %p47 = scmp.ne.s32.totalorder %s39, %s42
    %p48 = scmp.eq.s32.totalorder %s8, 0
    %p49 = por %p47, %p48
    %p50 = scmp.ne.s32.totalorder %s39, %s42
    %p51 = scmp.eq.s32.totalorder %s13, 2
    %p52 = por %p50, %p51
    %p53 = scmp.ne.s32.totalorder %s42, %s43
    %p54 = scmp.eq.s32.totalorder %s13, 0
    %p55 = por %p53, %p54
    %p56 = scmp.ne.s32.totalorder %s42, %s43
    %p57 = scmp.eq.s32.totalorder %s14, 2
    %p58 = por %p56, %p57
    %p60 = scmp.ne.s32.totalorder %s43, %s59
    %p61 = scmp.eq.s32.totalorder %s14, 0
    %p62 = por %p60, %p61
    %s63 = ssub.s32 %s17, %s26
    %s64 = ssub.s32 %s16, %s30
    %s65 = sor.u32 %s63, %s64
    %p66 = scmp.eq.s32.totalorder %s65, 0
    %s68 = sadd.s32 %s67, 1
    %s69 = scalar_select %p66, %s67, %s68
    %p72 = pneg %p66
    %p73 = scmp.eq.s32.totalorder %s8, 2
    %p74 = por %p72, %p73
    %p75 = scmp.ne.s32.totalorder %s67, %s70
    %p76 = scmp.eq.s32.totalorder %s8, 0
    %p77 = por %p75, %p76
    %p78 = scmp.ne.s32.totalorder %s67, %s70
    %p79 = scmp.eq.s32.totalorder %s13, 2
    %p80 = por %p78, %p79
    %p81 = scmp.ne.s32.totalorder %s70, %s71
    %p82 = scmp.eq.s32.totalorder %s13, 0
    %p83 = por %p81, %p82
    %p84 = scmp.ne.s32.totalorder %s70, %s71
    %p85 = scmp.eq.s32.totalorder %s14, 2
    %p86 = por %p84, %p85
    %p88 = scmp.ne.s32.totalorder %s71, %s87
    %p89 = scmp.eq.s32.totalorder %s14, 0
    %p90 = por %p88, %p89
    %s91 = ssub.s32 %s15, %s34
    %s92 = ssub.s32 %s16, %s30
    %s93 = sor.u32 %s91, %s92
    %p94 = scmp.eq.s32.totalorder %s93, 0
    %s96 = sadd.s32 %s95, 1
    %s97 = scalar_select %p94, %s95, %s96
    %p100 = pneg %p94
    %p101 = scmp.eq.s32.totalorder %s8, 2
    %p102 = por %p100, %p101
    %p103 = scmp.ne.s32.totalorder %s95, %s98
    %p104 = scmp.eq.s32.totalorder %s8, 0
    %p105 = por %p103, %p104
    %p106 = scmp.ne.s32.totalorder %s95, %s98
    %p107 = scmp.eq.s32.totalorder %s13, 2
    %p108 = por %p106, %p107
    %p109 = scmp.ne.s32.totalorder %s98, %s99
    %p110 = scmp.eq.s32.totalorder %s13, 0
    %p111 = por %p109, %p110
    %p112 = scmp.ne.s32.totalorder %s98, %s99
    %p113 = scmp.eq.s32.totalorder %s14, 2
    %p114 = por %p112, %p113
    %p116 = scmp.ne.s32.totalorder %s99, %s115
    %p117 = scmp.eq.s32.totalorder %s14, 0
    %p118 = por %p116, %p117
    %p119 = scmp.le.s32.totalorder 1, %s8
    %p120 = scmp.lt.s32.totalorder %s8, 4
    %p121 = pnand %p119, %p120
    %p122 = pneg %p121
    // Predicated region
    $region9: #{resnet_forward.27} parent=5 // pred_check
      _
    $region10: #{resnet_forward.27} parent=5 // pred_check_branch
      %124 = sbr.rel (%p121) target = $region12
    $region11: #{resnet_forward.27} parent=5 // pred_region
      %s125 = ssub.s32 %s8, 1
    $region12: #{resnet_forward.27} parent=5 // pred_fallthru
      _
    %p126 = scmp.lt.s32.totalorder %s8, 3
    // Predicated region
    $region13: #{resnet_forward.27} parent=5 // pred_check
      %p127 = pneg %p126
    $region14: #{resnet_forward.27} parent=5 // pred_check_branch
      %129 = sbr.rel (%p127) target = $region16
    $region15: #{resnet_forward.27} parent=5 // pred_region
      // Predicated region
      $region17: #{resnet_forward.27} parent=15 // pred_check
        %p130 = pneg %p49
      $region18: #{resnet_forward.27} parent=15 // pred_check_branch
        %132 = sbr.rel (%p130) target = $region20
      $region19: #{resnet_forward.27} parent=15 // pred_region
        %s133 = smul.u32 3, %s17
        %p134 = scmp.lt.s32.totalorder %s15, 0
        %s135 = scalar_select %p134, %s15, 0
        %p136 = scmp.lt.s32.totalorder %s133, 8
        %s137 = scalar_select %p136, %s133, 8
        %s138 = smul.addr %s135, 9
        %s139 = sadd.s32 %s137, %s138
        %s140 = smul.addr %s139, 4
        %s141 = scalar_lea.vmem %s0, %s140
        %s142 = smul.u32 3, %s17
      $region20: #{resnet_forward.27} parent=15 // pred_fallthru
        _
      // Predicated region
      $region21: #{resnet_forward.27} parent=15 // pred_check
        %p143 = pneg %p77
      $region22: #{resnet_forward.27} parent=15 // pred_check_branch
        %145 = sbr.rel (%p143) target = $region24
      $region23: #{resnet_forward.27} parent=15 // pred_region
        %s146 = smul.u32 48, %s17
        %s147 = smul.u32 2, %s16
        %p148 = scmp.lt.s32.totalorder %s146, 143
        %s149 = scalar_select %p148, %s146, 143
        %p150 = scmp.lt.s32.totalorder %s147, 1
        %s151 = scalar_select %p150, %s147, 1
        %s152 = smul.addr %s149, 2
        %s153 = sadd.s32 %s151, %s152
        %s154 = smul.addr %s153, 4
        %s155 = scalar_lea.vmem %s1, %s154
        %s156 = smul.u32 48, %s17
        %s157 = smul.u32 2, %s16
      $region24: #{resnet_forward.27} parent=15 // pred_fallthru
        _
    $region16: #{resnet_forward.27} parent=5 // pred_fallthru
      _
    %p158 = scmp.le.s32.totalorder 1, %s8
    %p159 = scmp.lt.s32.totalorder %s8, 4
    %p160 = pnand %p158, %p159
    %p161 = pneg %p160
    // Predicated region
    $region25: #{resnet_forward.27} parent=5 // pred_check
      _
    $region26: #{resnet_forward.27} parent=5 // pred_check_branch
      %163 = sbr.rel (%p160) target = $region28
    $region27: #{resnet_forward.27} parent=5 // pred_region
      %s164 = ssub.s32 %s8, 1
      %s165 = smul.u32 3, %s20
      %p166 = scmp.lt.s32.totalorder %s18, 0
      %s167 = scalar_select %p166, %s18, 0
      %p168 = scmp.lt.s32.totalorder %s165, 8
      %s169 = scalar_select %p168, %s165, 8
      %s170 = smul.addr %s167, 9
      %s171 = sadd.s32 %s169, %s170
      %s172 = smul.addr %s171, 4
      %s173 = scalar_lea.vmem %s0, %s172
      %p174 = pneg %p55
      %p175 = pneg %p52
      %s176 = smul.u32 48, %s20
      %s177 = smul.u32 2, %s19
      %p178 = scmp.lt.s32.totalorder %s176, 143
      %s179 = scalar_select %p178, %s176, 143
      %p180 = scmp.lt.s32.totalorder %s177, 1
      %s181 = scalar_select %p180, %s177, 1
      %s182 = smul.addr %s179, 2
      %s183 = sadd.s32 %s181, %s182
      %s184 = smul.addr %s183, 4
      %s185 = scalar_lea.vmem %s1, %s184
      %p186 = pneg %p83
      %p187 = pneg %p80
      %p188 = pneg %p111
      %p189 = pneg %p108
      %s190 = smul.u32 2, %s19
      %p191 = scmp.lt.s32.totalorder %s18, 0
      %s192 = scalar_select %p191, %s18, 0
      %p193 = scmp.lt.s32.totalorder %s190, 1
      %s194 = scalar_select %p193, %s190, 1
      %s195 = smul.addr %s192, 2
      %s196 = sadd.s32 %s194, %s195
      %s197 = smul.addr %s196, 8
      %s198 = scalar_lea.vmem %s2, %s197
      %s199 = smul.u32 3, %s20
      %p200 = scmp.lt.s32.totalorder %s18, 0
      %s201 = scalar_select %p200, %s18, 0
      %p202 = scmp.lt.s32.totalorder %s199, 8
      %s203 = scalar_select %p202, %s199, 8
      %s204 = smul.addr %s201, 9
      %s205 = sadd.s32 %s203, %s204
      %s206 = smul.addr %s205, 4
      %s207 = scalar_lea.vmem %s0, %s206
      %s208 = smul.u32 3, %s20
      %s209 = smul.u32 48, %s20
      %s210 = smul.u32 2, %s19
      %p211 = scmp.lt.s32.totalorder %s209, 143
      %s212 = scalar_select %p211, %s209, 143
      %p213 = scmp.lt.s32.totalorder %s210, 1
      %s214 = scalar_select %p213, %s210, 1
      %s215 = smul.addr %s212, 2
      %s216 = sadd.s32 %s214, %s215
      %s217 = smul.addr %s216, 4
      %s218 = scalar_lea.vmem %s1, %s217
      %s219 = smul.u32 48, %s20
      %s220 = smul.u32 2, %s19
      %s221 = smul.u32 2, %s19
      %p222 = scmp.lt.s32.totalorder %s18, 0
      %s223 = scalar_select %p222, %s18, 0
      %p224 = scmp.lt.s32.totalorder %s221, 1
      %s225 = scalar_select %p224, %s221, 1
      %s226 = smul.addr %s223, 2
      %s227 = sadd.s32 %s225, %s226
      %s228 = smul.addr %s227, 8
      %s229 = scalar_lea.vmem %s2, %s228
      %s230 = smul.u32 2, %s19
      %p232 = scmp.eq.s32.totalorder %s20, 0
      // Predicated region
      $region29: #{resnet_forward.27} parent=27 // pred_check
        %p233 = pneg %p232
      $region30: #{resnet_forward.27} parent=27 // pred_check_branch
        %235 = sbr.rel (%p233) target = $region32
      $region31: #{resnet_forward.27} parent=27 // pred_region
        %236 = vst [vmem:[#allocation2] sm:$0xff] 0.0
        %237 = vst [vmem:[#allocation2 + $0x8] sm:$0xff] 0.0
      $region32: #{resnet_forward.27} parent=27 // pred_fallthru
        _
      %v238 = vld [vmem:[#allocation2] sm:$0xff]
      %v239 = vld [vmem:[#allocation2 + $0x8] sm:$0xff]
      %v240 = vld [vmem:[%s207] sm:$0xff]
      %v241 = vld [vmem:[%s207 + $0x8] sm:$0xf]
      %v242 = vld [vmem:[%s218] sm:$0xff]
      %v243 = vld [vmem:[%s218 + $0x8] sm:$0xff]
      %v244 = vld [vmem:[%s218 + $0x10] sm:$0xff]
      %v245 = vld [vmem:[%s218 + $0x18] sm:$0xff]
      %v246 = vld [vmem:[%s218 + $0x20] sm:$0xff]
      %v247 = vld [vmem:[%s218 + $0x28] sm:$0xff]
      %v248 = vld [vmem:[%s218 + $0x30] sm:$0xff]
      %v249 = vld [vmem:[%s218 + $0x38] sm:$0xff]
      %v250 = vld [vmem:[%s218 + $0x40] sm:$0xff]
      %v251 = vld [vmem:[%s218 + $0x48] sm:$0xff]
      %v252 = vld [vmem:[%s218 + $0x50] sm:$0xff]
      %v253 = vld [vmem:[%s218 + $0x58] sm:$0xff]
      %v254 = vld [vmem:[%s218 + $0x60] sm:$0xff]
      %v255 = vld [vmem:[%s218 + $0x68] sm:$0xff]
      %v256 = vld [vmem:[%s218 + $0x70] sm:$0xff]
      %v257 = vld [vmem:[%s218 + $0x78] sm:$0xff]
      %v258 = vld [vmem:[%s218 + $0x80] sm:$0xff]
      %v259 = vld [vmem:[%s218 + $0x88] sm:$0xff]
      %v260 = vld [vmem:[%s218 + $0x90] sm:$0xff]
      %v261 = vld [vmem:[%s218 + $0x98] sm:$0xff]
      %v262 = vld [vmem:[%s218 + $0xa0] sm:$0xff]
      %v263 = vld [vmem:[%s218 + $0xa8] sm:$0xff]
      %v264 = vld [vmem:[%s218 + $0xb0] sm:$0xff]
      %v265 = vld [vmem:[%s218 + $0xb8] sm:$0xff]
      %v266 = vld [vmem:[%s218 + $0xc0] sm:$0xff]
      %v267 = vld [vmem:[%s218 + $0xc8] sm:$0xff]
      %v268 = vld [vmem:[%s218 + $0xd0] sm:$0xff]
      %v269 = vld [vmem:[%s218 + $0xd8] sm:$0xff]
      %v270 = vld [vmem:[%s218 + $0xe0] sm:$0xff]
      %v271 = vld [vmem:[%s218 + $0xe8] sm:$0xff]
      %v272 = vld [vmem:[%s218 + $0xf0] sm:$0xff]
      %v273 = vld [vmem:[%s218 + $0xf8] sm:$0xff]
      %v274 = vld [vmem:[%s218 + $0x100] sm:$0xff]
      %v275 = vld [vmem:[%s218 + $0x108] sm:$0xff]
      %v276 = vld [vmem:[%s218 + $0x110] sm:$0xff]
      %v277 = vld [vmem:[%s218 + $0x118] sm:$0xff]
      %v278 = vld [vmem:[%s218 + $0x120] sm:$0xff]
      %v279 = vld [vmem:[%s218 + $0x128] sm:$0xff]
      %v280 = vld [vmem:[%s218 + $0x130] sm:$0xff]
      %v281 = vld [vmem:[%s218 + $0x138] sm:$0xff]
      %v282 = vld [vmem:[%s218 + $0x140] sm:$0xff]
      %v283 = vld [vmem:[%s218 + $0x148] sm:$0xff]
      %v284 = vld [vmem:[%s218 + $0x150] sm:$0xff]
      %v285 = vld [vmem:[%s218 + $0x158] sm:$0xff]
      %v286 = vld [vmem:[%s218 + $0x160] sm:$0xff]
      %v287 = vld [vmem:[%s218 + $0x168] sm:$0xff]
      %v288 = vld [vmem:[%s218 + $0x170] sm:$0xff]
      %v289 = vld [vmem:[%s218 + $0x178] sm:$0xff]
      %v292 = vunpack.c.l.b16 %v240
      %v293 = vunpack.c.h.b16 %v240
      %v294 = vunpack.c.l.b16 %v241
      %v295 = vpack.c.b16 %v292, %v292
      %v296 = vpack.c.b16 %v293, %v293
      %v297 = vpack.c.b16 %v294, %v294
      %v349 = vunpack.c.l.b16 %v242
      %v350 = vunpack.c.h.b16 %v242
      %v351 = vunpack.c.l.b16 %v243
      %v352 = vunpack.c.h.b16 %v243
      %v353 = vunpack.c.l.b16 %v244
      %v354 = vunpack.c.h.b16 %v244
      %v355 = vunpack.c.l.b16 %v245
      %v356 = vunpack.c.h.b16 %v245
      %v357 = vunpack.c.l.b16 %v246
      %v358 = vunpack.c.h.b16 %v246
      %v359 = vunpack.c.l.b16 %v247
      %v360 = vunpack.c.h.b16 %v247
      %v361 = vunpack.c.l.b16 %v248
      %v362 = vunpack.c.h.b16 %v248
      %v363 = vunpack.c.l.b16 %v249
      %v364 = vunpack.c.h.b16 %v249
      %v365 = vunpack.c.l.b16 %v250
      %v366 = vunpack.c.h.b16 %v250
      %v367 = vunpack.c.l.b16 %v251
      %v368 = vunpack.c.h.b16 %v251
      %v369 = vunpack.c.l.b16 %v252
      %v370 = vunpack.c.h.b16 %v252
      %v371 = vunpack.c.l.b16 %v253
      %v372 = vunpack.c.h.b16 %v253
      %v373 = vunpack.c.l.b16 %v254
      %v374 = vunpack.c.h.b16 %v254
      %v375 = vunpack.c.l.b16 %v255
      %v376 = vunpack.c.h.b16 %v255
      %v377 = vunpack.c.l.b16 %v256
      %v378 = vunpack.c.h.b16 %v256
      %v379 = vunpack.c.l.b16 %v257
      %v380 = vunpack.c.h.b16 %v257
      %v381 = vunpack.c.l.b16 %v258
      %v382 = vunpack.c.h.b16 %v258
      %v383 = vunpack.c.l.b16 %v259
      %v384 = vunpack.c.h.b16 %v259
      %v385 = vunpack.c.l.b16 %v260
      %v386 = vunpack.c.h.b16 %v260
      %v387 = vunpack.c.l.b16 %v261
      %v388 = vunpack.c.h.b16 %v261
      %v389 = vunpack.c.l.b16 %v262
      %v390 = vunpack.c.h.b16 %v262
      %v391 = vunpack.c.l.b16 %v263
      %v392 = vunpack.c.h.b16 %v263
      %v393 = vunpack.c.l.b16 %v264
      %v394 = vunpack.c.h.b16 %v264
      %v395 = vunpack.c.l.b16 %v265
      %v396 = vunpack.c.h.b16 %v265
      %v397 = vunpack.c.l.b16 %v266
      %v398 = vunpack.c.h.b16 %v266
      %v399 = vunpack.c.l.b16 %v267
      %v400 = vunpack.c.h.b16 %v267
      %v401 = vunpack.c.l.b16 %v268
      %v402 = vunpack.c.h.b16 %v268
      %v403 = vunpack.c.l.b16 %v269
      %v404 = vunpack.c.h.b16 %v269
      %v405 = vunpack.c.l.b16 %v270
      %v406 = vunpack.c.h.b16 %v270
      %v407 = vunpack.c.l.b16 %v271
      %v408 = vunpack.c.h.b16 %v271
      %v409 = vunpack.c.l.b16 %v272
      %v410 = vunpack.c.h.b16 %v272
      %v411 = vunpack.c.l.b16 %v273
      %v412 = vunpack.c.h.b16 %v273
      %v413 = vunpack.c.l.b16 %v274
      %v414 = vunpack.c.h.b16 %v274
      %v415 = vunpack.c.l.b16 %v275
      %v416 = vunpack.c.h.b16 %v275
      %v417 = vunpack.c.l.b16 %v276
      %v418 = vunpack.c.h.b16 %v276
      %v419 = vunpack.c.l.b16 %v277
      %v420 = vunpack.c.h.b16 %v277
      %v421 = vunpack.c.l.b16 %v278
      %v422 = vunpack.c.h.b16 %v278
      %v423 = vunpack.c.l.b16 %v279
      %v424 = vunpack.c.h.b16 %v279
      %v425 = vunpack.c.l.b16 %v280
      %v426 = vunpack.c.h.b16 %v280
      %v427 = vunpack.c.l.b16 %v281
      %v428 = vunpack.c.h.b16 %v281
      %v429 = vunpack.c.l.b16 %v282
      %v430 = vunpack.c.h.b16 %v282
      %v431 = vunpack.c.l.b16 %v283
      %v432 = vunpack.c.h.b16 %v283
      %v433 = vunpack.c.l.b16 %v284
      %v434 = vunpack.c.h.b16 %v284
      %v435 = vunpack.c.l.b16 %v285
      %v436 = vunpack.c.h.b16 %v285
      %v437 = vunpack.c.l.b16 %v286
      %v438 = vunpack.c.h.b16 %v286
      %v439 = vunpack.c.l.b16 %v287
      %v440 = vunpack.c.h.b16 %v287
      %v441 = vunpack.c.l.b16 %v288
      %v442 = vunpack.c.h.b16 %v288
      %v443 = vunpack.c.l.b16 %v289
      %v444 = vunpack.c.h.b16 %v289
      %v445 = vpack.c.b16 %v351, %v349
      %v446 = vpack.c.b16 %v352, %v350
      %v447 = vpack.c.b16 %v355, %v353
      %v448 = vpack.c.b16 %v356, %v354
      %v449 = vpack.c.b16 %v359, %v357
      %v450 = vpack.c.b16 %v360, %v358
      %v451 = vpack.c.b16 %v363, %v361
      %v452 = vpack.c.b16 %v364, %v362
      %v453 = vpack.c.b16 %v367, %v365
      %v454 = vpack.c.b16 %v368, %v366
      %v455 = vpack.c.b16 %v371, %v369
      %v456 = vpack.c.b16 %v372, %v370
      %v457 = vpack.c.b16 %v375, %v373
      %v458 = vpack.c.b16 %v376, %v374
      %v459 = vpack.c.b16 %v379, %v377
      %v460 = vpack.c.b16 %v380, %v378
      %v461 = vpack.c.b16 %v383, %v381
      %v462 = vpack.c.b16 %v384, %v382
      %v463 = vpack.c.b16 %v387, %v385
      %v464 = vpack.c.b16 %v388, %v386
      %v465 = vpack.c.b16 %v391, %v389
      %v466 = vpack.c.b16 %v392, %v390
      %v467 = vpack.c.b16 %v395, %v393
      %v468 = vpack.c.b16 %v396, %v394
      %v469 = vpack.c.b16 %v399, %v397
      %v470 = vpack.c.b16 %v400, %v398
      %v471 = vpack.c.b16 %v403, %v401
      %v472 = vpack.c.b16 %v404, %v402
      %v473 = vpack.c.b16 %v407, %v405
      %v474 = vpack.c.b16 %v408, %v406
      %v475 = vpack.c.b16 %v411, %v409
      %v476 = vpack.c.b16 %v412, %v410
      %v477 = vpack.c.b16 %v415, %v413
      %v478 = vpack.c.b16 %v416, %v414
      %v479 = vpack.c.b16 %v419, %v417
      %v480 = vpack.c.b16 %v420, %v418
      %v481 = vpack.c.b16 %v423, %v421
      %v482 = vpack.c.b16 %v424, %v422
      %v483 = vpack.c.b16 %v427, %v425
      %v484 = vpack.c.b16 %v428, %v426
      %v485 = vpack.c.b16 %v431, %v429
      %v486 = vpack.c.b16 %v432, %v430
      %v487 = vpack.c.b16 %v435, %v433
      %v488 = vpack.c.b16 %v436, %v434
      %v489 = vpack.c.b16 %v439, %v437
      %v490 = vpack.c.b16 %v440, %v438
      %v491 = vpack.c.b16 %v443, %v441
      %v492 = vpack.c.b16 %v444, %v442
      %541 = vmatprep.subr.bf16.mxu0 %v446
      %542 = vmatpush1.bf16.msra.mxu0 %v445
      %543 = vmatprep.subr.bf16.mxu0 %v448
      %544 = vmatpush1.bf16.msra.mxu0 %v447
      %545 = vmatprep.subr.bf16.mxu0 %v450
      %546 = vmatpush1.bf16.msra.mxu0 %v449
      %547 = vmatprep.subr.bf16.mxu0 %v452
      %548 = vmatpush1.bf16.msra.mxu0 %v451
      %549 = vmatprep.subr.bf16.mxu0 %v454
      %550 = vmatpush1.bf16.msra.mxu0 %v453
      %551 = vmatprep.subr.bf16.mxu0 %v456
      %552 = vmatpush1.bf16.msra.mxu0 %v455
      %553 = vmatprep.subr.bf16.mxu0 %v458
      %554 = vmatpush1.bf16.msra.mxu0 %v457
      %555 = vmatprep.subr.bf16.mxu0 %v460
      %556 = vmatpush1.bf16.msra.mxu0 %v459
      %557 = vmatprep.subr.bf16.mxu0 %v462
      %558 = vmatpush1.bf16.msra.mxu0 %v461
      %559 = vmatprep.subr.bf16.mxu0 %v464
      %560 = vmatpush1.bf16.msra.mxu0 %v463
      %561 = vmatprep.subr.bf16.mxu0 %v466
      %562 = vmatpush1.bf16.msra.mxu0 %v465
      %563 = vmatprep.subr.bf16.mxu0 %v468
      %564 = vmatpush1.bf16.msra.mxu0 %v467
      %565 = vmatprep.subr.bf16.mxu0 %v470
      %566 = vmatpush1.bf16.msra.mxu0 %v469
      %567 = vmatprep.subr.bf16.mxu0 %v472
      %568 = vmatpush1.bf16.msra.mxu0 %v471
      %569 = vmatprep.subr.bf16.mxu0 %v474
      %570 = vmatpush1.bf16.msra.mxu0 %v473
      %571 = vmatprep.subr.bf16.mxu0 %v476
      %572 = vmatpush1.bf16.msra.mxu0 %v475
      %573 = vmatprep.mubr.bf16.mxu0 %v296
      %574 = vmatmul.mubr.bf16.gmra.mrb[0].mxu0 %v295
      %v575 = vpop.f32.mrb[0].mxu0
      %v576 = vadd.f32 0.0, %v575
      %v577 = vpop.f32.mrb[0].mxu0
      %v578 = vadd.f32 0.0, %v577
      %v579 = vpop.f32.mrb[0].mxu0
      %v580 = vpop.f32.mrb[0].mxu0
      %581 = vdwg.mxu0
      %582 = vmatprep.subr.bf16.mxu0 %v478
      %583 = vmatpush1.bf16.msra.mxu0 %v477
      %584 = vmatprep.subr.bf16.mxu0 %v480
      %585 = vmatpush1.bf16.msra.mxu0 %v479
      %586 = vmatprep.subr.bf16.mxu0 %v482
      %587 = vmatpush1.bf16.msra.mxu0 %v481
      %588 = vmatprep.subr.bf16.mxu0 %v484
      %589 = vmatpush1.bf16.msra.mxu0 %v483
      %590 = vmatprep.subr.bf16.mxu0 %v486
      %591 = vmatpush1.bf16.msra.mxu0 %v485
      %592 = vmatprep.subr.bf16.mxu0 %v488
      %593 = vmatpush1.bf16.msra.mxu0 %v487
      %594 = vmatprep.subr.bf16.mxu0 %v490
      %595 = vmatpush1.bf16.msra.mxu0 %v489
      %596 = vmatprep.subr.bf16.mxu0 %v492
      %597 = vmatpush1.bf16.msra.mxu0 %v491
      %598 = vmatprep.subr.bf16.mxu0 0
      %599 = vmatpush1.bf16.msra.mxu0 0
      %600 = vmatprep.subr.bf16.mxu0 0
      %601 = vmatpush1.bf16.msra.mxu0 0
      %602 = vmatprep.subr.bf16.mxu0 0
      %603 = vmatpush1.bf16.msra.mxu0 0
      %604 = vmatprep.subr.bf16.mxu0 0
      %605 = vmatpush1.bf16.msra.mxu0 0
      %606 = vmatprep.subr.bf16.mxu0 0
      %607 = vmatpush1.bf16.msra.mxu0 0
      %608 = vmatprep.subr.bf16.mxu0 0
      %609 = vmatpush1.bf16.msra.mxu0 0
      %610 = vmatprep.subr.bf16.mxu0 0
      %611 = vmatpush1.bf16.msra.mxu0 0
      %612 = vmatprep.subr.bf16.mxu0 0
      %613 = vmatpush1.bf16.msra.mxu0 0
      %614 = vmatprep.mubr.bf16.mxu0 0
      %615 = vmatmul.mubr.bf16.gmra.mrb[0].mxu0 %v297
      %v616 = vpop.f32.mrb[0].mxu0
      %v617 = vadd.f32 %v576, %v616
      %v618 = vpop.f32.mrb[0].mxu0
      %v619 = vadd.f32 %v578, %v618
      %v620 = vpop.f32.mrb[0].mxu0
      %v621 = vpop.f32.mrb[0].mxu0
      %622 = vdwg.mxu0
      %v623 = vadd.f32 %v238, %v617
      %v624 = vadd.f32 %v239, %v619
      %625 = vst [vmem:[#allocation2] sm:$0xff] %v623
      %626 = vst [vmem:[#allocation2 + $0x8] sm:$0xff] %v624
      %p627 = scmp.eq.s32.totalorder %s20, 2
      // Predicated region
      $region33: #{resnet_forward.27} parent=27 // pred_check
        %p628 = pneg %p627
      $region34: #{resnet_forward.27} parent=27 // pred_check_branch
        %630 = sbr.rel (%p628) target = $region36
      $region35: #{resnet_forward.27} parent=27 // pred_region
        %v631 = vld [vmem:[#allocation2] sm:$0xff]
        %v632 = vld [vmem:[#allocation2 + $0x8] sm:$0xff]
        %v633 = vmax.f32 %v631, 0.0
        %v634 = vmax.f32 %v632, 0.0
        %635 = vst [vmem:[%s229] sm:$0xff] %v633
        %636 = vst [vmem:[%s229 + $0x8] sm:$0xff] %v634
      $region36: #{resnet_forward.27} parent=27 // pred_fallthru
        _
      %s637 = smul.u32 2, %s19
      %p638 = scmp.lt.s32.totalorder %s18, 0
      %s639 = scalar_select %p638, %s18, 0
      %p640 = scmp.lt.s32.totalorder %s637, 1
      %s641 = scalar_select %p640, %s637, 1
      %s642 = smul.addr %s639, 2
      %s643 = sadd.s32 %s641, %s642
      %s644 = smul.addr %s643, 8
      %s645 = scalar_lea.vmem %s2, %s644
      // Predicated region
      $region37: #{resnet_forward.27} parent=27 // pred_check
        %p646 = pneg %p108
      $region38: #{resnet_forward.27} parent=27 // pred_check_branch
        %648 = sbr.rel (%p646) target = $region40
      $region39: #{resnet_forward.27} parent=27 // pred_region
        %s649 = smul.u32 2, %s19
      $region40: #{resnet_forward.27} parent=27 // pred_fallthru
        _
      // Predicated region
      $region41: #{resnet_forward.27} parent=27 // pred_check
        %p650 = pneg %p108
      $region42: #{resnet_forward.27} parent=27 // pred_check_branch
        %652 = sbr.rel (%p650) target = $region44
      $region43: #{resnet_forward.27} parent=27 // pred_region
        %s653 = smul.u32 2, %s19
        %p654 = scmp.lt.s32.totalorder %s18, 0
        %s655 = scalar_select %p654, %s18, 0
        %p656 = scmp.lt.s32.totalorder %s653, 1
        %s657 = scalar_select %p656, %s653, 1
        %s658 = smul.addr %s655, 2
        %s659 = sadd.s32 %s657, %s658
        %s660 = smul.addr %s659, 8
        %s661 = scalar_lea.vmem %s2, %s660
      $region44: #{resnet_forward.27} parent=27 // pred_fallthru
        _
    $region28: #{resnet_forward.27} parent=5 // pred_fallthru
      _
    %p662 = scmp.le.s32.totalorder 2, %s8
    // Predicated region
    $region45: #{resnet_forward.27} parent=5 // pred_check
      %p663 = pneg %p662
    $region46: #{resnet_forward.27} parent=5 // pred_check_branch
      %665 = sbr.rel (%p663) target = $region48
    $region47: #{resnet_forward.27} parent=5 // pred_region
      %s666 = ssub.s32 %s8, 2
    $region48: #{resnet_forward.27} parent=5 // pred_fallthru
      _
  $region6: #{resnet_forward.27} parent=0 // loop_footer
    %s12 = sadd.s32 1, %s8
  $region7: #{resnet_forward.27} parent=0 // loop_footer_branch
    %7 = sbr.rel target = $region3
  $region8: #{resnet_forward.27} parent=0 // loop_exit
    _

// kernel: resnet_forward.28
$region0: #{resnet_forward.28}
  #allocation0 [shape = 'u32[]', space=smem, size = 0x4, offset = 0x4, fixed_abs, tag = 'smem constant byte address 0x4 - core index']
  #allocation1 [shape = 'u32[144,128]{1,0:T(1,128)}', space=vmem, size = 0x12000, scoped, tag = 'internal scratch']
  #allocation2 [shape = 'f32[8,256]{1,0:T(8,128)}', space=vmem, size = 0x2000, scoped, tag = 'scratch operand']
  %s0 = inlined_call_operand.vmem [shape: bf16[8,128], index: 0, kind: input, shape index: {}]
  %s1 = inlined_call_operand.vmem [shape: bf16[128,256], index: 1, kind: input, shape index: {}]
  %s2 = inlined_call_operand.vmem [shape: f32[8,256], index: 2, kind: output, shape index: {}]
  %s3 = sld [smem:[#allocation0]]
  $region26: #{resnet_forward.28} parent=0
    _
  %s5 = ssub.s32 1, %s3
  %s6 = scalar_select 0, %s5, %s3
  // Predicated region
  $region2: #{resnet_forward.28} parent=0 // pred_check
    _
  $region3: #{resnet_forward.28} parent=0 // pred_check_branch
    %8 = sbr.rel (0) target = $region5
  $region4: #{resnet_forward.28} parent=0 // pred_region
    _
  $region5: #{resnet_forward.28} parent=0 // pred_fallthru
    _
  // Predicated region
  $region6: #{resnet_forward.28} parent=0 // pred_check
    _
  $region7: #{resnet_forward.28} parent=0 // pred_check_branch
    %10 = sbr.rel (0) target = $region9
  $region8: #{resnet_forward.28} parent=0 // pred_region
    _
  $region9: #{resnet_forward.28} parent=0 // pred_fallthru
    _
  %p12 = scmp.eq.s32.totalorder 0, 0
  // Predicated region
  $region10: #{resnet_forward.28} parent=0 // pred_check
    %p13 = pneg %p12
  $region11: #{resnet_forward.28} parent=0 // pred_check_branch
    %15 = sbr.rel (%p13) target = $region13
  $region12: #{resnet_forward.28} parent=0 // pred_region
    %16 = vst [vmem:[#allocation2] sm:$0xff] 0.0
    %17 = vst [vmem:[#allocation2 + $0x8] sm:$0xff] 0.0
  $region13: #{resnet_forward.28} parent=0 // pred_fallthru
    _
  %v18 = vld [vmem:[#allocation2] sm:$0xff]
  %v19 = vld [vmem:[#allocation2 + $0x8] sm:$0xff]
  %v20 = vld [vmem:[%s0] sm:$0xf]
  %v21 = vld [vmem:[%s1] sm:$0xff]
  %v22 = vld [vmem:[%s1 + $0x8] sm:$0xff]
  %v23 = vld [vmem:[%s1 + $0x10] sm:$0xff]
  %v24 = vld [vmem:[%s1 + $0x18] sm:$0xff]
  %v25 = vld [vmem:[%s1 + $0x20] sm:$0xff]
  %v26 = vld [vmem:[%s1 + $0x28] sm:$0xff]
  %v27 = vld [vmem:[%s1 + $0x30] sm:$0xff]
  %v28 = vld [vmem:[%s1 + $0x38] sm:$0xff]
  %v29 = vld [vmem:[%s1 + $0x40] sm:$0xff]
  %v30 = vld [vmem:[%s1 + $0x48] sm:$0xff]
  %v31 = vld [vmem:[%s1 + $0x50] sm:$0xff]
  %v32 = vld [vmem:[%s1 + $0x58] sm:$0xff]
  %v33 = vld [vmem:[%s1 + $0x60] sm:$0xff]
  %v34 = vld [vmem:[%s1 + $0x68] sm:$0xff]
  %v35 = vld [vmem:[%s1 + $0x70] sm:$0xff]
  %v36 = vld [vmem:[%s1 + $0x78] sm:$0xff]
  %v53 = vunpack.c.l.b16 %v21
  %v54 = vunpack.c.h.b16 %v21
  %v55 = vunpack.c.l.b16 %v22
  %v56 = vunpack.c.h.b16 %v22
  %v57 = vunpack.c.l.b16 %v23
  %v58 = vunpack.c.h.b16 %v23
  %v59 = vunpack.c.l.b16 %v24
  %v60 = vunpack.c.h.b16 %v24
  %v61 = vunpack.c.l.b16 %v25
  %v62 = vunpack.c.h.b16 %v25
  %v63 = vunpack.c.l.b16 %v26
  %v64 = vunpack.c.h.b16 %v26
  %v65 = vunpack.c.l.b16 %v27
  %v66 = vunpack.c.h.b16 %v27
  %v67 = vunpack.c.l.b16 %v28
  %v68 = vunpack.c.h.b16 %v28
  %v69 = vunpack.c.l.b16 %v29
  %v70 = vunpack.c.h.b16 %v29
  %v71 = vunpack.c.l.b16 %v30
  %v72 = vunpack.c.h.b16 %v30
  %v73 = vunpack.c.l.b16 %v31
  %v74 = vunpack.c.h.b16 %v31
  %v75 = vunpack.c.l.b16 %v32
  %v76 = vunpack.c.h.b16 %v32
  %v77 = vunpack.c.l.b16 %v33
  %v78 = vunpack.c.h.b16 %v33
  %v79 = vunpack.c.l.b16 %v34
  %v80 = vunpack.c.h.b16 %v34
  %v81 = vunpack.c.l.b16 %v35
  %v82 = vunpack.c.h.b16 %v35
  %v83 = vunpack.c.l.b16 %v36
  %v84 = vunpack.c.h.b16 %v36
  %v85 = vpack.c.b16 %v55, %v53
  %v86 = vpack.c.b16 %v56, %v54
  %v87 = vpack.c.b16 %v59, %v57
  %v88 = vpack.c.b16 %v60, %v58
  %v89 = vpack.c.b16 %v63, %v61
  %v90 = vpack.c.b16 %v64, %v62
  %v91 = vpack.c.b16 %v67, %v65
  %v92 = vpack.c.b16 %v68, %v66
  %v93 = vpack.c.b16 %v71, %v69
  %v94 = vpack.c.b16 %v72, %v70
  %v95 = vpack.c.b16 %v75, %v73
  %v96 = vpack.c.b16 %v76, %v74
  %v97 = vpack.c.b16 %v79, %v77
  %v98 = vpack.c.b16 %v80, %v78
  %v99 = vpack.c.b16 %v83, %v81
  %v100 = vpack.c.b16 %v84, %v82
  %117 = vmatprep.subr.bf16.mxu0 %v86
  %118 = vmatpush1.bf16.msra.mxu0 %v85
  %119 = vmatprep.subr.bf16.mxu0 %v88
  %120 = vmatpush1.bf16.msra.mxu0 %v87
  %121 = vmatprep.subr.bf16.mxu0 %v90
  %122 = vmatpush1.bf16.msra.mxu0 %v89
  %123 = vmatprep.subr.bf16.mxu0 %v92
  %124 = vmatpush1.bf16.msra.mxu0 %v91
  %125 = vmatprep.subr.bf16.mxu0 %v94
  %126 = vmatpush1.bf16.msra.mxu0 %v93
  %127 = vmatprep.subr.bf16.mxu0 %v96
  %128 = vmatpush1.bf16.msra.mxu0 %v95
  %129 = vmatprep.subr.bf16.mxu0 %v98
  %130 = vmatpush1.bf16.msra.mxu0 %v97
  %131 = vmatprep.subr.bf16.mxu0 %v100
  %132 = vmatpush1.bf16.msra.mxu0 %v99
  %133 = vmatprep.subr.bf16.mxu0 0
  %134 = vmatpush1.bf16.msra.mxu0 0
  %135 = vmatprep.subr.bf16.mxu0 0
  %136 = vmatpush1.bf16.msra.mxu0 0
  %137 = vmatprep.subr.bf16.mxu0 0
  %138 = vmatpush1.bf16.msra.mxu0 0
  %139 = vmatprep.subr.bf16.mxu0 0
  %140 = vmatpush1.bf16.msra.mxu0 0
  %141 = vmatprep.subr.bf16.mxu0 0
  %142 = vmatpush1.bf16.msra.mxu0 0
  %143 = vmatprep.subr.bf16.mxu0 0
  %144 = vmatpush1.bf16.msra.mxu0 0
  %145 = vmatprep.subr.bf16.mxu0 0
  %146 = vmatpush1.bf16.msra.mxu0 0
  %147 = vmatprep.subr.bf16.mxu0 0
  %148 = vmatpush1.bf16.msra.mxu0 0
  %149 = vmatprep.mubr.bf16.mxu0 0
  %150 = vmatmul.mubr.bf16.gmra.mrb[0].mxu0 %v20
  %v151 = vpop.f32.mrb[0].mxu0
  %v152 = vadd.f32 0.0, %v151
  %v153 = vpop.f32.mrb[0].mxu0
  %v154 = vadd.f32 0.0, %v153
  %v155 = vpop.f32.mrb[0].mxu0
  %v156 = vpop.f32.mrb[0].mxu0
  %157 = vdwg.mxu0
  %v158 = vadd.f32 %v18, %v152
  %v159 = vadd.f32 %v19, %v154
  %160 = vst [vmem:[#allocation2] sm:$0xff] %v158
  %161 = vst [vmem:[#allocation2 + $0x8] sm:$0xff] %v159
  // Predicated region
  $region14: #{resnet_forward.28} parent=0 // pred_check
    %p162 = pneg %p12
  $region15: #{resnet_forward.28} parent=0 // pred_check_branch
    %164 = sbr.rel (%p162) target = $region17
  $region16: #{resnet_forward.28} parent=0 // pred_region
    %v165 = vld [vmem:[#allocation2] sm:$0xff]
    %v166 = vld [vmem:[#allocation2 + $0x8] sm:$0xff]
    %167 = vst [vmem:[%s2] sm:$0xff] %v165
    %168 = vst [vmem:[%s2 + $0x8] sm:$0xff] %v166
  $region17: #{resnet_forward.28} parent=0 // pred_fallthru
    _
  // Predicated region
  $region18: #{resnet_forward.28} parent=0 // pred_check
    _
  $region19: #{resnet_forward.28} parent=0 // pred_check_branch
    %170 = sbr.rel (0) target = $region21
  $region20: #{resnet_forward.28} parent=0 // pred_region
    _
  $region21: #{resnet_forward.28} parent=0 // pred_fallthru
    _
  // Predicated region
  $region22: #{resnet_forward.28} parent=0 // pred_check
    _
  $region23: #{resnet_forward.28} parent=0 // pred_check_branch
    %172 = sbr.rel (0) target = $region25
  $region24: #{resnet_forward.28} parent=0 // pred_region
    _
  $region25: #{resnet_forward.28} parent=0 // pred_fallthru
    _

// kernel: resnet_forward.29
$region0: #{resnet_forward.29}
  #allocation0 [shape = 'u32[]', space=smem, size = 0x4, offset = 0x4, fixed_abs, tag = 'smem constant byte address 0x4 - core index']
  #allocation1 [shape = 'u32[144,128]{1,0:T(1,128)}', space=vmem, size = 0x12000, scoped, tag = 'internal scratch']
  #allocation2 [shape = 'f32[8,256]{1,0:T(8,128)}', space=vmem, size = 0x2000, scoped, tag = 'scratch operand']
  %s0 = inlined_call_operand.vmem [shape: bf16[8,2304], index: 0, kind: input, shape index: {}]
  %s1 = inlined_call_operand.vmem [shape: bf16[2304,256], index: 1, kind: input, shape index: {}]
  %s2 = inlined_call_operand.vmem [shape: f32[8,256], index: 2, kind: input, shape index: {}]
  %s3 = inlined_call_operand.vmem [shape: f32[8,256], index: 3, kind: output, shape index: {}]
  %s4 = sld [smem:[#allocation0]]
  $region53: #{resnet_forward.29} parent=0
    _
  %s6 = ssub.s32 1, %s4
  %s7 = scalar_select 0, %s6, %s4
  loop: start=0, step=1, limit=8
  $region2: #{resnet_forward.29} parent=0 // loop_pre_header
    _
  $region3: #{resnet_forward.29} parent=0 // loop_header
    %s9 = sphi 0, %s13
    %p10 = scmp.ge.s32.totalorder %s9, 8
    %s16 = sphi 0, %s35
    %s17 = sphi 0, %s31
    %s18 = sphi 0, %s27
    %s19 = sphi 0, %s16
    %s20 = sphi 0, %s17
    %s21 = sphi 0, %s18
    %s22 = sphi 0, %s19
    %s23 = sphi 0, %s20
    %s24 = sphi 0, %s21
    %s40 = sphi 0, %s42
    %s43 = sphi 0, %s40
    %s44 = sphi 0, %s43
    %s60 = sphi 0, %s44
    %s68 = sphi 0, %s70
    %s71 = sphi 0, %s68
    %s72 = sphi 0, %s71
    %s88 = sphi 0, %s72
    %s96 = sphi 0, %s98
    %s99 = sphi 0, %s96
    %s100 = sphi 0, %s99
    %s116 = sphi 0, %s100
    %s124 = sphi 0, %s126
    %s127 = sphi 0, %s124
    %s128 = sphi 0, %s127
    %s144 = sphi 0, %s128
  $region4: #{resnet_forward.29} parent=0 // loop_header_branch
    %12 = sbr.rel (%p10) target = $region8
  $region5: #{resnet_forward.29} parent=0 // loop_body
    %s14 = ssub.s32 %s9, 1
    %s15 = ssub.s32 %s9, 2
    %s25 = sadd.s32 1, %s18
    %p26 = scmp.ge.s32.totalorder %s25, 6
    %s27 = scalar_select %p26, 0, %s25
    %s28 = sadd.s32 1, %s17
    %s29 = scalar_select %p26, %s28, %s17
    %p30 = scmp.ge.s32.totalorder %s29, 1
    %s31 = scalar_select %p30, 0, %s29
    %s32 = sadd.s32 1, %s16
    %s33 = scalar_select %p30, %s32, %s16
    %p34 = scmp.ge.s32.totalorder %s33, 1
    %s35 = scalar_select %p34, 0, %s33
    %s36 = ssub.s32 %s16, %s35
    %s37 = ssub.s32 %s18, %s27
    %s38 = sor.u32 %s36, %s37
    %p39 = scmp.eq.s32.totalorder %s38, 0
    %s41 = sadd.s32 %s40, 1
    %s42 = scalar_select %p39, %s40, %s41
    %p45 = pneg %p39
    %p46 = scmp.eq.s32.totalorder %s9, 5
    %p47 = por %p45, %p46
    %p48 = scmp.ne.s32.totalorder %s40, %s43
    %p49 = scmp.eq.s32.totalorder %s9, 0
    %p50 = por %p48, %p49
    %p51 = scmp.ne.s32.totalorder %s40, %s43
    %p52 = scmp.eq.s32.totalorder %s14, 5
    %p53 = por %p51, %p52
    %p54 = scmp.ne.s32.totalorder %s43, %s44
    %p55 = scmp.eq.s32.totalorder %s14, 0
    %p56 = por %p54, %p55
    %p57 = scmp.ne.s32.totalorder %s43, %s44
    %p58 = scmp.eq.s32.totalorder %s15, 5
    %p59 = por %p57, %p58
    %p61 = scmp.ne.s32.totalorder %s44, %s60
    %p62 = scmp.eq.s32.totalorder %s15, 0
    %p63 = por %p61, %p62
    %s64 = ssub.s32 %s18, %s27
    %s65 = ssub.s32 %s17, %s31
    %s66 = sor.u32 %s64, %s65
    %p67 = scmp.eq.s32.totalorder %s66, 0
    %s69 = sadd.s32 %s68, 1
    %s70 = scalar_select %p67, %s68, %s69
    %p73 = pneg %p67
    %p74 = scmp.eq.s32.totalorder %s9, 5
    %p75 = por %p73, %p74
    %p76 = scmp.ne.s32.totalorder %s68, %s71
    %p77 = scmp.eq.s32.totalorder %s9, 0
    %p78 = por %p76, %p77
    %p79 = scmp.ne.s32.totalorder %s68, %s71
    %p80 = scmp.eq.s32.totalorder %s14, 5
    %p81 = por %p79, %p80
    %p82 = scmp.ne.s32.totalorder %s71, %s72
    %p83 = scmp.eq.s32.totalorder %s14, 0
    %p84 = por %p82, %p83
    %p85 = scmp.ne.s32.totalorder %s71, %s72
    %p86 = scmp.eq.s32.totalorder %s15, 5
    %p87 = por %p85, %p86
    %p89 = scmp.ne.s32.totalorder %s72, %s88
    %p90 = scmp.eq.s32.totalorder %s15, 0
    %p91 = por %p89, %p90
    %s92 = ssub.s32 %s16, %s35
    %s93 = ssub.s32 %s17, %s31
    %s94 = sor.u32 %s92, %s93
    %p95 = scmp.eq.s32.totalorder %s94, 0
    %s97 = sadd.s32 %s96, 1
    %s98 = scalar_select %p95, %s96, %s97
    %p101 = pneg %p95
    %p102 = scmp.eq.s32.totalorder %s9, 5
    %p103 = por %p101, %p102
    %p104 = scmp.ne.s32.totalorder %s96, %s99
    %p105 = scmp.eq.s32.totalorder %s9, 0
    %p106 = por %p104, %p105
    %p107 = scmp.ne.s32.totalorder %s96, %s99
    %p108 = scmp.eq.s32.totalorder %s14, 5
    %p109 = por %p107, %p108
    %p110 = scmp.ne.s32.totalorder %s99, %s100
    %p111 = scmp.eq.s32.totalorder %s14, 0
    %p112 = por %p110, %p111
    %p113 = scmp.ne.s32.totalorder %s99, %s100
    %p114 = scmp.eq.s32.totalorder %s15, 5
    %p115 = por %p113, %p114
    %p117 = scmp.ne.s32.totalorder %s100, %s116
    %p118 = scmp.eq.s32.totalorder %s15, 0
    %p119 = por %p117, %p118
    %s120 = ssub.s32 %s16, %s35
    %s121 = ssub.s32 %s17, %s31
    %s122 = sor.u32 %s120, %s121
    %p123 = scmp.eq.s32.totalorder %s122, 0
    %s125 = sadd.s32 %s124, 1
    %s126 = scalar_select %p123, %s124, %s125
    %p129 = pneg %p123
    %p130 = scmp.eq.s32.totalorder %s9, 5
    %p131 = por %p129, %p130
    %p132 = scmp.ne.s32.totalorder %s124, %s127
    %p133 = scmp.eq.s32.totalorder %s9, 0
    %p134 = por %p132, %p133
    %p135 = scmp.ne.s32.totalorder %s124, %s127
    %p136 = scmp.eq.s32.totalorder %s14, 5
    %p137 = por %p135, %p136
    %p138 = scmp.ne.s32.totalorder %s127, %s128
    %p139 = scmp.eq.s32.totalorder %s14, 0
    %p140 = por %p138, %p139
    %p141 = scmp.ne.s32.totalorder %s127, %s128
    %p142 = scmp.eq.s32.totalorder %s15, 5
    %p143 = por %p141, %p142
    %p145 = scmp.ne.s32.totalorder %s128, %s144
    %p146 = scmp.eq.s32.totalorder %s15, 0
    %p147 = por %p145, %p146
    %p148 = scmp.le.s32.totalorder 1, %s9
    %p149 = scmp.lt.s32.totalorder %s9, 7
    %p150 = pnand %p148, %p149
    %p151 = pneg %p150
    // Predicated region
    $region9: #{resnet_forward.29} parent=5 // pred_check
      _
    $region10: #{resnet_forward.29} parent=5 // pred_check_branch
      %153 = sbr.rel (%p150) target = $region12
    $region11: #{resnet_forward.29} parent=5 // pred_region
      %s154 = ssub.s32 %s9, 1
      // Predicated region
      $region13: #{resnet_forward.29} parent=11 // pred_check
        %p155 = pneg %p112
      $region14: #{resnet_forward.29} parent=11 // pred_check_branch
        %157 = sbr.rel (%p155) target = $region16
      $region15: #{resnet_forward.29} parent=11 // pred_region
        %s158 = smul.u32 2, %s20
        %p159 = scmp.lt.s32.totalorder %s19, 0
        %s160 = scalar_select %p159, %s19, 0
        %p161 = scmp.lt.s32.totalorder %s158, 1
        %s162 = scalar_select %p161, %s158, 1
        %s163 = smul.addr %s160, 2
        %s164 = sadd.s32 %s162, %s163
        %s165 = smul.addr %s164, 8
        %s166 = scalar_lea.vmem %s2, %s165
        %s167 = smul.u32 2, %s20
      $region16: #{resnet_forward.29} parent=11 // pred_fallthru
        _
    $region12: #{resnet_forward.29} parent=5 // pred_fallthru
      _
    %p168 = scmp.lt.s32.totalorder %s9, 6
    // Predicated region
    $region17: #{resnet_forward.29} parent=5 // pred_check
      %p169 = pneg %p168
    $region18: #{resnet_forward.29} parent=5 // pred_check_branch
      %171 = sbr.rel (%p169) target = $region20
    $region19: #{resnet_forward.29} parent=5 // pred_region
      // Predicated region
      $region21: #{resnet_forward.29} parent=19 // pred_check
        %p172 = pneg %p50
      $region22: #{resnet_forward.29} parent=19 // pred_check_branch
        %174 = sbr.rel (%p172) target = $region24
      $region23: #{resnet_forward.29} parent=19 // pred_region
        %s175 = smul.u32 3, %s18
        %p176 = scmp.lt.s32.totalorder %s16, 0
        %s177 = scalar_select %p176, %s16, 0
        %p178 = scmp.lt.s32.totalorder %s175, 17
        %s179 = scalar_select %p178, %s175, 17
        %s180 = smul.addr %s177, 18
        %s181 = sadd.s32 %s179, %s180
        %s182 = smul.addr %s181, 4
        %s183 = scalar_lea.vmem %s0, %s182
        %s184 = smul.u32 3, %s18
      $region24: #{resnet_forward.29} parent=19 // pred_fallthru
        _
      // Predicated region
      $region25: #{resnet_forward.29} parent=19 // pred_check
        %p185 = pneg %p78
      $region26: #{resnet_forward.29} parent=19 // pred_check_branch
        %187 = sbr.rel (%p185) target = $region28
      $region27: #{resnet_forward.29} parent=19 // pred_region
        %s188 = smul.u32 48, %s18
        %s189 = smul.u32 2, %s17
        %p190 = scmp.lt.s32.totalorder %s188, 287
        %s191 = scalar_select %p190, %s188, 287
        %p192 = scmp.lt.s32.totalorder %s189, 1
        %s193 = scalar_select %p192, %s189, 1
        %s194 = smul.addr %s191, 2
        %s195 = sadd.s32 %s193, %s194
        %s196 = smul.addr %s195, 4
        %s197 = scalar_lea.vmem %s1, %s196
        %s198 = smul.u32 48, %s18
        %s199 = smul.u32 2, %s17
      $region28: #{resnet_forward.29} parent=19 // pred_fallthru
        _
    $region20: #{resnet_forward.29} parent=5 // pred_fallthru
      _
    %p200 = scmp.le.s32.totalorder 1, %s9
    %p201 = scmp.lt.s32.totalorder %s9, 7
    %p202 = pnand %p200, %p201
    %p203 = pneg %p202
    // Predicated region
    $region29: #{resnet_forward.29} parent=5 // pred_check
      _
    $region30: #{resnet_forward.29} parent=5 // pred_check_branch
      %205 = sbr.rel (%p202) target = $region32
    $region31: #{resnet_forward.29} parent=5 // pred_region
      %s206 = ssub.s32 %s9, 1
      %s207 = smul.u32 3, %s21
      %p208 = scmp.lt.s32.totalorder %s19, 0
      %s209 = scalar_select %p208, %s19, 0
      %p210 = scmp.lt.s32.totalorder %s207, 17
      %s211 = scalar_select %p210, %s207, 17
      %s212 = smul.addr %s209, 18
      %s213 = sadd.s32 %s211, %s212
      %s214 = smul.addr %s213, 4
      %s215 = scalar_lea.vmem %s0, %s214
      %p216 = pneg %p56
      %p217 = pneg %p53
      %s218 = smul.u32 48, %s21
      %s219 = smul.u32 2, %s20
      %p220 = scmp.lt.s32.totalorder %s218, 287
      %s221 = scalar_select %p220, %s218, 287
      %p222 = scmp.lt.s32.totalorder %s219, 1
      %s223 = scalar_select %p222, %s219, 1
      %s224 = smul.addr %s221, 2
      %s225 = sadd.s32 %s223, %s224
      %s226 = smul.addr %s225, 4
      %s227 = scalar_lea.vmem %s1, %s226
      %p228 = pneg %p84
      %p229 = pneg %p81
      %s230 = smul.u32 2, %s20
      %p231 = scmp.lt.s32.totalorder %s19, 0
      %s232 = scalar_select %p231, %s19, 0
      %p233 = scmp.lt.s32.totalorder %s230, 1
      %s234 = scalar_select %p233, %s230, 1
      %s235 = smul.addr %s232, 2
      %s236 = sadd.s32 %s234, %s235
      %s237 = smul.addr %s236, 8
      %s238 = scalar_lea.vmem %s2, %s237
      %p239 = pneg %p112
      %p240 = pneg %p109
      %p241 = pneg %p140
      %p242 = pneg %p137
      %s243 = smul.u32 2, %s20
      %p244 = scmp.lt.s32.totalorder %s19, 0
      %s245 = scalar_select %p244, %s19, 0
      %p246 = scmp.lt.s32.totalorder %s243, 1
      %s247 = scalar_select %p246, %s243, 1
      %s248 = smul.addr %s245, 2
      %s249 = sadd.s32 %s247, %s248
      %s250 = smul.addr %s249, 8
      %s251 = scalar_lea.vmem %s3, %s250
      %s252 = smul.u32 3, %s21
      %p253 = scmp.lt.s32.totalorder %s19, 0
      %s254 = scalar_select %p253, %s19, 0
      %p255 = scmp.lt.s32.totalorder %s252, 17
      %s256 = scalar_select %p255, %s252, 17
      %s257 = smul.addr %s254, 18
      %s258 = sadd.s32 %s256, %s257
      %s259 = smul.addr %s258, 4
      %s260 = scalar_lea.vmem %s0, %s259
      %s261 = smul.u32 3, %s21
      %s262 = smul.u32 48, %s21
      %s263 = smul.u32 2, %s20
      %p264 = scmp.lt.s32.totalorder %s262, 287
      %s265 = scalar_select %p264, %s262, 287
      %p266 = scmp.lt.s32.totalorder %s263, 1
      %s267 = scalar_select %p266, %s263, 1
      %s268 = smul.addr %s265, 2
      %s269 = sadd.s32 %s267, %s268
      %s270 = smul.addr %s269, 4
      %s271 = scalar_lea.vmem %s1, %s270
      %s272 = smul.u32 48, %s21
      %s273 = smul.u32 2, %s20
      %s274 = smul.u32 2, %s20
      %p275 = scmp.lt.s32.totalorder %s19, 0
      %s276 = scalar_select %p275, %s19, 0
      %p277 = scmp.lt.s32.totalorder %s274, 1
      %s278 = scalar_select %p277, %s274, 1
      %s279 = smul.addr %s276, 2
      %s280 = sadd.s32 %s278, %s279
      %s281 = smul.addr %s280, 8
      %s282 = scalar_lea.vmem %s2, %s281
      %s283 = smul.u32 2, %s20
      %s284 = smul.u32 2, %s20
      %p285 = scmp.lt.s32.totalorder %s19, 0
      %s286 = scalar_select %p285, %s19, 0
      %p287 = scmp.lt.s32.totalorder %s284, 1
      %s288 = scalar_select %p287, %s284, 1
      %s289 = smul.addr %s286, 2
      %s290 = sadd.s32 %s288, %s289
      %s291 = smul.addr %s290, 8
      %s292 = scalar_lea.vmem %s3, %s291
      %s293 = smul.u32 2, %s20
      %p295 = scmp.eq.s32.totalorder %s21, 0
      // Predicated region
      $region33: #{resnet_forward.29} parent=31 // pred_check
        %p296 = pneg %p295
      $region34: #{resnet_forward.29} parent=31 // pred_check_branch
        %298 = sbr.rel (%p296) target = $region36
      $region35: #{resnet_forward.29} parent=31 // pred_region
        %299 = vst [vmem:[#allocation2] sm:$0xff] 0.0
        %300 = vst [vmem:[#allocation2 + $0x8] sm:$0xff] 0.0
      $region36: #{resnet_forward.29} parent=31 // pred_fallthru
        _
      %v301 = vld [vmem:[#allocation2] sm:$0xff]
      %v302 = vld [vmem:[#allocation2 + $0x8] sm:$0xff]
      %v303 = vld [vmem:[%s260] sm:$0xff]
      %v304 = vld [vmem:[%s260 + $0x8] sm:$0xf]
      %v305 = vld [vmem:[%s271] sm:$0xff]
      %v306 = vld [vmem:[%s271 + $0x8] sm:$0xff]
      %v307 = vld [vmem:[%s271 + $0x10] sm:$0xff]
      %v308 = vld [vmem:[%s271 + $0x18] sm:$0xff]
      %v309 = vld [vmem:[%s271 + $0x20] sm:$0xff]
      %v310 = vld [vmem:[%s271 + $0x28] sm:$0xff]
      %v311 = vld [vmem:[%s271 + $0x30] sm:$0xff]
      %v312 = vld [vmem:[%s271 + $0x38] sm:$0xff]
      %v313 = vld [vmem:[%s271 + $0x40] sm:$0xff]
      %v314 = vld [vmem:[%s271 + $0x48] sm:$0xff]
      %v315 = vld [vmem:[%s271 + $0x50] sm:$0xff]
      %v316 = vld [vmem:[%s271 + $0x58] sm:$0xff]
      %v317 = vld [vmem:[%s271 + $0x60] sm:$0xff]
      %v318 = vld [vmem:[%s271 + $0x68] sm:$0xff]
      %v319 = vld [vmem:[%s271 + $0x70] sm:$0xff]
      %v320 = vld [vmem:[%s271 + $0x78] sm:$0xff]
      %v321 = vld [vmem:[%s271 + $0x80] sm:$0xff]
      %v322 = vld [vmem:[%s271 + $0x88] sm:$0xff]
      %v323 = vld [vmem:[%s271 + $0x90] sm:$0xff]
      %v324 = vld [vmem:[%s271 + $0x98] sm:$0xff]
      %v325 = vld [vmem:[%s271 + $0xa0] sm:$0xff]
      %v326 = vld [vmem:[%s271 + $0xa8] sm:$0xff]
      %v327 = vld [vmem:[%s271 + $0xb0] sm:$0xff]
      %v328 = vld [vmem:[%s271 + $0xb8] sm:$0xff]
      %v329 = vld [vmem:[%s271 + $0xc0] sm:$0xff]
      %v330 = vld [vmem:[%s271 + $0xc8] sm:$0xff]
      %v331 = vld [vmem:[%s271 + $0xd0] sm:$0xff]
      %v332 = vld [vmem:[%s271 + $0xd8] sm:$0xff]
      %v333 = vld [vmem:[%s271 + $0xe0] sm:$0xff]
      %v334 = vld [vmem:[%s271 + $0xe8] sm:$0xff]
      %v335 = vld [vmem:[%s271 + $0xf0] sm:$0xff]
      %v336 = vld [vmem:[%s271 + $0xf8] sm:$0xff]
      %v337 = vld [vmem:[%s271 + $0x100] sm:$0xff]
      %v338 = vld [vmem:[%s271 + $0x108] sm:$0xff]
      %v339 = vld [vmem:[%s271 + $0x110] sm:$0xff]
      %v340 = vld [vmem:[%s271 + $0x118] sm:$0xff]
      %v341 = vld [vmem:[%s271 + $0x120] sm:$0xff]
      %v342 = vld [vmem:[%s271 + $0x128] sm:$0xff]
      %v343 = vld [vmem:[%s271 + $0x130] sm:$0xff]
      %v344 = vld [vmem:[%s271 + $0x138] sm:$0xff]
      %v345 = vld [vmem:[%s271 + $0x140] sm:$0xff]
      %v346 = vld [vmem:[%s271 + $0x148] sm:$0xff]
      %v347 = vld [vmem:[%s271 + $0x150] sm:$0xff]
      %v348 = vld [vmem:[%s271 + $0x158] sm:$0xff]
      %v349 = vld [vmem:[%s271 + $0x160] sm:$0xff]
      %v350 = vld [vmem:[%s271 + $0x168] sm:$0xff]
      %v351 = vld [vmem:[%s271 + $0x170] sm:$0xff]
      %v352 = vld [vmem:[%s271 + $0x178] sm:$0xff]
      %v355 = vunpack.c.l.b16 %v303
      %v356 = vunpack.c.h.b16 %v303
      %v357 = vunpack.c.l.b16 %v304
      %v358 = vpack.c.b16 %v355, %v355
      %v359 = vpack.c.b16 %v356, %v356
      %v360 = vpack.c.b16 %v357, %v357
      %v412 = vunpack.c.l.b16 %v305
      %v413 = vunpack.c.h.b16 %v305
      %v414 = vunpack.c.l.b16 %v306
      %v415 = vunpack.c.h.b16 %v306
      %v416 = vunpack.c.l.b16 %v307
      %v417 = vunpack.c.h.b16 %v307
      %v418 = vunpack.c.l.b16 %v308
      %v419 = vunpack.c.h.b16 %v308
      %v420 = vunpack.c.l.b16 %v309
      %v421 = vunpack.c.h.b16 %v309
      %v422 = vunpack.c.l.b16 %v310
      %v423 = vunpack.c.h.b16 %v310
      %v424 = vunpack.c.l.b16 %v311
      %v425 = vunpack.c.h.b16 %v311
      %v426 = vunpack.c.l.b16 %v312
      %v427 = vunpack.c.h.b16 %v312
      %v428 = vunpack.c.l.b16 %v313
      %v429 = vunpack.c.h.b16 %v313
      %v430 = vunpack.c.l.b16 %v314
      %v431 = vunpack.c.h.b16 %v314
      %v432 = vunpack.c.l.b16 %v315
      %v433 = vunpack.c.h.b16 %v315
      %v434 = vunpack.c.l.b16 %v316
      %v435 = vunpack.c.h.b16 %v316
      %v436 = vunpack.c.l.b16 %v317
      %v437 = vunpack.c.h.b16 %v317
      %v438 = vunpack.c.l.b16 %v318
      %v439 = vunpack.c.h.b16 %v318
      %v440 = vunpack.c.l.b16 %v319
      %v441 = vunpack.c.h.b16 %v319
      %v442 = vunpack.c.l.b16 %v320
      %v443 = vunpack.c.h.b16 %v320
      %v444 = vunpack.c.l.b16 %v321
      %v445 = vunpack.c.h.b16 %v321
      %v446 = vunpack.c.l.b16 %v322
      %v447 = vunpack.c.h.b16 %v322
      %v448 = vunpack.c.l.b16 %v323
      %v449 = vunpack.c.h.b16 %v323
      %v450 = vunpack.c.l.b16 %v324
      %v451 = vunpack.c.h.b16 %v324
      %v452 = vunpack.c.l.b16 %v325
      %v453 = vunpack.c.h.b16 %v325
      %v454 = vunpack.c.l.b16 %v326
      %v455 = vunpack.c.h.b16 %v326
      %v456 = vunpack.c.l.b16 %v327
      %v457 = vunpack.c.h.b16 %v327
      %v458 = vunpack.c.l.b16 %v328
      %v459 = vunpack.c.h.b16 %v328
      %v460 = vunpack.c.l.b16 %v329
      %v461 = vunpack.c.h.b16 %v329
      %v462 = vunpack.c.l.b16 %v330
      %v463 = vunpack.c.h.b16 %v330
      %v464 = vunpack.c.l.b16 %v331
      %v465 = vunpack.c.h.b16 %v331
      %v466 = vunpack.c.l.b16 %v332
      %v467 = vunpack.c.h.b16 %v332
      %v468 = vunpack.c.l.b16 %v333
      %v469 = vunpack.c.h.b16 %v333
      %v470 = vunpack.c.l.b16 %v334
      %v471 = vunpack.c.h.b16 %v334
      %v472 = vunpack.c.l.b16 %v335
      %v473 = vunpack.c.h.b16 %v335
      %v474 = vunpack.c.l.b16 %v336
      %v475 = vunpack.c.h.b16 %v336
      %v476 = vunpack.c.l.b16 %v337
      %v477 = vunpack.c.h.b16 %v337
      %v478 = vunpack.c.l.b16 %v338
      %v479 = vunpack.c.h.b16 %v338
      %v480 = vunpack.c.l.b16 %v339
      %v481 = vunpack.c.h.b16 %v339
      %v482 = vunpack.c.l.b16 %v340
      %v483 = vunpack.c.h.b16 %v340
      %v484 = vunpack.c.l.b16 %v341
      %v485 = vunpack.c.h.b16 %v341
      %v486 = vunpack.c.l.b16 %v342
      %v487 = vunpack.c.h.b16 %v342
      %v488 = vunpack.c.l.b16 %v343
      %v489 = vunpack.c.h.b16 %v343
      %v490 = vunpack.c.l.b16 %v344
      %v491 = vunpack.c.h.b16 %v344
      %v492 = vunpack.c.l.b16 %v345
      %v493 = vunpack.c.h.b16 %v345
      %v494 = vunpack.c.l.b16 %v346
      %v495 = vunpack.c.h.b16 %v346
      %v496 = vunpack.c.l.b16 %v347
      %v497 = vunpack.c.h.b16 %v347
      %v498 = vunpack.c.l.b16 %v348
      %v499 = vunpack.c.h.b16 %v348
      %v500 = vunpack.c.l.b16 %v349
      %v501 = vunpack.c.h.b16 %v349
      %v502 = vunpack.c.l.b16 %v350
      %v503 = vunpack.c.h.b16 %v350
      %v504 = vunpack.c.l.b16 %v351
      %v505 = vunpack.c.h.b16 %v351
      %v506 = vunpack.c.l.b16 %v352
      %v507 = vunpack.c.h.b16 %v352
      %v508 = vpack.c.b16 %v414, %v412
      %v509 = vpack.c.b16 %v415, %v413
      %v510 = vpack.c.b16 %v418, %v416
      %v511 = vpack.c.b16 %v419, %v417
      %v512 = vpack.c.b16 %v422, %v420
      %v513 = vpack.c.b16 %v423, %v421
      %v514 = vpack.c.b16 %v426, %v424
      %v515 = vpack.c.b16 %v427, %v425
      %v516 = vpack.c.b16 %v430, %v428
      %v517 = vpack.c.b16 %v431, %v429
      %v518 = vpack.c.b16 %v434, %v432
      %v519 = vpack.c.b16 %v435, %v433
      %v520 = vpack.c.b16 %v438, %v436
      %v521 = vpack.c.b16 %v439, %v437
      %v522 = vpack.c.b16 %v442, %v440
      %v523 = vpack.c.b16 %v443, %v441
      %v524 = vpack.c.b16 %v446, %v444
      %v525 = vpack.c.b16 %v447, %v445
      %v526 = vpack.c.b16 %v450, %v448
      %v527 = vpack.c.b16 %v451, %v449
      %v528 = vpack.c.b16 %v454, %v452
      %v529 = vpack.c.b16 %v455, %v453
      %v530 = vpack.c.b16 %v458, %v456
      %v531 = vpack.c.b16 %v459, %v457
      %v532 = vpack.c.b16 %v462, %v460
      %v533 = vpack.c.b16 %v463, %v461
      %v534 = vpack.c.b16 %v466, %v464
      %v535 = vpack.c.b16 %v467, %v465
      %v536 = vpack.c.b16 %v470, %v468
      %v537 = vpack.c.b16 %v471, %v469
      %v538 = vpack.c.b16 %v474, %v472
      %v539 = vpack.c.b16 %v475, %v473
      %v540 = vpack.c.b16 %v478, %v476
      %v541 = vpack.c.b16 %v479, %v477
      %v542 = vpack.c.b16 %v482, %v480
      %v543 = vpack.c.b16 %v483, %v481
      %v544 = vpack.c.b16 %v486, %v484
      %v545 = vpack.c.b16 %v487, %v485
      %v546 = vpack.c.b16 %v490, %v488
      %v547 = vpack.c.b16 %v491, %v489
      %v548 = vpack.c.b16 %v494, %v492
      %v549 = vpack.c.b16 %v495, %v493
      %v550 = vpack.c.b16 %v498, %v496
      %v551 = vpack.c.b16 %v499, %v497
      %v552 = vpack.c.b16 %v502, %v500
      %v553 = vpack.c.b16 %v503, %v501
      %v554 = vpack.c.b16 %v506, %v504
      %v555 = vpack.c.b16 %v507, %v505
      %604 = vmatprep.subr.bf16.mxu0 %v509
      %605 = vmatpush1.bf16.msra.mxu0 %v508
      %606 = vmatprep.subr.bf16.mxu0 %v511
      %607 = vmatpush1.bf16.msra.mxu0 %v510
      %608 = vmatprep.subr.bf16.mxu0 %v513
      %609 = vmatpush1.bf16.msra.mxu0 %v512
      %610 = vmatprep.subr.bf16.mxu0 %v515
      %611 = vmatpush1.bf16.msra.mxu0 %v514
      %612 = vmatprep.subr.bf16.mxu0 %v517
      %613 = vmatpush1.bf16.msra.mxu0 %v516
      %614 = vmatprep.subr.bf16.mxu0 %v519
      %615 = vmatpush1.bf16.msra.mxu0 %v518
      %616 = vmatprep.subr.bf16.mxu0 %v521
      %617 = vmatpush1.bf16.msra.mxu0 %v520
      %618 = vmatprep.subr.bf16.mxu0 %v523
      %619 = vmatpush1.bf16.msra.mxu0 %v522
      %620 = vmatprep.subr.bf16.mxu0 %v525
      %621 = vmatpush1.bf16.msra.mxu0 %v524
      %622 = vmatprep.subr.bf16.mxu0 %v527
      %623 = vmatpush1.bf16.msra.mxu0 %v526
      %624 = vmatprep.subr.bf16.mxu0 %v529
      %625 = vmatpush1.bf16.msra.mxu0 %v528
      %626 = vmatprep.subr.bf16.mxu0 %v531
      %627 = vmatpush1.bf16.msra.mxu0 %v530
      %628 = vmatprep.subr.bf16.mxu0 %v533
      %629 = vmatpush1.bf16.msra.mxu0 %v532
      %630 = vmatprep.subr.bf16.mxu0 %v535
      %631 = vmatpush1.bf16.msra.mxu0 %v534
      %632 = vmatprep.subr.bf16.mxu0 %v537
      %633 = vmatpush1.bf16.msra.mxu0 %v536
      %634 = vmatprep.subr.bf16.mxu0 %v539
      %635 = vmatpush1.bf16.msra.mxu0 %v538
      %636 = vmatprep.mubr.bf16.mxu0 %v359
      %637 = vmatmul.mubr.bf16.gmra.mrb[0].mxu0 %v358
      %v638 = vpop.f32.mrb[0].mxu0
      %v639 = vadd.f32 0.0, %v638
      %v640 = vpop.f32.mrb[0].mxu0
      %v641 = vadd.f32 0.0, %v640
      %v642 = vpop.f32.mrb[0].mxu0
      %v643 = vpop.f32.mrb[0].mxu0
      %644 = vdwg.mxu0
      %645 = vmatprep.subr.bf16.mxu0 %v541
      %646 = vmatpush1.bf16.msra.mxu0 %v540
      %647 = vmatprep.subr.bf16.mxu0 %v543
      %648 = vmatpush1.bf16.msra.mxu0 %v542
      %649 = vmatprep.subr.bf16.mxu0 %v545
      %650 = vmatpush1.bf16.msra.mxu0 %v544
      %651 = vmatprep.subr.bf16.mxu0 %v547
      %652 = vmatpush1.bf16.msra.mxu0 %v546
      %653 = vmatprep.subr.bf16.mxu0 %v549
      %654 = vmatpush1.bf16.msra.mxu0 %v548
      %655 = vmatprep.subr.bf16.mxu0 %v551
      %656 = vmatpush1.bf16.msra.mxu0 %v550
      %657 = vmatprep.subr.bf16.mxu0 %v553
      %658 = vmatpush1.bf16.msra.mxu0 %v552
      %659 = vmatprep.subr.bf16.mxu0 %v555
      %660 = vmatpush1.bf16.msra.mxu0 %v554
      %661 = vmatprep.subr.bf16.mxu0 0
      %662 = vmatpush1.bf16.msra.mxu0 0
      %663 = vmatprep.subr.bf16.mxu0 0
      %664 = vmatpush1.bf16.msra.mxu0 0
      %665 = vmatprep.subr.bf16.mxu0 0
      %666 = vmatpush1.bf16.msra.mxu0 0
      %667 = vmatprep.subr.bf16.mxu0 0
      %668 = vmatpush1.bf16.msra.mxu0 0
      %669 = vmatprep.subr.bf16.mxu0 0
      %670 = vmatpush1.bf16.msra.mxu0 0
      %671 = vmatprep.subr.bf16.mxu0 0
      %672 = vmatpush1.bf16.msra.mxu0 0
      %673 = vmatprep.subr.bf16.mxu0 0
      %674 = vmatpush1.bf16.msra.mxu0 0
      %675 = vmatprep.subr.bf16.mxu0 0
      %676 = vmatpush1.bf16.msra.mxu0 0
      %677 = vmatprep.mubr.bf16.mxu0 0
      %678 = vmatmul.mubr.bf16.gmra.mrb[0].mxu0 %v360
      %v679 = vpop.f32.mrb[0].mxu0
      %v680 = vadd.f32 %v639, %v679
      %v681 = vpop.f32.mrb[0].mxu0
      %v682 = vadd.f32 %v641, %v681
      %v683 = vpop.f32.mrb[0].mxu0
      %v684 = vpop.f32.mrb[0].mxu0
      %685 = vdwg.mxu0
      %v686 = vadd.f32 %v301, %v680
      %v687 = vadd.f32 %v302, %v682
      %688 = vst [vmem:[#allocation2] sm:$0xff] %v686
      %689 = vst [vmem:[#allocation2 + $0x8] sm:$0xff] %v687
      %p690 = scmp.eq.s32.totalorder %s21, 5
      // Predicated region
      $region37: #{resnet_forward.29} parent=31 // pred_check
        %p691 = pneg %p690
      $region38: #{resnet_forward.29} parent=31 // pred_check_branch
        %693 = sbr.rel (%p691) target = $region40
      $region39: #{resnet_forward.29} parent=31 // pred_region
        %v694 = vld [vmem:[#allocation2] sm:$0xff]
        %v695 = vld [vmem:[#allocation2 + $0x8] sm:$0xff]
        %v696 = vld [vmem:[%s282] sm:$0xff]
        %v697 = vld [vmem:[%s282 + $0x8] sm:$0xff]
        %v698 = vadd.f32 %v694, %v696
        %v699 = vadd.f32 %v695, %v697
        %v700 = vmax.f32 %v698, 0.0
        %v701 = vmax.f32 %v699, 0.0
        %702 = vst [vmem:[%s292] sm:$0xff] %v700
        %703 = vst [vmem:[%s292 + $0x8] sm:$0xff] %v701
      $region40: #{resnet_forward.29} parent=31 // pred_fallthru
        _
      %s704 = smul.u32 2, %s20
      %p705 = scmp.lt.s32.totalorder %s19, 0
      %s706 = scalar_select %p705, %s19, 0
      %p707 = scmp.lt.s32.totalorder %s704, 1
      %s708 = scalar_select %p707, %s704, 1
      %s709 = smul.addr %s706, 2
      %s710 = sadd.s32 %s708, %s709
      %s711 = smul.addr %s710, 8
      %s712 = scalar_lea.vmem %s3, %s711
      // Predicated region
      $region41: #{resnet_forward.29} parent=31 // pred_check
        %p713 = pneg %p137
      $region42: #{resnet_forward.29} parent=31 // pred_check_branch
        %715 = sbr.rel (%p713) target = $region44
      $region43: #{resnet_forward.29} parent=31 // pred_region
        %s716 = smul.u32 2, %s20
      $region44: #{resnet_forward.29} parent=31 // pred_fallthru
        _
      // Predicated region
      $region45: #{resnet_forward.29} parent=31 // pred_check
        %p717 = pneg %p137
      $region46: #{resnet_forward.29} parent=31 // pred_check_branch
        %719 = sbr.rel (%p717) target = $region48
      $region47: #{resnet_forward.29} parent=31 // pred_region
        %s720 = smul.u32 2, %s20
        %p721 = scmp.lt.s32.totalorder %s19, 0
        %s722 = scalar_select %p721, %s19, 0
        %p723 = scmp.lt.s32.totalorder %s720, 1
        %s724 = scalar_select %p723, %s720, 1
        %s725 = smul.addr %s722, 2
        %s726 = sadd.s32 %s724, %s725
        %s727 = smul.addr %s726, 8
        %s728 = scalar_lea.vmem %s3, %s727
      $region48: #{resnet_forward.29} parent=31 // pred_fallthru
        _
    $region32: #{resnet_forward.29} parent=5 // pred_fallthru
      _
    %p729 = scmp.le.s32.totalorder 2, %s9
    // Predicated region
    $region49: #{resnet_forward.29} parent=5 // pred_check
      %p730 = pneg %p729
    $region50: #{resnet_forward.29} parent=5 // pred_check_branch
      %732 = sbr.rel (%p730) target = $region52
    $region51: #{resnet_forward.29} parent=5 // pred_region
      %s733 = ssub.s32 %s9, 2
    $region52: #{resnet_forward.29} parent=5 // pred_fallthru
      _
  $region6: #{resnet_forward.29} parent=0 // loop_footer
    %s13 = sadd.s32 1, %s9
  $region7: #{resnet_forward.29} parent=0 // loop_footer_branch
    %8 = sbr.rel target = $region3
  $region8: #{resnet_forward.29} parent=0 // loop_exit
    _

// kernel: resnet_forward.30
$region0: #{resnet_forward.30}
  #allocation0 [shape = 'u32[]', space=smem, size = 0x4, offset = 0x4, fixed_abs, tag = 'smem constant byte address 0x4 - core index']
  #allocation1 [shape = 'u32[144,128]{1,0:T(1,128)}', space=vmem, size = 0x12000, scoped, tag = 'internal scratch']
  #allocation2 [shape = 'f32[8,256]{1,0:T(8,128)}', space=vmem, size = 0x2000, scoped, tag = 'scratch operand']
  %s0 = inlined_call_operand.vmem [shape: bf16[8,2304], index: 0, kind: input, shape index: {}]
  %s1 = inlined_call_operand.vmem [shape: bf16[2304,256], index: 1, kind: input, shape index: {}]
  %s2 = inlined_call_operand.vmem [shape: f32[8,256], index: 2, kind: output, shape index: {}]
  %s3 = sld [smem:[#allocation0]]
  $region49: #{resnet_forward.30} parent=0
    _
  %s5 = ssub.s32 1, %s3
  %s6 = scalar_select 0, %s5, %s3
  loop: start=0, step=1, limit=8
  $region2: #{resnet_forward.30} parent=0 // loop_pre_header
    _
  $region3: #{resnet_forward.30} parent=0 // loop_header
    %s8 = sphi 0, %s12
    %p9 = scmp.ge.s32.totalorder %s8, 8
    %s15 = sphi 0, %s34
    %s16 = sphi 0, %s30
    %s17 = sphi 0, %s26
    %s18 = sphi 0, %s15
    %s19 = sphi 0, %s16
    %s20 = sphi 0, %s17
    %s21 = sphi 0, %s18
    %s22 = sphi 0, %s19
    %s23 = sphi 0, %s20
    %s39 = sphi 0, %s41
    %s42 = sphi 0, %s39
    %s43 = sphi 0, %s42
    %s59 = sphi 0, %s43
    %s67 = sphi 0, %s69
    %s70 = sphi 0, %s67
    %s71 = sphi 0, %s70
    %s87 = sphi 0, %s71
    %s95 = sphi 0, %s97
    %s98 = sphi 0, %s95
    %s99 = sphi 0, %s98
    %s115 = sphi 0, %s99
  $region4: #{resnet_forward.30} parent=0 // loop_header_branch
    %11 = sbr.rel (%p9) target = $region8
  $region5: #{resnet_forward.30} parent=0 // loop_body
    %s13 = ssub.s32 %s8, 1
    %s14 = ssub.s32 %s8, 2
    %s24 = sadd.s32 1, %s17
    %p25 = scmp.ge.s32.totalorder %s24, 6
    %s26 = scalar_select %p25, 0, %s24
    %s27 = sadd.s32 1, %s16
    %s28 = scalar_select %p25, %s27, %s16
    %p29 = scmp.ge.s32.totalorder %s28, 1
    %s30 = scalar_select %p29, 0, %s28
    %s31 = sadd.s32 1, %s15
    %s32 = scalar_select %p29, %s31, %s15
    %p33 = scmp.ge.s32.totalorder %s32, 1
    %s34 = scalar_select %p33, 0, %s32
    %s35 = ssub.s32 %s15, %s34
    %s36 = ssub.s32 %s17, %s26
    %s37 = sor.u32 %s35, %s36
    %p38 = scmp.eq.s32.totalorder %s37, 0
    %s40 = sadd.s32 %s39, 1
    %s41 = scalar_select %p38, %s39, %s40
    %p44 = pneg %p38
    %p45 = scmp.eq.s32.totalorder %s8, 5
    %p46 = por %p44, %p45
    %p47 = scmp.ne.s32.totalorder %s39, %s42
    %p48 = scmp.eq.s32.totalorder %s8, 0
    %p49 = por %p47, %p48
    %p50 = scmp.ne.s32.totalorder %s39, %s42
    %p51 = scmp.eq.s32.totalorder %s13, 5
    %p52 = por %p50, %p51
    %p53 = scmp.ne.s32.totalorder %s42, %s43
    %p54 = scmp.eq.s32.totalorder %s13, 0
    %p55 = por %p53, %p54
    %p56 = scmp.ne.s32.totalorder %s42, %s43
    %p57 = scmp.eq.s32.totalorder %s14, 5
    %p58 = por %p56, %p57
    %p60 = scmp.ne.s32.totalorder %s43, %s59
    %p61 = scmp.eq.s32.totalorder %s14, 0
    %p62 = por %p60, %p61
    %s63 = ssub.s32 %s17, %s26
    %s64 = ssub.s32 %s16, %s30
    %s65 = sor.u32 %s63, %s64
    %p66 = scmp.eq.s32.totalorder %s65, 0
    %s68 = sadd.s32 %s67, 1
    %s69 = scalar_select %p66, %s67, %s68
    %p72 = pneg %p66
    %p73 = scmp.eq.s32.totalorder %s8, 5
    %p74 = por %p72, %p73
    %p75 = scmp.ne.s32.totalorder %s67, %s70
    %p76 = scmp.eq.s32.totalorder %s8, 0
    %p77 = por %p75, %p76
    %p78 = scmp.ne.s32.totalorder %s67, %s70
    %p79 = scmp.eq.s32.totalorder %s13, 5
    %p80 = por %p78, %p79
    %p81 = scmp.ne.s32.totalorder %s70, %s71
    %p82 = scmp.eq.s32.totalorder %s13, 0
    %p83 = por %p81, %p82
    %p84 = scmp.ne.s32.totalorder %s70, %s71
    %p85 = scmp.eq.s32.totalorder %s14, 5
    %p86 = por %p84, %p85
    %p88 = scmp.ne.s32.totalorder %s71, %s87
    %p89 = scmp.eq.s32.totalorder %s14, 0
    %p90 = por %p88, %p89
    %s91 = ssub.s32 %s15, %s34
    %s92 = ssub.s32 %s16, %s30
    %s93 = sor.u32 %s91, %s92
    %p94 = scmp.eq.s32.totalorder %s93, 0
    %s96 = sadd.s32 %s95, 1
    %s97 = scalar_select %p94, %s95, %s96
    %p100 = pneg %p94
    %p101 = scmp.eq.s32.totalorder %s8, 5
    %p102 = por %p100, %p101
    %p103 = scmp.ne.s32.totalorder %s95, %s98
    %p104 = scmp.eq.s32.totalorder %s8, 0
    %p105 = por %p103, %p104
    %p106 = scmp.ne.s32.totalorder %s95, %s98
    %p107 = scmp.eq.s32.totalorder %s13, 5
    %p108 = por %p106, %p107
    %p109 = scmp.ne.s32.totalorder %s98, %s99
    %p110 = scmp.eq.s32.totalorder %s13, 0
    %p111 = por %p109, %p110
    %p112 = scmp.ne.s32.totalorder %s98, %s99
    %p113 = scmp.eq.s32.totalorder %s14, 5
    %p114 = por %p112, %p113
    %p116 = scmp.ne.s32.totalorder %s99, %s115
    %p117 = scmp.eq.s32.totalorder %s14, 0
    %p118 = por %p116, %p117
    %p119 = scmp.le.s32.totalorder 1, %s8
    %p120 = scmp.lt.s32.totalorder %s8, 7
    %p121 = pnand %p119, %p120
    %p122 = pneg %p121
    // Predicated region
    $region9: #{resnet_forward.30} parent=5 // pred_check
      _
    $region10: #{resnet_forward.30} parent=5 // pred_check_branch
      %124 = sbr.rel (%p121) target = $region12
    $region11: #{resnet_forward.30} parent=5 // pred_region
      %s125 = ssub.s32 %s8, 1
    $region12: #{resnet_forward.30} parent=5 // pred_fallthru
      _
    %p126 = scmp.lt.s32.totalorder %s8, 6
    // Predicated region
    $region13: #{resnet_forward.30} parent=5 // pred_check
      %p127 = pneg %p126
    $region14: #{resnet_forward.30} parent=5 // pred_check_branch
      %129 = sbr.rel (%p127) target = $region16
    $region15: #{resnet_forward.30} parent=5 // pred_region
      // Predicated region
      $region17: #{resnet_forward.30} parent=15 // pred_check
        %p130 = pneg %p49
      $region18: #{resnet_forward.30} parent=15 // pred_check_branch
        %132 = sbr.rel (%p130) target = $region20
      $region19: #{resnet_forward.30} parent=15 // pred_region
        %s133 = smul.u32 3, %s17
        %p134 = scmp.lt.s32.totalorder %s15, 0
        %s135 = scalar_select %p134, %s15, 0
        %p136 = scmp.lt.s32.totalorder %s133, 17
        %s137 = scalar_select %p136, %s133, 17
        %s138 = smul.addr %s135, 18
        %s139 = sadd.s32 %s137, %s138
        %s140 = smul.addr %s139, 4
        %s141 = scalar_lea.vmem %s0, %s140
        %s142 = smul.u32 3, %s17
      $region20: #{resnet_forward.30} parent=15 // pred_fallthru
        _
      // Predicated region
      $region21: #{resnet_forward.30} parent=15 // pred_check
        %p143 = pneg %p77
      $region22: #{resnet_forward.30} parent=15 // pred_check_branch
        %145 = sbr.rel (%p143) target = $region24
      $region23: #{resnet_forward.30} parent=15 // pred_region
        %s146 = smul.u32 48, %s17
        %s147 = smul.u32 2, %s16
        %p148 = scmp.lt.s32.totalorder %s146, 287
        %s149 = scalar_select %p148, %s146, 287
        %p150 = scmp.lt.s32.totalorder %s147, 1
        %s151 = scalar_select %p150, %s147, 1
        %s152 = smul.addr %s149, 2
        %s153 = sadd.s32 %s151, %s152
        %s154 = smul.addr %s153, 4
        %s155 = scalar_lea.vmem %s1, %s154
        %s156 = smul.u32 48, %s17
        %s157 = smul.u32 2, %s16
      $region24: #{resnet_forward.30} parent=15 // pred_fallthru
        _
    $region16: #{resnet_forward.30} parent=5 // pred_fallthru
      _
    %p158 = scmp.le.s32.totalorder 1, %s8
    %p159 = scmp.lt.s32.totalorder %s8, 7
    %p160 = pnand %p158, %p159
    %p161 = pneg %p160
    // Predicated region
    $region25: #{resnet_forward.30} parent=5 // pred_check
      _
    $region26: #{resnet_forward.30} parent=5 // pred_check_branch
      %163 = sbr.rel (%p160) target = $region28
    $region27: #{resnet_forward.30} parent=5 // pred_region
      %s164 = ssub.s32 %s8, 1
      %s165 = smul.u32 3, %s20
      %p166 = scmp.lt.s32.totalorder %s18, 0
      %s167 = scalar_select %p166, %s18, 0
      %p168 = scmp.lt.s32.totalorder %s165, 17
      %s169 = scalar_select %p168, %s165, 17
      %s170 = smul.addr %s167, 18
      %s171 = sadd.s32 %s169, %s170
      %s172 = smul.addr %s171, 4
      %s173 = scalar_lea.vmem %s0, %s172
      %p174 = pneg %p55
      %p175 = pneg %p52
      %s176 = smul.u32 48, %s20
      %s177 = smul.u32 2, %s19
      %p178 = scmp.lt.s32.totalorder %s176, 287
      %s179 = scalar_select %p178, %s176, 287
      %p180 = scmp.lt.s32.totalorder %s177, 1
      %s181 = scalar_select %p180, %s177, 1
      %s182 = smul.addr %s179, 2
      %s183 = sadd.s32 %s181, %s182
      %s184 = smul.addr %s183, 4
      %s185 = scalar_lea.vmem %s1, %s184
      %p186 = pneg %p83
      %p187 = pneg %p80
      %p188 = pneg %p111
      %p189 = pneg %p108
      %s190 = smul.u32 2, %s19
      %p191 = scmp.lt.s32.totalorder %s18, 0
      %s192 = scalar_select %p191, %s18, 0
      %p193 = scmp.lt.s32.totalorder %s190, 1
      %s194 = scalar_select %p193, %s190, 1
      %s195 = smul.addr %s192, 2
      %s196 = sadd.s32 %s194, %s195
      %s197 = smul.addr %s196, 8
      %s198 = scalar_lea.vmem %s2, %s197
      %s199 = smul.u32 3, %s20
      %p200 = scmp.lt.s32.totalorder %s18, 0
      %s201 = scalar_select %p200, %s18, 0
      %p202 = scmp.lt.s32.totalorder %s199, 17
      %s203 = scalar_select %p202, %s199, 17
      %s204 = smul.addr %s201, 18
      %s205 = sadd.s32 %s203, %s204
      %s206 = smul.addr %s205, 4
      %s207 = scalar_lea.vmem %s0, %s206
      %s208 = smul.u32 3, %s20
      %s209 = smul.u32 48, %s20
      %s210 = smul.u32 2, %s19
      %p211 = scmp.lt.s32.totalorder %s209, 287
      %s212 = scalar_select %p211, %s209, 287
      %p213 = scmp.lt.s32.totalorder %s210, 1
      %s214 = scalar_select %p213, %s210, 1
      %s215 = smul.addr %s212, 2
      %s216 = sadd.s32 %s214, %s215
      %s217 = smul.addr %s216, 4
      %s218 = scalar_lea.vmem %s1, %s217
      %s219 = smul.u32 48, %s20
      %s220 = smul.u32 2, %s19
      %s221 = smul.u32 2, %s19
      %p222 = scmp.lt.s32.totalorder %s18, 0
      %s223 = scalar_select %p222, %s18, 0
      %p224 = scmp.lt.s32.totalorder %s221, 1
      %s225 = scalar_select %p224, %s221, 1
      %s226 = smul.addr %s223, 2
      %s227 = sadd.s32 %s225, %s226
      %s228 = smul.addr %s227, 8
      %s229 = scalar_lea.vmem %s2, %s228
      %s230 = smul.u32 2, %s19
      %p232 = scmp.eq.s32.totalorder %s20, 0
      // Predicated region
      $region29: #{resnet_forward.30} parent=27 // pred_check
        %p233 = pneg %p232
      $region30: #{resnet_forward.30} parent=27 // pred_check_branch
        %235 = sbr.rel (%p233) target = $region32
      $region31: #{resnet_forward.30} parent=27 // pred_region
        %236 = vst [vmem:[#allocation2] sm:$0xff] 0.0
        %237 = vst [vmem:[#allocation2 + $0x8] sm:$0xff] 0.0
      $region32: #{resnet_forward.30} parent=27 // pred_fallthru
        _
      %v238 = vld [vmem:[#allocation2] sm:$0xff]
      %v239 = vld [vmem:[#allocation2 + $0x8] sm:$0xff]
      %v240 = vld [vmem:[%s207] sm:$0xff]
      %v241 = vld [vmem:[%s207 + $0x8] sm:$0xf]
      %v242 = vld [vmem:[%s218] sm:$0xff]
      %v243 = vld [vmem:[%s218 + $0x8] sm:$0xff]
      %v244 = vld [vmem:[%s218 + $0x10] sm:$0xff]
      %v245 = vld [vmem:[%s218 + $0x18] sm:$0xff]
      %v246 = vld [vmem:[%s218 + $0x20] sm:$0xff]
      %v247 = vld [vmem:[%s218 + $0x28] sm:$0xff]
      %v248 = vld [vmem:[%s218 + $0x30] sm:$0xff]
      %v249 = vld [vmem:[%s218 + $0x38] sm:$0xff]
      %v250 = vld [vmem:[%s218 + $0x40] sm:$0xff]
      %v251 = vld [vmem:[%s218 + $0x48] sm:$0xff]
      %v252 = vld [vmem:[%s218 + $0x50] sm:$0xff]
      %v253 = vld [vmem:[%s218 + $0x58] sm:$0xff]
      %v254 = vld [vmem:[%s218 + $0x60] sm:$0xff]
      %v255 = vld [vmem:[%s218 + $0x68] sm:$0xff]
      %v256 = vld [vmem:[%s218 + $0x70] sm:$0xff]
      %v257 = vld [vmem:[%s218 + $0x78] sm:$0xff]
      %v258 = vld [vmem:[%s218 + $0x80] sm:$0xff]
      %v259 = vld [vmem:[%s218 + $0x88] sm:$0xff]
      %v260 = vld [vmem:[%s218 + $0x90] sm:$0xff]
      %v261 = vld [vmem:[%s218 + $0x98] sm:$0xff]
      %v262 = vld [vmem:[%s218 + $0xa0] sm:$0xff]
      %v263 = vld [vmem:[%s218 + $0xa8] sm:$0xff]
      %v264 = vld [vmem:[%s218 + $0xb0] sm:$0xff]
      %v265 = vld [vmem:[%s218 + $0xb8] sm:$0xff]
      %v266 = vld [vmem:[%s218 + $0xc0] sm:$0xff]
      %v267 = vld [vmem:[%s218 + $0xc8] sm:$0xff]
      %v268 = vld [vmem:[%s218 + $0xd0] sm:$0xff]
      %v269 = vld [vmem:[%s218 + $0xd8] sm:$0xff]
      %v270 = vld [vmem:[%s218 + $0xe0] sm:$0xff]
      %v271 = vld [vmem:[%s218 + $0xe8] sm:$0xff]
      %v272 = vld [vmem:[%s218 + $0xf0] sm:$0xff]
      %v273 = vld [vmem:[%s218 + $0xf8] sm:$0xff]
      %v274 = vld [vmem:[%s218 + $0x100] sm:$0xff]
      %v275 = vld [vmem:[%s218 + $0x108] sm:$0xff]
      %v276 = vld [vmem:[%s218 + $0x110] sm:$0xff]
      %v277 = vld [vmem:[%s218 + $0x118] sm:$0xff]
      %v278 = vld [vmem:[%s218 + $0x120] sm:$0xff]
      %v279 = vld [vmem:[%s218 + $0x128] sm:$0xff]
      %v280 = vld [vmem:[%s218 + $0x130] sm:$0xff]
      %v281 = vld [vmem:[%s218 + $0x138] sm:$0xff]
      %v282 = vld [vmem:[%s218 + $0x140] sm:$0xff]
      %v283 = vld [vmem:[%s218 + $0x148] sm:$0xff]
      %v284 = vld [vmem:[%s218 + $0x150] sm:$0xff]
      %v285 = vld [vmem:[%s218 + $0x158] sm:$0xff]
      %v286 = vld [vmem:[%s218 + $0x160] sm:$0xff]
      %v287 = vld [vmem:[%s218 + $0x168] sm:$0xff]
      %v288 = vld [vmem:[%s218 + $0x170] sm:$0xff]
      %v289 = vld [vmem:[%s218 + $0x178] sm:$0xff]
      %v292 = vunpack.c.l.b16 %v240
      %v293 = vunpack.c.h.b16 %v240
      %v294 = vunpack.c.l.b16 %v241
      %v295 = vpack.c.b16 %v292, %v292
      %v296 = vpack.c.b16 %v293, %v293
      %v297 = vpack.c.b16 %v294, %v294
      %v349 = vunpack.c.l.b16 %v242
      %v350 = vunpack.c.h.b16 %v242
      %v351 = vunpack.c.l.b16 %v243
      %v352 = vunpack.c.h.b16 %v243
      %v353 = vunpack.c.l.b16 %v244
      %v354 = vunpack.c.h.b16 %v244
      %v355 = vunpack.c.l.b16 %v245
      %v356 = vunpack.c.h.b16 %v245
      %v357 = vunpack.c.l.b16 %v246
      %v358 = vunpack.c.h.b16 %v246
      %v359 = vunpack.c.l.b16 %v247
      %v360 = vunpack.c.h.b16 %v247
      %v361 = vunpack.c.l.b16 %v248
      %v362 = vunpack.c.h.b16 %v248
      %v363 = vunpack.c.l.b16 %v249
      %v364 = vunpack.c.h.b16 %v249
      %v365 = vunpack.c.l.b16 %v250
      %v366 = vunpack.c.h.b16 %v250
      %v367 = vunpack.c.l.b16 %v251
      %v368 = vunpack.c.h.b16 %v251
      %v369 = vunpack.c.l.b16 %v252
      %v370 = vunpack.c.h.b16 %v252
      %v371 = vunpack.c.l.b16 %v253
      %v372 = vunpack.c.h.b16 %v253
      %v373 = vunpack.c.l.b16 %v254
      %v374 = vunpack.c.h.b16 %v254
      %v375 = vunpack.c.l.b16 %v255
      %v376 = vunpack.c.h.b16 %v255
      %v377 = vunpack.c.l.b16 %v256
      %v378 = vunpack.c.h.b16 %v256
      %v379 = vunpack.c.l.b16 %v257
      %v380 = vunpack.c.h.b16 %v257
      %v381 = vunpack.c.l.b16 %v258
      %v382 = vunpack.c.h.b16 %v258
      %v383 = vunpack.c.l.b16 %v259
      %v384 = vunpack.c.h.b16 %v259
      %v385 = vunpack.c.l.b16 %v260
      %v386 = vunpack.c.h.b16 %v260
      %v387 = vunpack.c.l.b16 %v261
      %v388 = vunpack.c.h.b16 %v261
      %v389 = vunpack.c.l.b16 %v262
      %v390 = vunpack.c.h.b16 %v262
      %v391 = vunpack.c.l.b16 %v263
      %v392 = vunpack.c.h.b16 %v263
      %v393 = vunpack.c.l.b16 %v264
      %v394 = vunpack.c.h.b16 %v264
      %v395 = vunpack.c.l.b16 %v265
      %v396 = vunpack.c.h.b16 %v265
      %v397 = vunpack.c.l.b16 %v266
      %v398 = vunpack.c.h.b16 %v266
      %v399 = vunpack.c.l.b16 %v267
      %v400 = vunpack.c.h.b16 %v267
      %v401 = vunpack.c.l.b16 %v268
      %v402 = vunpack.c.h.b16 %v268
      %v403 = vunpack.c.l.b16 %v269
      %v404 = vunpack.c.h.b16 %v269
      %v405 = vunpack.c.l.b16 %v270
      %v406 = vunpack.c.h.b16 %v270
      %v407 = vunpack.c.l.b16 %v271
      %v408 = vunpack.c.h.b16 %v271
      %v409 = vunpack.c.l.b16 %v272
      %v410 = vunpack.c.h.b16 %v272
      %v411 = vunpack.c.l.b16 %v273
      %v412 = vunpack.c.h.b16 %v273
      %v413 = vunpack.c.l.b16 %v274
      %v414 = vunpack.c.h.b16 %v274
      %v415 = vunpack.c.l.b16 %v275
      %v416 = vunpack.c.h.b16 %v275
      %v417 = vunpack.c.l.b16 %v276
      %v418 = vunpack.c.h.b16 %v276
      %v419 = vunpack.c.l.b16 %v277
      %v420 = vunpack.c.h.b16 %v277
      %v421 = vunpack.c.l.b16 %v278
      %v422 = vunpack.c.h.b16 %v278
      %v423 = vunpack.c.l.b16 %v279
      %v424 = vunpack.c.h.b16 %v279
      %v425 = vunpack.c.l.b16 %v280
      %v426 = vunpack.c.h.b16 %v280
      %v427 = vunpack.c.l.b16 %v281
      %v428 = vunpack.c.h.b16 %v281
      %v429 = vunpack.c.l.b16 %v282
      %v430 = vunpack.c.h.b16 %v282
      %v431 = vunpack.c.l.b16 %v283
      %v432 = vunpack.c.h.b16 %v283
      %v433 = vunpack.c.l.b16 %v284
      %v434 = vunpack.c.h.b16 %v284
      %v435 = vunpack.c.l.b16 %v285
      %v436 = vunpack.c.h.b16 %v285
      %v437 = vunpack.c.l.b16 %v286
      %v438 = vunpack.c.h.b16 %v286
      %v439 = vunpack.c.l.b16 %v287
      %v440 = vunpack.c.h.b16 %v287
      %v441 = vunpack.c.l.b16 %v288
      %v442 = vunpack.c.h.b16 %v288
      %v443 = vunpack.c.l.b16 %v289
      %v444 = vunpack.c.h.b16 %v289
      %v445 = vpack.c.b16 %v351, %v349
      %v446 = vpack.c.b16 %v352, %v350
      %v447 = vpack.c.b16 %v355, %v353
      %v448 = vpack.c.b16 %v356, %v354
      %v449 = vpack.c.b16 %v359, %v357
      %v450 = vpack.c.b16 %v360, %v358
      %v451 = vpack.c.b16 %v363, %v361
      %v452 = vpack.c.b16 %v364, %v362
      %v453 = vpack.c.b16 %v367, %v365
      %v454 = vpack.c.b16 %v368, %v366
      %v455 = vpack.c.b16 %v371, %v369
      %v456 = vpack.c.b16 %v372, %v370
      %v457 = vpack.c.b16 %v375, %v373
      %v458 = vpack.c.b16 %v376, %v374
      %v459 = vpack.c.b16 %v379, %v377
      %v460 = vpack.c.b16 %v380, %v378
      %v461 = vpack.c.b16 %v383, %v381
      %v462 = vpack.c.b16 %v384, %v382
      %v463 = vpack.c.b16 %v387, %v385
      %v464 = vpack.c.b16 %v388, %v386
      %v465 = vpack.c.b16 %v391, %v389
      %v466 = vpack.c.b16 %v392, %v390
      %v467 = vpack.c.b16 %v395, %v393
      %v468 = vpack.c.b16 %v396, %v394
      %v469 = vpack.c.b16 %v399, %v397
      %v470 = vpack.c.b16 %v400, %v398
      %v471 = vpack.c.b16 %v403, %v401
      %v472 = vpack.c.b16 %v404, %v402
      %v473 = vpack.c.b16 %v407, %v405
      %v474 = vpack.c.b16 %v408, %v406
      %v475 = vpack.c.b16 %v411, %v409
      %v476 = vpack.c.b16 %v412, %v410
      %v477 = vpack.c.b16 %v415, %v413
      %v478 = vpack.c.b16 %v416, %v414
      %v479 = vpack.c.b16 %v419, %v417
      %v480 = vpack.c.b16 %v420, %v418
      %v481 = vpack.c.b16 %v423, %v421
      %v482 = vpack.c.b16 %v424, %v422
      %v483 = vpack.c.b16 %v427, %v425
      %v484 = vpack.c.b16 %v428, %v426
      %v485 = vpack.c.b16 %v431, %v429
      %v486 = vpack.c.b16 %v432, %v430
      %v487 = vpack.c.b16 %v435, %v433
      %v488 = vpack.c.b16 %v436, %v434
      %v489 = vpack.c.b16 %v439, %v437
      %v490 = vpack.c.b16 %v440, %v438
      %v491 = vpack.c.b16 %v443, %v441
      %v492 = vpack.c.b16 %v444, %v442
      %541 = vmatprep.subr.bf16.mxu0 %v446
      %542 = vmatpush1.bf16.msra.mxu0 %v445
      %543 = vmatprep.subr.bf16.mxu0 %v448
      %544 = vmatpush1.bf16.msra.mxu0 %v447
      %545 = vmatprep.subr.bf16.mxu0 %v450
      %546 = vmatpush1.bf16.msra.mxu0 %v449
      %547 = vmatprep.subr.bf16.mxu0 %v452
      %548 = vmatpush1.bf16.msra.mxu0 %v451
      %549 = vmatprep.subr.bf16.mxu0 %v454
      %550 = vmatpush1.bf16.msra.mxu0 %v453
      %551 = vmatprep.subr.bf16.mxu0 %v456
      %552 = vmatpush1.bf16.msra.mxu0 %v455
      %553 = vmatprep.subr.bf16.mxu0 %v458
      %554 = vmatpush1.bf16.msra.mxu0 %v457
      %555 = vmatprep.subr.bf16.mxu0 %v460
      %556 = vmatpush1.bf16.msra.mxu0 %v459
      %557 = vmatprep.subr.bf16.mxu0 %v462
      %558 = vmatpush1.bf16.msra.mxu0 %v461
      %559 = vmatprep.subr.bf16.mxu0 %v464
      %560 = vmatpush1.bf16.msra.mxu0 %v463
      %561 = vmatprep.subr.bf16.mxu0 %v466
      %562 = vmatpush1.bf16.msra.mxu0 %v465
      %563 = vmatprep.subr.bf16.mxu0 %v468
      %564 = vmatpush1.bf16.msra.mxu0 %v467
      %565 = vmatprep.subr.bf16.mxu0 %v470
      %566 = vmatpush1.bf16.msra.mxu0 %v469
      %567 = vmatprep.subr.bf16.mxu0 %v472
      %568 = vmatpush1.bf16.msra.mxu0 %v471
      %569 = vmatprep.subr.bf16.mxu0 %v474
      %570 = vmatpush1.bf16.msra.mxu0 %v473
      %571 = vmatprep.subr.bf16.mxu0 %v476
      %572 = vmatpush1.bf16.msra.mxu0 %v475
      %573 = vmatprep.mubr.bf16.mxu0 %v296
      %574 = vmatmul.mubr.bf16.gmra.mrb[0].mxu0 %v295
      %v575 = vpop.f32.mrb[0].mxu0
      %v576 = vadd.f32 0.0, %v575
      %v577 = vpop.f32.mrb[0].mxu0
      %v578 = vadd.f32 0.0, %v577
      %v579 = vpop.f32.mrb[0].mxu0
      %v580 = vpop.f32.mrb[0].mxu0
      %581 = vdwg.mxu0
      %582 = vmatprep.subr.bf16.mxu0 %v478
      %583 = vmatpush1.bf16.msra.mxu0 %v477
      %584 = vmatprep.subr.bf16.mxu0 %v480
      %585 = vmatpush1.bf16.msra.mxu0 %v479
      %586 = vmatprep.subr.bf16.mxu0 %v482
      %587 = vmatpush1.bf16.msra.mxu0 %v481
      %588 = vmatprep.subr.bf16.mxu0 %v484
      %589 = vmatpush1.bf16.msra.mxu0 %v483
      %590 = vmatprep.subr.bf16.mxu0 %v486
      %591 = vmatpush1.bf16.msra.mxu0 %v485
      %592 = vmatprep.subr.bf16.mxu0 %v488
      %593 = vmatpush1.bf16.msra.mxu0 %v487
      %594 = vmatprep.subr.bf16.mxu0 %v490
      %595 = vmatpush1.bf16.msra.mxu0 %v489
      %596 = vmatprep.subr.bf16.mxu0 %v492
      %597 = vmatpush1.bf16.msra.mxu0 %v491
      %598 = vmatprep.subr.bf16.mxu0 0
      %599 = vmatpush1.bf16.msra.mxu0 0
      %600 = vmatprep.subr.bf16.mxu0 0
      %601 = vmatpush1.bf16.msra.mxu0 0
      %602 = vmatprep.subr.bf16.mxu0 0
      %603 = vmatpush1.bf16.msra.mxu0 0
      %604 = vmatprep.subr.bf16.mxu0 0
      %605 = vmatpush1.bf16.msra.mxu0 0
      %606 = vmatprep.subr.bf16.mxu0 0
      %607 = vmatpush1.bf16.msra.mxu0 0
      %608 = vmatprep.subr.bf16.mxu0 0
      %609 = vmatpush1.bf16.msra.mxu0 0
      %610 = vmatprep.subr.bf16.mxu0 0
      %611 = vmatpush1.bf16.msra.mxu0 0
      %612 = vmatprep.subr.bf16.mxu0 0
      %613 = vmatpush1.bf16.msra.mxu0 0
      %614 = vmatprep.mubr.bf16.mxu0 0
      %615 = vmatmul.mubr.bf16.gmra.mrb[0].mxu0 %v297
      %v616 = vpop.f32.mrb[0].mxu0
      %v617 = vadd.f32 %v576, %v616
      %v618 = vpop.f32.mrb[0].mxu0
      %v619 = vadd.f32 %v578, %v618
      %v620 = vpop.f32.mrb[0].mxu0
      %v621 = vpop.f32.mrb[0].mxu0
      %622 = vdwg.mxu0
      %v623 = vadd.f32 %v238, %v617
      %v624 = vadd.f32 %v239, %v619
      %625 = vst [vmem:[#allocation2] sm:$0xff] %v623
      %626 = vst [vmem:[#allocation2 + $0x8] sm:$0xff] %v624
      %p627 = scmp.eq.s32.totalorder %s20, 5
      // Predicated region
      $region33: #{resnet_forward.30} parent=27 // pred_check
        %p628 = pneg %p627
      $region34: #{resnet_forward.30} parent=27 // pred_check_branch
        %630 = sbr.rel (%p628) target = $region36
      $region35: #{resnet_forward.30} parent=27 // pred_region
        %v631 = vld [vmem:[#allocation2] sm:$0xff]
        %v632 = vld [vmem:[#allocation2 + $0x8] sm:$0xff]
        %v633 = vmax.f32 %v631, 0.0
        %v634 = vmax.f32 %v632, 0.0
        %635 = vst [vmem:[%s229] sm:$0xff] %v633
        %636 = vst [vmem:[%s229 + $0x8] sm:$0xff] %v634
      $region36: #{resnet_forward.30} parent=27 // pred_fallthru
        _
      %s637 = smul.u32 2, %s19
      %p638 = scmp.lt.s32.totalorder %s18, 0
      %s639 = scalar_select %p638, %s18, 0
      %p640 = scmp.lt.s32.totalorder %s637, 1
      %s641 = scalar_select %p640, %s637, 1
      %s642 = smul.addr %s639, 2
      %s643 = sadd.s32 %s641, %s642
      %s644 = smul.addr %s643, 8
      %s645 = scalar_lea.vmem %s2, %s644
      // Predicated region
      $region37: #{resnet_forward.30} parent=27 // pred_check
        %p646 = pneg %p108
      $region38: #{resnet_forward.30} parent=27 // pred_check_branch
        %648 = sbr.rel (%p646) target = $region40
      $region39: #{resnet_forward.30} parent=27 // pred_region
        %s649 = smul.u32 2, %s19
      $region40: #{resnet_forward.30} parent=27 // pred_fallthru
        _
      // Predicated region
      $region41: #{resnet_forward.30} parent=27 // pred_check
        %p650 = pneg %p108
      $region42: #{resnet_forward.30} parent=27 // pred_check_branch
        %652 = sbr.rel (%p650) target = $region44
      $region43: #{resnet_forward.30} parent=27 // pred_region
        %s653 = smul.u32 2, %s19
        %p654 = scmp.lt.s32.totalorder %s18, 0
        %s655 = scalar_select %p654, %s18, 0
        %p656 = scmp.lt.s32.totalorder %s653, 1
        %s657 = scalar_select %p656, %s653, 1
        %s658 = smul.addr %s655, 2
        %s659 = sadd.s32 %s657, %s658
        %s660 = smul.addr %s659, 8
        %s661 = scalar_lea.vmem %s2, %s660
      $region44: #{resnet_forward.30} parent=27 // pred_fallthru
        _
    $region28: #{resnet_forward.30} parent=5 // pred_fallthru
      _
    %p662 = scmp.le.s32.totalorder 2, %s8
    // Predicated region
    $region45: #{resnet_forward.30} parent=5 // pred_check
      %p663 = pneg %p662
    $region46: #{resnet_forward.30} parent=5 // pred_check_branch
      %665 = sbr.rel (%p663) target = $region48
    $region47: #{resnet_forward.30} parent=5 // pred_region
      %s666 = ssub.s32 %s8, 2
    $region48: #{resnet_forward.30} parent=5 // pred_fallthru
      _
  $region6: #{resnet_forward.30} parent=0 // loop_footer
    %s12 = sadd.s32 1, %s8
  $region7: #{resnet_forward.30} parent=0 // loop_footer_branch
    %7 = sbr.rel target = $region3
  $region8: #{resnet_forward.30} parent=0 // loop_exit
    _

</llo_original>
